<compile_context>
chip_gen: v5e
topology: v5e:2x2
jax: 0.10.0
libtpu: 0.0.40
codegen_flags: <defaults>
</compile_context>

<pallas_src>
import jax
import jax.numpy as jnp
from jax.experimental import pallas as pl
from jax.experimental.pallas import tpu as pltpu

N_CHAN = 63      # electrodes: fixed by the (63, 1) spatial conv in the module
N_FILT = 40      # temporal filters
K_TIME = 25      # temporal conv kernel width
POOL_W = 51      # avg-pool window
POOL_S = 5       # avg-pool stride
FUSED_K = K_TIME + POOL_W - 1   # 75: fused (conv ∘ avg-pool) kernel length
BN_EPS = 1e-5
SUB = 16         # sublane alignment we pad pooled-time to (bf16 packs 16 rows/vreg)
LANE = 128


def _round_up(v, m):
    return (v + m - 1) // m * m


def _elu(v):
    # ELU(alpha=1) in f32.
    return jnp.where(v > 0, v, jnp.exp(jnp.minimum(v, 0.0)) - 1.0)


def _patch_embed_kernel(nbt):
    """nbt = NB * Tp8 = rows per grid step of the (sample, pooled-pos) axis."""
    def kernel(xp_ref, kf_ref, ba_ref, w2_ref, bb_ref, w3_ref, b3_ref,
               out_ref, a_scr, a2_scr):
        # xp_ref : [63*nbt, 75]   bf16  im2col windows, rows ordered (h, sample, p)
        # kf_ref : [75, 40]       bf16  fused temporal conv + pool (+ BN1 scale)
        # ba_ref : [1, 40]        f32   fused bias
        # w2_ref : [2520, 40]     bf16  spatial conv, (h, c_in) flattened, BN2-scaled
        # bb_ref : [1, 40]        f32
        # w3_ref : [40, emb_pad]  f32   1x1 projection (zero-padded columns)
        # b3_ref : [1, emb_pad]   f32
        # out_ref: [nbt, emb_pad] f32
        # a_scr  : [63*nbt, 40]   bf16  post-ELU temporal features
        # a2_scr : [nbt, 2520]    bf16  re-laid features, (h, c) along lanes

        # ---- temporal conv + pool + BN1 + ELU: one big MXU matmul, one VPU/EUP pass
        a = jnp.dot(xp_ref[...], kf_ref[...],
                    preferred_element_type=jnp.float32) + ba_ref[...]
        a_scr[...] = _elu(a).astype(a_scr.dtype)

        # ---- relayout: bring electrode h into the lane axis so the spatial conv is a
        #      single K = 63*40 = 2520 matmul.  63 static, sublane-aligned copies.
        for h in range(N_CHAN):
            a2_scr[:, h * N_FILT:(h + 1) * N_FILT] = a_scr[h * nbt:(h + 1) * nbt, :]

        # ---- spatial (63,1) conv + BN2 + ELU: one K=2520 matmul
        z = jnp.dot(a2_scr[...], w2_ref[...],
                    preferred_element_type=jnp.float32) + bb_ref[...]
        z = _elu(z)

        # ---- 1x1 projection (dropout = identity in eval); lane-dense output store
        o = jnp.dot(z, w3_ref[...], preferred_element_type=jnp.float32) + b3_ref[...]
        out_ref[...] = o.astype(out_ref.dtype)
    return kernel


def patch_embedding_forward(x, params, emb_size=40):
    """Eval-mode PatchEmbedding forward. x: [B, 63, T] float32 -> [B, Tp, emb]."""
    B, C, T = x.shape
    assert C == N_CHAN
    t_conv = T - K_TIME + 1
    tp = (t_conv - POOL_W) // POOL_S + 1
    assert tp >= 1
    tp_pad = _round_up(tp, SUB)
    emb_pad = _round_up(emb_size, LANE)

    w1, b1 = params["w1"], params["b1"]          # [40, 25], [40]

    # ---- fuse avg-pool into the temporal conv (both linear along time) ----
    # K[c, s] = (1/51) * sum_{k=max(0,s-50)}^{min(24,s)} w1[c, k],  s in [0, 75)
    s = jnp.arange(FUSED_K)
    hi = jnp.minimum(s, K_TIME - 1)
    lo = jnp.maximum(s - (POOL_W - 1), 0)
    csum = jnp.concatenate(
        [jnp.zeros((N_FILT, 1), w1.dtype), jnp.cumsum(w1, axis=1)], axis=1)
    k_fused = (csum[:, hi + 1] - csum[:, lo]) / float(POOL_W)        # [40, 75]

    # ---- fold eval-mode BatchNorm affines into weights / biases ----
    s1 = params["g1"] / jnp.sqrt(params["v1"] + BN_EPS)
    s2 = params["g2"] / jnp.sqrt(params["v2"] + BN_EPS)
    kf = (k_fused * s1[:, None]).T.astype(jnp.bfloat16)              # [75, 40]
    ba = (b1 * s1 + params["be1"] - params["m1"] * s1)[None, :].astype(jnp.float32)
    w2f = (jnp.transpose(params["w2"], (2, 1, 0))                    # [63, 40in, 40out]
           .reshape(N_CHAN * N_FILT, N_FILT) * s2[None, :]).astype(jnp.bfloat16)
    bb = (params["b2"] * s2 + params["be2"]
          - params["m2"] * s2)[None, :].astype(jnp.float32)
    w3p = jnp.zeros((N_FILT, emb_pad), jnp.float32).at[:, :emb_size].set(
        params["w3"].T.astype(jnp.float32))                          # [40, emb_pad]
    b3p = jnp.zeros((1, emb_pad), jnp.float32).at[0, :emb_size].set(
        params["b3"].astype(jnp.float32))

    # ---- choose NB (samples per grid step) under a VMEM budget ----
    per_sample = tp_pad * (N_CHAN * LANE * 2 * 2      # im2col block, double buffered
                           + N_CHAN * LANE * 2        # a_scr
                           + _round_up(N_CHAN * N_FILT, LANE) * 2   # a2_scr
                           + emb_pad * 4 * 2)         # output block, double buffered
    budget = 20 * 2 ** 20
    nb = max(1, min(8, B))
    while nb > 1 and (B % nb != 0 or nb * per_sample > budget or B // nb < 2):
        nb -= 1
    assert B % nb == 0
    G = B // nb
    nbt = nb * tp_pad
    rows = N_CHAN * nbt

    # ---- wrapper-side im2col: rows ordered (block g, electrode h, sample j, pos p) ----
    idx = jnp.arange(tp)[:, None] * POOL_S + jnp.arange(FUSED_K)[None, :]   # [Tp, 75]
    win = x[:, :, idx]                                               # [B, 63, Tp, 75]
    win = jnp.pad(win, ((0, 0), (0, 0), (0, tp_pad - tp), (0, 0)))   # pad Tp -> Tp8
    xp = (win.reshape(G, nb, N_CHAN, tp_pad, FUSED_K)
             .transpose(0, 2, 1, 3, 4)
             .reshape(G * rows, FUSED_K)
             .astype(jnp.bfloat16))

    grid_spec = pltpu.PrefetchScalarGridSpec(
        num_scalar_prefetch=0,
        grid=(G,),
        in_specs=[
            pl.BlockSpec((rows, FUSED_K), lambda g: (g, 0)),             # im2col block
            pl.BlockSpec((FUSED_K, N_FILT), lambda g: (0, 0)),           # resident kf
            pl.BlockSpec((1, N_FILT), lambda g: (0, 0)),
            pl.BlockSpec((N_CHAN * N_FILT, N_FILT), lambda g: (0, 0)),   # resident w2
            pl.BlockSpec((1, N_FILT), lambda g: (0, 0)),
            pl.BlockSpec((N_FILT, emb_pad), lambda g: (0, 0)),           # resident w3
            pl.BlockSpec((1, emb_pad), lambda g: (0, 0)),
        ],
        out_specs=pl.BlockSpec((nbt, emb_pad), lambda g: (g, 0)),
        scratch_shapes=[
            pltpu.VMEM((rows, N_FILT), jnp.bfloat16),
            pltpu.VMEM((nbt, N_CHAN * N_FILT), jnp.bfloat16),
        ],
    )
    vmem_limit = int(min(56 * 2 ** 20,
                         max(32 * 2 ** 20, 2 * nb * per_sample + (1 << 20))))
    out = pl.pallas_call(
        _patch_embed_kernel(nbt),
        out_shape=jax.ShapeDtypeStruct((G * nbt, emb_pad), jnp.float32),
        grid_spec=grid_spec,
        compiler_params=pltpu.CompilerParams(
            dimension_semantics=("parallel",),
            vmem_limit_bytes=vmem_limit),
    )(xp, kf, ba, w2f, bb, w3p, b3p)

    out = out.reshape(B, tp_pad, emb_pad)[:, :tp, :emb_size]
    return out.astype(x.dtype)


def reference_forward(x, params):
    """Plain-JAX reference mirroring the PyTorch forward (eval mode, unfused)."""
    hp = jax.lax.Precision.HIGHEST
    xi = x[:, None, :, :]                                            # [B,1,63,T]
    y = jax.lax.conv_general_dilated(
        xi, params["w1"][:, None, None, :], (1, 1), "VALID",
        dimension_numbers=("NCHW", "OIHW", "NCHW"), precision=hp)
    y = y + params["b1"][None, :, None, None]
    y = jax.lax.reduce_window(y, 0.0, jax.lax.add, (1, 1, 1, POOL_W),
                              (1, 1, 1, POOL_S), "VALID") / float(POOL_W)
    s1 = params["g1"] / jnp.sqrt(params["v1"] + BN_EPS)
    y = (y - params["m1"][None, :, None, None]) * s1[None, :, None, None] \
        + params["be1"][None, :, None, None]
    y = jax.nn.elu(y)
    z = jax.lax.conv_general_dilated(
        y, params["w2"][:, :, :, None], (1, 1), "VALID",
        dimension_numbers=("NCHW", "OIHW", "NCHW"), precision=hp)
    z = z + params["b2"][None, :, None, None]
    s2 = params["g2"] / jnp.sqrt(params["v2"] + BN_EPS)
    z = (z - params["m2"][None, :, None, None]) * s2[None, :, None, None] \
        + params["be2"][None, :, None, None]
    z = jax.nn.elu(z)
    o = jnp.einsum("bchw,ec->behw", z, params["w3"], precision=hp) \
        + params["b3"][None, :, None, None]
    Bo, E, H, W = o.shape
    return jnp.transpose(o.reshape(Bo, E, H * W), (0, 2, 1))          # [B, H*W, E]


def make_params(key, emb_size=40):
    ks = jax.random.split(key, 14)

    def unif(k, shape, fan_in):
        bound = 1.0 / (fan_in ** 0.5)
        return jax.random.uniform(k, shape, jnp.float32, -bound, bound)

    return {
        # Conv2d(1, 40, (1, 25))
        "w1": unif(ks[0], (N_FILT, K_TIME), 1 * K_TIME),
        "b1": unif(ks[1], (N_FILT,), 1 * K_TIME),
        # BatchNorm2d(40) -- eval-mode running stats (non-trivial so BN is exercised)
        "g1": 1.0 + 0.1 * jax.random.normal(ks[2], (N_FILT,), jnp.float32),
        "be1": 0.1 * jax.random.normal(ks[3], (N_FILT,), jnp.float32),
        "m1": 0.1 * jax.random.normal(ks[4], (N_FILT,), jnp.float32),
        "v1": jax.random.uniform(ks[5], (N_FILT,), jnp.float32, 0.5, 1.5),
        # Conv2d(40, 40, (63, 1))
        "w2": unif(ks[6], (N_FILT, N_FILT, N_CHAN), N_FILT * N_CHAN),
        "b2": unif(ks[7], (N_FILT,), N_FILT * N_CHAN),
        "g2": 1.0 + 0.1 * jax.random.normal(ks[8], (N_FILT,), jnp.float32),
        "be2": 0.1 * jax.random.normal(ks[9], (N_FILT,), jnp.float32),
        "m2": 0.1 * jax.random.normal(ks[10], (N_FILT,), jnp.float32),
        "v2": jax.random.uniform(ks[11], (N_FILT,), jnp.float32, 0.5, 1.5),
        # Conv2d(40, emb, (1, 1)) projection
        "w3": unif(ks[12], (emb_size, N_FILT), N_FILT),
        "b3": unif(ks[13], (emb_size,), N_FILT),
    }


if __name__ == "__main__":
    B, T = 2, 100          # small: 2 samples, 63 electrodes, 100 time steps
    emb_size = 40

    key = jax.random.PRNGKey(0)
    k_x, k_p = jax.random.split(key)
    x = jax.random.normal(k_x, (B, N_CHAN, T), dtype=jnp.float32)
    params = make_params(k_p, emb_size)

    out = patch_embedding_forward(x, params, emb_size=emb_size)
    out = jax.block_until_ready(out)

    ref = reference_forward(x, params)
    tp = ((T - K_TIME + 1) - POOL_W) // POOL_S + 1
    assert out.shape == (B, tp, emb_size), out.shape
    assert jnp.allclose(out, ref, atol=2e-3, rtol=2e-3), \
        float(jnp.max(jnp.abs(out - ref)))
    print("KERNEL_OK")
</pallas_src>

<mosaic_0001>
module attributes {stable_mosaic.version = 11 : i64} {
  func.func @kernel(%arg0: i32, %arg1: memref<1008x75xbf16, #tpu.memory_space<vmem>>, %arg2: memref<75x40xbf16, #tpu.memory_space<vmem>>, %arg3: memref<1x40xf32, #tpu.memory_space<vmem>>, %arg4: memref<2520x40xbf16, #tpu.memory_space<vmem>>, %arg5: memref<1x40xf32, #tpu.memory_space<vmem>>, %arg6: memref<40x128xf32, #tpu.memory_space<vmem>>, %arg7: memref<1x128xf32, #tpu.memory_space<vmem>>, %arg8: memref<16x128xf32, #tpu.memory_space<vmem>>, %arg9: memref<1008x40xbf16, #tpu.memory_space<vmem>>, %arg10: memref<16x2520xbf16, #tpu.memory_space<vmem>>) attributes {dimension_semantics = [#tpu.dimension_semantics<parallel>], iteration_bounds = array<i64: 2>, scalar_prefetch = 0 : i64, scratch_operands = 2 : i64, tpu.core_type = #tpu.core_type<tc>, window_params = [{transform_indices = @transform_0, window_bounds = array<i64: 1008, 75>}, {pipeline_mode = #tpu.pipeline_mode<synchronous>, transform_indices = @transform_1, window_bounds = array<i64: 75, 40>}, {pipeline_mode = #tpu.pipeline_mode<synchronous>, transform_indices = @transform_2, window_bounds = array<i64: 1, 40>}, {pipeline_mode = #tpu.pipeline_mode<synchronous>, transform_indices = @transform_3, window_bounds = array<i64: 2520, 40>}, {pipeline_mode = #tpu.pipeline_mode<synchronous>, transform_indices = @transform_4, window_bounds = array<i64: 1, 40>}, {pipeline_mode = #tpu.pipeline_mode<synchronous>, transform_indices = @transform_5, window_bounds = array<i64: 40, 128>}, {pipeline_mode = #tpu.pipeline_mode<synchronous>, transform_indices = @transform_6, window_bounds = array<i64: 1, 128>}, {transform_indices = @transform_7, window_bounds = array<i64: 16, 128>}]} {
    %c0 = arith.constant 0 : index
    %c0_0 = arith.constant 0 : index
    %0 = vector.load %arg1[%c0, %c0_0] : memref<1008x75xbf16, #tpu.memory_space<vmem>>, vector<1008x75xbf16>
    %c0_1 = arith.constant 0 : index
    %c0_2 = arith.constant 0 : index
    %1 = vector.load %arg2[%c0_1, %c0_2] : memref<75x40xbf16, #tpu.memory_space<vmem>>, vector<75x40xbf16>
    %cst = arith.constant dense<0.000000e+00> : vector<1008x40xf32>
    %2 = tpu.matmul %0, %1, %cst {dimension_numbers = #tpu.dot_dimension_numbers<[1], [0], [0], [1], [0, 0, 1, 1], [], []>} : vector<1008x75xbf16>, vector<75x40xbf16>, vector<1008x40xf32> -> vector<1008x40xf32>
    %c0_3 = arith.constant 0 : index
    %c0_4 = arith.constant 0 : index
    %3 = vector.load %arg3[%c0_3, %c0_4] : memref<1x40xf32, #tpu.memory_space<vmem>>, vector<1x40xf32>
    %4 = vector.broadcast %3 : vector<1x40xf32> to vector<1008x40xf32>
    %5 = arith.addf %2, %4 : vector<1008x40xf32>
    %cst_5 = arith.constant 0.000000e+00 : f32
    %6 = vector.broadcast %cst_5 : f32 to vector<1008x40xf32>
    %7 = arith.cmpf ogt, %5, %6 : vector<1008x40xf32>
    %cst_6 = arith.constant 0.000000e+00 : f32
    %8 = vector.broadcast %cst_6 : f32 to vector<1008x40xf32>
    %9 = arith.minimumf %5, %8 : vector<1008x40xf32>
    %10 = math.exp %9 : vector<1008x40xf32>
    %cst_7 = arith.constant 1.000000e+00 : f32
    %11 = vector.broadcast %cst_7 : f32 to vector<1008x40xf32>
    %12 = arith.subf %10, %11 : vector<1008x40xf32>
    %13 = arith.select %7, %5, %12 : vector<1008x40xi1>, vector<1008x40xf32>
    %14 = arith.truncf %13 : vector<1008x40xf32> to vector<1008x40xbf16>
    %c0_8 = arith.constant 0 : index
    %c0_9 = arith.constant 0 : index
    %15 = vector.load %arg9[%c0_8, %c0_9] : memref<1008x40xbf16, #tpu.memory_space<vmem>>, vector<1008x40xbf16>
    tpu.vector_store %arg9[%c0_8, %c0_9], %14 {strides = array<i32>} : memref<1008x40xbf16, #tpu.memory_space<vmem>>, vector<1008x40xbf16>,
    %c0_10 = arith.constant 0 : index
    %c0_11 = arith.constant 0 : index
    %16 = vector.load %arg9[%c0_10, %c0_11] : memref<1008x40xbf16, #tpu.memory_space<vmem>>, vector<16x40xbf16>
    %c0_12 = arith.constant 0 : index
    %c0_13 = arith.constant 0 : index
    %17 = vector.load %arg10[%c0_12, %c0_13] : memref<16x2520xbf16, #tpu.memory_space<vmem>>, vector<16x40xbf16>
    tpu.vector_store %arg10[%c0_12, %c0_13], %16 {strides = array<i32>} : memref<16x2520xbf16, #tpu.memory_space<vmem>>, vector<16x40xbf16>,
    %c16 = arith.constant 16 : index
    %c0_14 = arith.constant 0 : index
    %18 = vector.load %arg9[%c16, %c0_14] : memref<1008x40xbf16, #tpu.memory_space<vmem>>, vector<16x40xbf16>
    %c0_15 = arith.constant 0 : index
    %c40 = arith.constant 40 : index
    %19 = vector.load %arg10[%c0_15, %c40] : memref<16x2520xbf16, #tpu.memory_space<vmem>>, vector<16x40xbf16>
    tpu.vector_store %arg10[%c0_15, %c40], %18 {strides = array<i32>} : memref<16x2520xbf16, #tpu.memory_space<vmem>>, vector<16x40xbf16>,
    %c32 = arith.constant 32 : index
    %c0_16 = arith.constant 0 : index
    %20 = vector.load %arg9[%c32, %c0_16] : memref<1008x40xbf16, #tpu.memory_space<vmem>>, vector<16x40xbf16>
    %c0_17 = arith.constant 0 : index
    %c80 = arith.constant 80 : index
    %21 = vector.load %arg10[%c0_17, %c80] : memref<16x2520xbf16, #tpu.memory_space<vmem>>, vector<16x40xbf16>
    tpu.vector_store %arg10[%c0_17, %c80], %20 {strides = array<i32>} : memref<16x2520xbf16, #tpu.memory_space<vmem>>, vector<16x40xbf16>,
    %c48 = arith.constant 48 : index
    %c0_18 = arith.constant 0 : index
    %22 = vector.load %arg9[%c48, %c0_18] : memref<1008x40xbf16, #tpu.memory_space<vmem>>, vector<16x40xbf16>
    %c0_19 = arith.constant 0 : index
    %c120 = arith.constant 120 : index
    %23 = vector.load %arg10[%c0_19, %c120] : memref<16x2520xbf16, #tpu.memory_space<vmem>>, vector<16x40xbf16>
    tpu.vector_store %arg10[%c0_19, %c120], %22 {strides = array<i32>} : memref<16x2520xbf16, #tpu.memory_space<vmem>>, vector<16x40xbf16>,
    %c64 = arith.constant 64 : index
    %c0_20 = arith.constant 0 : index
    %24 = vector.load %arg9[%c64, %c0_20] : memref<1008x40xbf16, #tpu.memory_space<vmem>>, vector<16x40xbf16>
    %c0_21 = arith.constant 0 : index
    %c160 = arith.constant 160 : index
    %25 = vector.load %arg10[%c0_21, %c160] : memref<16x2520xbf16, #tpu.memory_space<vmem>>, vector<16x40xbf16>
    tpu.vector_store %arg10[%c0_21, %c160], %24 {strides = array<i32>} : memref<16x2520xbf16, #tpu.memory_space<vmem>>, vector<16x40xbf16>,
    %c80_22 = arith.constant 80 : index
    %c0_23 = arith.constant 0 : index
    %26 = vector.load %arg9[%c80_22, %c0_23] : memref<1008x40xbf16, #tpu.memory_space<vmem>>, vector<16x40xbf16>
    %c0_24 = arith.constant 0 : index
    %c200 = arith.constant 200 : index
    %27 = vector.load %arg10[%c0_24, %c200] : memref<16x2520xbf16, #tpu.memory_space<vmem>>, vector<16x40xbf16>
    tpu.vector_store %arg10[%c0_24, %c200], %26 {strides = array<i32>} : memref<16x2520xbf16, #tpu.memory_space<vmem>>, vector<16x40xbf16>,
    %c96 = arith.constant 96 : index
    %c0_25 = arith.constant 0 : index
    %28 = vector.load %arg9[%c96, %c0_25] : memref<1008x40xbf16, #tpu.memory_space<vmem>>, vector<16x40xbf16>
    %c0_26 = arith.constant 0 : index
    %c240 = arith.constant 240 : index
    %29 = vector.load %arg10[%c0_26, %c240] : memref<16x2520xbf16, #tpu.memory_space<vmem>>, vector<16x40xbf16>
    tpu.vector_store %arg10[%c0_26, %c240], %28 {strides = array<i32>} : memref<16x2520xbf16, #tpu.memory_space<vmem>>, vector<16x40xbf16>,
    %c112 = arith.constant 112 : index
    %c0_27 = arith.constant 0 : index
    %30 = vector.load %arg9[%c112, %c0_27] : memref<1008x40xbf16, #tpu.memory_space<vmem>>, vector<16x40xbf16>
    %c0_28 = arith.constant 0 : index
    %c280 = arith.constant 280 : index
    %31 = vector.load %arg10[%c0_28, %c280] : memref<16x2520xbf16, #tpu.memory_space<vmem>>, vector<16x40xbf16>
    tpu.vector_store %arg10[%c0_28, %c280], %30 {strides = array<i32>} : memref<16x2520xbf16, #tpu.memory_space<vmem>>, vector<16x40xbf16>,
    %c128 = arith.constant 128 : index
    %c0_29 = arith.constant 0 : index
    %32 = vector.load %arg9[%c128, %c0_29] : memref<1008x40xbf16, #tpu.memory_space<vmem>>, vector<16x40xbf16>
    %c0_30 = arith.constant 0 : index
    %c320 = arith.constant 320 : index
    %33 = vector.load %arg10[%c0_30, %c320] : memref<16x2520xbf16, #tpu.memory_space<vmem>>, vector<16x40xbf16>
    tpu.vector_store %arg10[%c0_30, %c320], %32 {strides = array<i32>} : memref<16x2520xbf16, #tpu.memory_space<vmem>>, vector<16x40xbf16>,
    %c144 = arith.constant 144 : index
    %c0_31 = arith.constant 0 : index
    %34 = vector.load %arg9[%c144, %c0_31] : memref<1008x40xbf16, #tpu.memory_space<vmem>>, vector<16x40xbf16>
    %c0_32 = arith.constant 0 : index
    %c360 = arith.constant 360 : index
    %35 = vector.load %arg10[%c0_32, %c360] : memref<16x2520xbf16, #tpu.memory_space<vmem>>, vector<16x40xbf16>
    tpu.vector_store %arg10[%c0_32, %c360], %34 {strides = array<i32>} : memref<16x2520xbf16, #tpu.memory_space<vmem>>, vector<16x40xbf16>,
    %c160_33 = arith.constant 160 : index
    %c0_34 = arith.constant 0 : index
    %36 = vector.load %arg9[%c160_33, %c0_34] : memref<1008x40xbf16, #tpu.memory_space<vmem>>, vector<16x40xbf16>
    %c0_35 = arith.constant 0 : index
    %c400 = arith.constant 400 : index
    %37 = vector.load %arg10[%c0_35, %c400] : memref<16x2520xbf16, #tpu.memory_space<vmem>>, vector<16x40xbf16>
    tpu.vector_store %arg10[%c0_35, %c400], %36 {strides = array<i32>} : memref<16x2520xbf16, #tpu.memory_space<vmem>>, vector<16x40xbf16>,
    %c176 = arith.constant 176 : index
    %c0_36 = arith.constant 0 : index
    %38 = vector.load %arg9[%c176, %c0_36] : memref<1008x40xbf16, #tpu.memory_space<vmem>>, vector<16x40xbf16>
    %c0_37 = arith.constant 0 : index
    %c440 = arith.constant 440 : index
    %39 = vector.load %arg10[%c0_37, %c440] : memref<16x2520xbf16, #tpu.memory_space<vmem>>, vector<16x40xbf16>
    tpu.vector_store %arg10[%c0_37, %c440], %38 {strides = array<i32>} : memref<16x2520xbf16, #tpu.memory_space<vmem>>, vector<16x40xbf16>,
    %c192 = arith.constant 192 : index
    %c0_38 = arith.constant 0 : index
    %40 = vector.load %arg9[%c192, %c0_38] : memref<1008x40xbf16, #tpu.memory_space<vmem>>, vector<16x40xbf16>
    %c0_39 = arith.constant 0 : index
    %c480 = arith.constant 480 : index
    %41 = vector.load %arg10[%c0_39, %c480] : memref<16x2520xbf16, #tpu.memory_space<vmem>>, vector<16x40xbf16>
    tpu.vector_store %arg10[%c0_39, %c480], %40 {strides = array<i32>} : memref<16x2520xbf16, #tpu.memory_space<vmem>>, vector<16x40xbf16>,
    %c208 = arith.constant 208 : index
    %c0_40 = arith.constant 0 : index
    %42 = vector.load %arg9[%c208, %c0_40] : memref<1008x40xbf16, #tpu.memory_space<vmem>>, vector<16x40xbf16>
    %c0_41 = arith.constant 0 : index
    %c520 = arith.constant 520 : index
    %43 = vector.load %arg10[%c0_41, %c520] : memref<16x2520xbf16, #tpu.memory_space<vmem>>, vector<16x40xbf16>
    tpu.vector_store %arg10[%c0_41, %c520], %42 {strides = array<i32>} : memref<16x2520xbf16, #tpu.memory_space<vmem>>, vector<16x40xbf16>,
    %c224 = arith.constant 224 : index
    %c0_42 = arith.constant 0 : index
    %44 = vector.load %arg9[%c224, %c0_42] : memref<1008x40xbf16, #tpu.memory_space<vmem>>, vector<16x40xbf16>
    %c0_43 = arith.constant 0 : index
    %c560 = arith.constant 560 : index
    %45 = vector.load %arg10[%c0_43, %c560] : memref<16x2520xbf16, #tpu.memory_space<vmem>>, vector<16x40xbf16>
    tpu.vector_store %arg10[%c0_43, %c560], %44 {strides = array<i32>} : memref<16x2520xbf16, #tpu.memory_space<vmem>>, vector<16x40xbf16>,
    %c240_44 = arith.constant 240 : index
    %c0_45 = arith.constant 0 : index
    %46 = vector.load %arg9[%c240_44, %c0_45] : memref<1008x40xbf16, #tpu.memory_space<vmem>>, vector<16x40xbf16>
    %c0_46 = arith.constant 0 : index
    %c600 = arith.constant 600 : index
    %47 = vector.load %arg10[%c0_46, %c600] : memref<16x2520xbf16, #tpu.memory_space<vmem>>, vector<16x40xbf16>
    tpu.vector_store %arg10[%c0_46, %c600], %46 {strides = array<i32>} : memref<16x2520xbf16, #tpu.memory_space<vmem>>, vector<16x40xbf16>,
    %c256 = arith.constant 256 : index
    %c0_47 = arith.constant 0 : index
    %48 = vector.load %arg9[%c256, %c0_47] : memref<1008x40xbf16, #tpu.memory_space<vmem>>, vector<16x40xbf16>
    %c0_48 = arith.constant 0 : index
    %c640 = arith.constant 640 : index
    %49 = vector.load %arg10[%c0_48, %c640] : memref<16x2520xbf16, #tpu.memory_space<vmem>>, vector<16x40xbf16>
    tpu.vector_store %arg10[%c0_48, %c640], %48 {strides = array<i32>} : memref<16x2520xbf16, #tpu.memory_space<vmem>>, vector<16x40xbf16>,
    %c272 = arith.constant 272 : index
    %c0_49 = arith.constant 0 : index
    %50 = vector.load %arg9[%c272, %c0_49] : memref<1008x40xbf16, #tpu.memory_space<vmem>>, vector<16x40xbf16>
    %c0_50 = arith.constant 0 : index
    %c680 = arith.constant 680 : index
    %51 = vector.load %arg10[%c0_50, %c680] : memref<16x2520xbf16, #tpu.memory_space<vmem>>, vector<16x40xbf16>
    tpu.vector_store %arg10[%c0_50, %c680], %50 {strides = array<i32>} : memref<16x2520xbf16, #tpu.memory_space<vmem>>, vector<16x40xbf16>,
    %c288 = arith.constant 288 : index
    %c0_51 = arith.constant 0 : index
    %52 = vector.load %arg9[%c288, %c0_51] : memref<1008x40xbf16, #tpu.memory_space<vmem>>, vector<16x40xbf16>
    %c0_52 = arith.constant 0 : index
    %c720 = arith.constant 720 : index
    %53 = vector.load %arg10[%c0_52, %c720] : memref<16x2520xbf16, #tpu.memory_space<vmem>>, vector<16x40xbf16>
    tpu.vector_store %arg10[%c0_52, %c720], %52 {strides = array<i32>} : memref<16x2520xbf16, #tpu.memory_space<vmem>>, vector<16x40xbf16>,
    %c304 = arith.constant 304 : index
    %c0_53 = arith.constant 0 : index
    %54 = vector.load %arg9[%c304, %c0_53] : memref<1008x40xbf16, #tpu.memory_space<vmem>>, vector<16x40xbf16>
    %c0_54 = arith.constant 0 : index
    %c760 = arith.constant 760 : index
    %55 = vector.load %arg10[%c0_54, %c760] : memref<16x2520xbf16, #tpu.memory_space<vmem>>, vector<16x40xbf16>
    tpu.vector_store %arg10[%c0_54, %c760], %54 {strides = array<i32>} : memref<16x2520xbf16, #tpu.memory_space<vmem>>, vector<16x40xbf16>,
    %c320_55 = arith.constant 320 : index
    %c0_56 = arith.constant 0 : index
    %56 = vector.load %arg9[%c320_55, %c0_56] : memref<1008x40xbf16, #tpu.memory_space<vmem>>, vector<16x40xbf16>
    %c0_57 = arith.constant 0 : index
    %c800 = arith.constant 800 : index
    %57 = vector.load %arg10[%c0_57, %c800] : memref<16x2520xbf16, #tpu.memory_space<vmem>>, vector<16x40xbf16>
    tpu.vector_store %arg10[%c0_57, %c800], %56 {strides = array<i32>} : memref<16x2520xbf16, #tpu.memory_space<vmem>>, vector<16x40xbf16>,
    %c336 = arith.constant 336 : index
    %c0_58 = arith.constant 0 : index
    %58 = vector.load %arg9[%c336, %c0_58] : memref<1008x40xbf16, #tpu.memory_space<vmem>>, vector<16x40xbf16>
    %c0_59 = arith.constant 0 : index
    %c840 = arith.constant 840 : index
    %59 = vector.load %arg10[%c0_59, %c840] : memref<16x2520xbf16, #tpu.memory_space<vmem>>, vector<16x40xbf16>
    tpu.vector_store %arg10[%c0_59, %c840], %58 {strides = array<i32>} : memref<16x2520xbf16, #tpu.memory_space<vmem>>, vector<16x40xbf16>,
    %c352 = arith.constant 352 : index
    %c0_60 = arith.constant 0 : index
    %60 = vector.load %arg9[%c352, %c0_60] : memref<1008x40xbf16, #tpu.memory_space<vmem>>, vector<16x40xbf16>
    %c0_61 = arith.constant 0 : index
    %c880 = arith.constant 880 : index
    %61 = vector.load %arg10[%c0_61, %c880] : memref<16x2520xbf16, #tpu.memory_space<vmem>>, vector<16x40xbf16>
    tpu.vector_store %arg10[%c0_61, %c880], %60 {strides = array<i32>} : memref<16x2520xbf16, #tpu.memory_space<vmem>>, vector<16x40xbf16>,
    %c368 = arith.constant 368 : index
    %c0_62 = arith.constant 0 : index
    %62 = vector.load %arg9[%c368, %c0_62] : memref<1008x40xbf16, #tpu.memory_space<vmem>>, vector<16x40xbf16>
    %c0_63 = arith.constant 0 : index
    %c920 = arith.constant 920 : index
    %63 = vector.load %arg10[%c0_63, %c920] : memref<16x2520xbf16, #tpu.memory_space<vmem>>, vector<16x40xbf16>
    tpu.vector_store %arg10[%c0_63, %c920], %62 {strides = array<i32>} : memref<16x2520xbf16, #tpu.memory_space<vmem>>, vector<16x40xbf16>,
    %c384 = arith.constant 384 : index
    %c0_64 = arith.constant 0 : index
    %64 = vector.load %arg9[%c384, %c0_64] : memref<1008x40xbf16, #tpu.memory_space<vmem>>, vector<16x40xbf16>
    %c0_65 = arith.constant 0 : index
    %c960 = arith.constant 960 : index
    %65 = vector.load %arg10[%c0_65, %c960] : memref<16x2520xbf16, #tpu.memory_space<vmem>>, vector<16x40xbf16>
    tpu.vector_store %arg10[%c0_65, %c960], %64 {strides = array<i32>} : memref<16x2520xbf16, #tpu.memory_space<vmem>>, vector<16x40xbf16>,
    %c400_66 = arith.constant 400 : index
    %c0_67 = arith.constant 0 : index
    %66 = vector.load %arg9[%c400_66, %c0_67] : memref<1008x40xbf16, #tpu.memory_space<vmem>>, vector<16x40xbf16>
    %c0_68 = arith.constant 0 : index
    %c1000 = arith.constant 1000 : index
    %67 = vector.load %arg10[%c0_68, %c1000] : memref<16x2520xbf16, #tpu.memory_space<vmem>>, vector<16x40xbf16>
    tpu.vector_store %arg10[%c0_68, %c1000], %66 {strides = array<i32>} : memref<16x2520xbf16, #tpu.memory_space<vmem>>, vector<16x40xbf16>,
    %c416 = arith.constant 416 : index
    %c0_69 = arith.constant 0 : index
    %68 = vector.load %arg9[%c416, %c0_69] : memref<1008x40xbf16, #tpu.memory_space<vmem>>, vector<16x40xbf16>
    %c0_70 = arith.constant 0 : index
    %c1040 = arith.constant 1040 : index
    %69 = vector.load %arg10[%c0_70, %c1040] : memref<16x2520xbf16, #tpu.memory_space<vmem>>, vector<16x40xbf16>
    tpu.vector_store %arg10[%c0_70, %c1040], %68 {strides = array<i32>} : memref<16x2520xbf16, #tpu.memory_space<vmem>>, vector<16x40xbf16>,
    %c432 = arith.constant 432 : index
    %c0_71 = arith.constant 0 : index
    %70 = vector.load %arg9[%c432, %c0_71] : memref<1008x40xbf16, #tpu.memory_space<vmem>>, vector<16x40xbf16>
    %c0_72 = arith.constant 0 : index
    %c1080 = arith.constant 1080 : index
    %71 = vector.load %arg10[%c0_72, %c1080] : memref<16x2520xbf16, #tpu.memory_space<vmem>>, vector<16x40xbf16>
    tpu.vector_store %arg10[%c0_72, %c1080], %70 {strides = array<i32>} : memref<16x2520xbf16, #tpu.memory_space<vmem>>, vector<16x40xbf16>,
    %c448 = arith.constant 448 : index
    %c0_73 = arith.constant 0 : index
    %72 = vector.load %arg9[%c448, %c0_73] : memref<1008x40xbf16, #tpu.memory_space<vmem>>, vector<16x40xbf16>
    %c0_74 = arith.constant 0 : index
    %c1120 = arith.constant 1120 : index
    %73 = vector.load %arg10[%c0_74, %c1120] : memref<16x2520xbf16, #tpu.memory_space<vmem>>, vector<16x40xbf16>
    tpu.vector_store %arg10[%c0_74, %c1120], %72 {strides = array<i32>} : memref<16x2520xbf16, #tpu.memory_space<vmem>>, vector<16x40xbf16>,
    %c464 = arith.constant 464 : index
    %c0_75 = arith.constant 0 : index
    %74 = vector.load %arg9[%c464, %c0_75] : memref<1008x40xbf16, #tpu.memory_space<vmem>>, vector<16x40xbf16>
    %c0_76 = arith.constant 0 : index
    %c1160 = arith.constant 1160 : index
    %75 = vector.load %arg10[%c0_76, %c1160] : memref<16x2520xbf16, #tpu.memory_space<vmem>>, vector<16x40xbf16>
    tpu.vector_store %arg10[%c0_76, %c1160], %74 {strides = array<i32>} : memref<16x2520xbf16, #tpu.memory_space<vmem>>, vector<16x40xbf16>,
    %c480_77 = arith.constant 480 : index
    %c0_78 = arith.constant 0 : index
    %76 = vector.load %arg9[%c480_77, %c0_78] : memref<1008x40xbf16, #tpu.memory_space<vmem>>, vector<16x40xbf16>
    %c0_79 = arith.constant 0 : index
    %c1200 = arith.constant 1200 : index
    %77 = vector.load %arg10[%c0_79, %c1200] : memref<16x2520xbf16, #tpu.memory_space<vmem>>, vector<16x40xbf16>
    tpu.vector_store %arg10[%c0_79, %c1200], %76 {strides = array<i32>} : memref<16x2520xbf16, #tpu.memory_space<vmem>>, vector<16x40xbf16>,
    %c496 = arith.constant 496 : index
    %c0_80 = arith.constant 0 : index
    %78 = vector.load %arg9[%c496, %c0_80] : memref<1008x40xbf16, #tpu.memory_space<vmem>>, vector<16x40xbf16>
    %c0_81 = arith.constant 0 : index
    %c1240 = arith.constant 1240 : index
    %79 = vector.load %arg10[%c0_81, %c1240] : memref<16x2520xbf16, #tpu.memory_space<vmem>>, vector<16x40xbf16>
    tpu.vector_store %arg10[%c0_81, %c1240], %78 {strides = array<i32>} : memref<16x2520xbf16, #tpu.memory_space<vmem>>, vector<16x40xbf16>,
    %c512 = arith.constant 512 : index
    %c0_82 = arith.constant 0 : index
    %80 = vector.load %arg9[%c512, %c0_82] : memref<1008x40xbf16, #tpu.memory_space<vmem>>, vector<16x40xbf16>
    %c0_83 = arith.constant 0 : index
    %c1280 = arith.constant 1280 : index
    %81 = vector.load %arg10[%c0_83, %c1280] : memref<16x2520xbf16, #tpu.memory_space<vmem>>, vector<16x40xbf16>
    tpu.vector_store %arg10[%c0_83, %c1280], %80 {strides = array<i32>} : memref<16x2520xbf16, #tpu.memory_space<vmem>>, vector<16x40xbf16>,
    %c528 = arith.constant 528 : index
    %c0_84 = arith.constant 0 : index
    %82 = vector.load %arg9[%c528, %c0_84] : memref<1008x40xbf16, #tpu.memory_space<vmem>>, vector<16x40xbf16>
    %c0_85 = arith.constant 0 : index
    %c1320 = arith.constant 1320 : index
    %83 = vector.load %arg10[%c0_85, %c1320] : memref<16x2520xbf16, #tpu.memory_space<vmem>>, vector<16x40xbf16>
    tpu.vector_store %arg10[%c0_85, %c1320], %82 {strides = array<i32>} : memref<16x2520xbf16, #tpu.memory_space<vmem>>, vector<16x40xbf16>,
    %c544 = arith.constant 544 : index
    %c0_86 = arith.constant 0 : index
    %84 = vector.load %arg9[%c544, %c0_86] : memref<1008x40xbf16, #tpu.memory_space<vmem>>, vector<16x40xbf16>
    %c0_87 = arith.constant 0 : index
    %c1360 = arith.constant 1360 : index
    %85 = vector.load %arg10[%c0_87, %c1360] : memref<16x2520xbf16, #tpu.memory_space<vmem>>, vector<16x40xbf16>
    tpu.vector_store %arg10[%c0_87, %c1360], %84 {strides = array<i32>} : memref<16x2520xbf16, #tpu.memory_space<vmem>>, vector<16x40xbf16>,
    %c560_88 = arith.constant 560 : index
    %c0_89 = arith.constant 0 : index
    %86 = vector.load %arg9[%c560_88, %c0_89] : memref<1008x40xbf16, #tpu.memory_space<vmem>>, vector<16x40xbf16>
    %c0_90 = arith.constant 0 : index
    %c1400 = arith.constant 1400 : index
    %87 = vector.load %arg10[%c0_90, %c1400] : memref<16x2520xbf16, #tpu.memory_space<vmem>>, vector<16x40xbf16>
    tpu.vector_store %arg10[%c0_90, %c1400], %86 {strides = array<i32>} : memref<16x2520xbf16, #tpu.memory_space<vmem>>, vector<16x40xbf16>,
    %c576 = arith.constant 576 : index
    %c0_91 = arith.constant 0 : index
    %88 = vector.load %arg9[%c576, %c0_91] : memref<1008x40xbf16, #tpu.memory_space<vmem>>, vector<16x40xbf16>
    %c0_92 = arith.constant 0 : index
    %c1440 = arith.constant 1440 : index
    %89 = vector.load %arg10[%c0_92, %c1440] : memref<16x2520xbf16, #tpu.memory_space<vmem>>, vector<16x40xbf16>
    tpu.vector_store %arg10[%c0_92, %c1440], %88 {strides = array<i32>} : memref<16x2520xbf16, #tpu.memory_space<vmem>>, vector<16x40xbf16>,
    %c592 = arith.constant 592 : index
    %c0_93 = arith.constant 0 : index
    %90 = vector.load %arg9[%c592, %c0_93] : memref<1008x40xbf16, #tpu.memory_space<vmem>>, vector<16x40xbf16>
    %c0_94 = arith.constant 0 : index
    %c1480 = arith.constant 1480 : index
    %91 = vector.load %arg10[%c0_94, %c1480] : memref<16x2520xbf16, #tpu.memory_space<vmem>>, vector<16x40xbf16>
    tpu.vector_store %arg10[%c0_94, %c1480], %90 {strides = array<i32>} : memref<16x2520xbf16, #tpu.memory_space<vmem>>, vector<16x40xbf16>,
    %c608 = arith.constant 608 : index
    %c0_95 = arith.constant 0 : index
    %92 = vector.load %arg9[%c608, %c0_95] : memref<1008x40xbf16, #tpu.memory_space<vmem>>, vector<16x40xbf16>
    %c0_96 = arith.constant 0 : index
    %c1520 = arith.constant 1520 : index
    %93 = vector.load %arg10[%c0_96, %c1520] : memref<16x2520xbf16, #tpu.memory_space<vmem>>, vector<16x40xbf16>
    tpu.vector_store %arg10[%c0_96, %c1520], %92 {strides = array<i32>} : memref<16x2520xbf16, #tpu.memory_space<vmem>>, vector<16x40xbf16>,
    %c624 = arith.constant 624 : index
    %c0_97 = arith.constant 0 : index
    %94 = vector.load %arg9[%c624, %c0_97] : memref<1008x40xbf16, #tpu.memory_space<vmem>>, vector<16x40xbf16>
    %c0_98 = arith.constant 0 : index
    %c1560 = arith.constant 1560 : index
    %95 = vector.load %arg10[%c0_98, %c1560] : memref<16x2520xbf16, #tpu.memory_space<vmem>>, vector<16x40xbf16>
    tpu.vector_store %arg10[%c0_98, %c1560], %94 {strides = array<i32>} : memref<16x2520xbf16, #tpu.memory_space<vmem>>, vector<16x40xbf16>,
    %c640_99 = arith.constant 640 : index
    %c0_100 = arith.constant 0 : index
    %96 = vector.load %arg9[%c640_99, %c0_100] : memref<1008x40xbf16, #tpu.memory_space<vmem>>, vector<16x40xbf16>
    %c0_101 = arith.constant 0 : index
    %c1600 = arith.constant 1600 : index
    %97 = vector.load %arg10[%c0_101, %c1600] : memref<16x2520xbf16, #tpu.memory_space<vmem>>, vector<16x40xbf16>
    tpu.vector_store %arg10[%c0_101, %c1600], %96 {strides = array<i32>} : memref<16x2520xbf16, #tpu.memory_space<vmem>>, vector<16x40xbf16>,
    %c656 = arith.constant 656 : index
    %c0_102 = arith.constant 0 : index
    %98 = vector.load %arg9[%c656, %c0_102] : memref<1008x40xbf16, #tpu.memory_space<vmem>>, vector<16x40xbf16>
    %c0_103 = arith.constant 0 : index
    %c1640 = arith.constant 1640 : index
    %99 = vector.load %arg10[%c0_103, %c1640] : memref<16x2520xbf16, #tpu.memory_space<vmem>>, vector<16x40xbf16>
    tpu.vector_store %arg10[%c0_103, %c1640], %98 {strides = array<i32>} : memref<16x2520xbf16, #tpu.memory_space<vmem>>, vector<16x40xbf16>,
    %c672 = arith.constant 672 : index
    %c0_104 = arith.constant 0 : index
    %100 = vector.load %arg9[%c672, %c0_104] : memref<1008x40xbf16, #tpu.memory_space<vmem>>, vector<16x40xbf16>
    %c0_105 = arith.constant 0 : index
    %c1680 = arith.constant 1680 : index
    %101 = vector.load %arg10[%c0_105, %c1680] : memref<16x2520xbf16, #tpu.memory_space<vmem>>, vector<16x40xbf16>
    tpu.vector_store %arg10[%c0_105, %c1680], %100 {strides = array<i32>} : memref<16x2520xbf16, #tpu.memory_space<vmem>>, vector<16x40xbf16>,
    %c688 = arith.constant 688 : index
    %c0_106 = arith.constant 0 : index
    %102 = vector.load %arg9[%c688, %c0_106] : memref<1008x40xbf16, #tpu.memory_space<vmem>>, vector<16x40xbf16>
    %c0_107 = arith.constant 0 : index
    %c1720 = arith.constant 1720 : index
    %103 = vector.load %arg10[%c0_107, %c1720] : memref<16x2520xbf16, #tpu.memory_space<vmem>>, vector<16x40xbf16>
    tpu.vector_store %arg10[%c0_107, %c1720], %102 {strides = array<i32>} : memref<16x2520xbf16, #tpu.memory_space<vmem>>, vector<16x40xbf16>,
    %c704 = arith.constant 704 : index
    %c0_108 = arith.constant 0 : index
    %104 = vector.load %arg9[%c704, %c0_108] : memref<1008x40xbf16, #tpu.memory_space<vmem>>, vector<16x40xbf16>
    %c0_109 = arith.constant 0 : index
    %c1760 = arith.constant 1760 : index
    %105 = vector.load %arg10[%c0_109, %c1760] : memref<16x2520xbf16, #tpu.memory_space<vmem>>, vector<16x40xbf16>
    tpu.vector_store %arg10[%c0_109, %c1760], %104 {strides = array<i32>} : memref<16x2520xbf16, #tpu.memory_space<vmem>>, vector<16x40xbf16>,
    %c720_110 = arith.constant 720 : index
    %c0_111 = arith.constant 0 : index
    %106 = vector.load %arg9[%c720_110, %c0_111] : memref<1008x40xbf16, #tpu.memory_space<vmem>>, vector<16x40xbf16>
    %c0_112 = arith.constant 0 : index
    %c1800 = arith.constant 1800 : index
    %107 = vector.load %arg10[%c0_112, %c1800] : memref<16x2520xbf16, #tpu.memory_space<vmem>>, vector<16x40xbf16>
    tpu.vector_store %arg10[%c0_112, %c1800], %106 {strides = array<i32>} : memref<16x2520xbf16, #tpu.memory_space<vmem>>, vector<16x40xbf16>,
    %c736 = arith.constant 736 : index
    %c0_113 = arith.constant 0 : index
    %108 = vector.load %arg9[%c736, %c0_113] : memref<1008x40xbf16, #tpu.memory_space<vmem>>, vector<16x40xbf16>
    %c0_114 = arith.constant 0 : index
    %c1840 = arith.constant 1840 : index
    %109 = vector.load %arg10[%c0_114, %c1840] : memref<16x2520xbf16, #tpu.memory_space<vmem>>, vector<16x40xbf16>
    tpu.vector_store %arg10[%c0_114, %c1840], %108 {strides = array<i32>} : memref<16x2520xbf16, #tpu.memory_space<vmem>>, vector<16x40xbf16>,
    %c752 = arith.constant 752 : index
    %c0_115 = arith.constant 0 : index
    %110 = vector.load %arg9[%c752, %c0_115] : memref<1008x40xbf16, #tpu.memory_space<vmem>>, vector<16x40xbf16>
    %c0_116 = arith.constant 0 : index
    %c1880 = arith.constant 1880 : index
    %111 = vector.load %arg10[%c0_116, %c1880] : memref<16x2520xbf16, #tpu.memory_space<vmem>>, vector<16x40xbf16>
    tpu.vector_store %arg10[%c0_116, %c1880], %110 {strides = array<i32>} : memref<16x2520xbf16, #tpu.memory_space<vmem>>, vector<16x40xbf16>,
    %c768 = arith.constant 768 : index
    %c0_117 = arith.constant 0 : index
    %112 = vector.load %arg9[%c768, %c0_117] : memref<1008x40xbf16, #tpu.memory_space<vmem>>, vector<16x40xbf16>
    %c0_118 = arith.constant 0 : index
    %c1920 = arith.constant 1920 : index
    %113 = vector.load %arg10[%c0_118, %c1920] : memref<16x2520xbf16, #tpu.memory_space<vmem>>, vector<16x40xbf16>
    tpu.vector_store %arg10[%c0_118, %c1920], %112 {strides = array<i32>} : memref<16x2520xbf16, #tpu.memory_space<vmem>>, vector<16x40xbf16>,
    %c784 = arith.constant 784 : index
    %c0_119 = arith.constant 0 : index
    %114 = vector.load %arg9[%c784, %c0_119] : memref<1008x40xbf16, #tpu.memory_space<vmem>>, vector<16x40xbf16>
    %c0_120 = arith.constant 0 : index
    %c1960 = arith.constant 1960 : index
    %115 = vector.load %arg10[%c0_120, %c1960] : memref<16x2520xbf16, #tpu.memory_space<vmem>>, vector<16x40xbf16>
    tpu.vector_store %arg10[%c0_120, %c1960], %114 {strides = array<i32>} : memref<16x2520xbf16, #tpu.memory_space<vmem>>, vector<16x40xbf16>,
    %c800_121 = arith.constant 800 : index
    %c0_122 = arith.constant 0 : index
    %116 = vector.load %arg9[%c800_121, %c0_122] : memref<1008x40xbf16, #tpu.memory_space<vmem>>, vector<16x40xbf16>
    %c0_123 = arith.constant 0 : index
    %c2000 = arith.constant 2000 : index
    %117 = vector.load %arg10[%c0_123, %c2000] : memref<16x2520xbf16, #tpu.memory_space<vmem>>, vector<16x40xbf16>
    tpu.vector_store %arg10[%c0_123, %c2000], %116 {strides = array<i32>} : memref<16x2520xbf16, #tpu.memory_space<vmem>>, vector<16x40xbf16>,
    %c816 = arith.constant 816 : index
    %c0_124 = arith.constant 0 : index
    %118 = vector.load %arg9[%c816, %c0_124] : memref<1008x40xbf16, #tpu.memory_space<vmem>>, vector<16x40xbf16>
    %c0_125 = arith.constant 0 : index
    %c2040 = arith.constant 2040 : index
    %119 = vector.load %arg10[%c0_125, %c2040] : memref<16x2520xbf16, #tpu.memory_space<vmem>>, vector<16x40xbf16>
    tpu.vector_store %arg10[%c0_125, %c2040], %118 {strides = array<i32>} : memref<16x2520xbf16, #tpu.memory_space<vmem>>, vector<16x40xbf16>,
    %c832 = arith.constant 832 : index
    %c0_126 = arith.constant 0 : index
    %120 = vector.load %arg9[%c832, %c0_126] : memref<1008x40xbf16, #tpu.memory_space<vmem>>, vector<16x40xbf16>
    %c0_127 = arith.constant 0 : index
    %c2080 = arith.constant 2080 : index
    %121 = vector.load %arg10[%c0_127, %c2080] : memref<16x2520xbf16, #tpu.memory_space<vmem>>, vector<16x40xbf16>
    tpu.vector_store %arg10[%c0_127, %c2080], %120 {strides = array<i32>} : memref<16x2520xbf16, #tpu.memory_space<vmem>>, vector<16x40xbf16>,
    %c848 = arith.constant 848 : index
    %c0_128 = arith.constant 0 : index
    %122 = vector.load %arg9[%c848, %c0_128] : memref<1008x40xbf16, #tpu.memory_space<vmem>>, vector<16x40xbf16>
    %c0_129 = arith.constant 0 : index
    %c2120 = arith.constant 2120 : index
    %123 = vector.load %arg10[%c0_129, %c2120] : memref<16x2520xbf16, #tpu.memory_space<vmem>>, vector<16x40xbf16>
    tpu.vector_store %arg10[%c0_129, %c2120], %122 {strides = array<i32>} : memref<16x2520xbf16, #tpu.memory_space<vmem>>, vector<16x40xbf16>,
    %c864 = arith.constant 864 : index
    %c0_130 = arith.constant 0 : index
    %124 = vector.load %arg9[%c864, %c0_130] : memref<1008x40xbf16, #tpu.memory_space<vmem>>, vector<16x40xbf16>
    %c0_131 = arith.constant 0 : index
    %c2160 = arith.constant 2160 : index
    %125 = vector.load %arg10[%c0_131, %c2160] : memref<16x2520xbf16, #tpu.memory_space<vmem>>, vector<16x40xbf16>
    tpu.vector_store %arg10[%c0_131, %c2160], %124 {strides = array<i32>} : memref<16x2520xbf16, #tpu.memory_space<vmem>>, vector<16x40xbf16>,
    %c880_132 = arith.constant 880 : index
    %c0_133 = arith.constant 0 : index
    %126 = vector.load %arg9[%c880_132, %c0_133] : memref<1008x40xbf16, #tpu.memory_space<vmem>>, vector<16x40xbf16>
    %c0_134 = arith.constant 0 : index
    %c2200 = arith.constant 2200 : index
    %127 = vector.load %arg10[%c0_134, %c2200] : memref<16x2520xbf16, #tpu.memory_space<vmem>>, vector<16x40xbf16>
    tpu.vector_store %arg10[%c0_134, %c2200], %126 {strides = array<i32>} : memref<16x2520xbf16, #tpu.memory_space<vmem>>, vector<16x40xbf16>,
    %c896 = arith.constant 896 : index
    %c0_135 = arith.constant 0 : index
    %128 = vector.load %arg9[%c896, %c0_135] : memref<1008x40xbf16, #tpu.memory_space<vmem>>, vector<16x40xbf16>
    %c0_136 = arith.constant 0 : index
    %c2240 = arith.constant 2240 : index
    %129 = vector.load %arg10[%c0_136, %c2240] : memref<16x2520xbf16, #tpu.memory_space<vmem>>, vector<16x40xbf16>
    tpu.vector_store %arg10[%c0_136, %c2240], %128 {strides = array<i32>} : memref<16x2520xbf16, #tpu.memory_space<vmem>>, vector<16x40xbf16>,
    %c912 = arith.constant 912 : index
    %c0_137 = arith.constant 0 : index
    %130 = vector.load %arg9[%c912, %c0_137] : memref<1008x40xbf16, #tpu.memory_space<vmem>>, vector<16x40xbf16>
    %c0_138 = arith.constant 0 : index
    %c2280 = arith.constant 2280 : index
    %131 = vector.load %arg10[%c0_138, %c2280] : memref<16x2520xbf16, #tpu.memory_space<vmem>>, vector<16x40xbf16>
    tpu.vector_store %arg10[%c0_138, %c2280], %130 {strides = array<i32>} : memref<16x2520xbf16, #tpu.memory_space<vmem>>, vector<16x40xbf16>,
    %c928 = arith.constant 928 : index
    %c0_139 = arith.constant 0 : index
    %132 = vector.load %arg9[%c928, %c0_139] : memref<1008x40xbf16, #tpu.memory_space<vmem>>, vector<16x40xbf16>
    %c0_140 = arith.constant 0 : index
    %c2320 = arith.constant 2320 : index
    %133 = vector.load %arg10[%c0_140, %c2320] : memref<16x2520xbf16, #tpu.memory_space<vmem>>, vector<16x40xbf16>
    tpu.vector_store %arg10[%c0_140, %c2320], %132 {strides = array<i32>} : memref<16x2520xbf16, #tpu.memory_space<vmem>>, vector<16x40xbf16>,
    %c944 = arith.constant 944 : index
    %c0_141 = arith.constant 0 : index
    %134 = vector.load %arg9[%c944, %c0_141] : memref<1008x40xbf16, #tpu.memory_space<vmem>>, vector<16x40xbf16>
    %c0_142 = arith.constant 0 : index
    %c2360 = arith.constant 2360 : index
    %135 = vector.load %arg10[%c0_142, %c2360] : memref<16x2520xbf16, #tpu.memory_space<vmem>>, vector<16x40xbf16>
    tpu.vector_store %arg10[%c0_142, %c2360], %134 {strides = array<i32>} : memref<16x2520xbf16, #tpu.memory_space<vmem>>, vector<16x40xbf16>,
    %c960_143 = arith.constant 960 : index
    %c0_144 = arith.constant 0 : index
    %136 = vector.load %arg9[%c960_143, %c0_144] : memref<1008x40xbf16, #tpu.memory_space<vmem>>, vector<16x40xbf16>
    %c0_145 = arith.constant 0 : index
    %c2400 = arith.constant 2400 : index
    %137 = vector.load %arg10[%c0_145, %c2400] : memref<16x2520xbf16, #tpu.memory_space<vmem>>, vector<16x40xbf16>
    tpu.vector_store %arg10[%c0_145, %c2400], %136 {strides = array<i32>} : memref<16x2520xbf16, #tpu.memory_space<vmem>>, vector<16x40xbf16>,
    %c976 = arith.constant 976 : index
    %c0_146 = arith.constant 0 : index
    %138 = vector.load %arg9[%c976, %c0_146] : memref<1008x40xbf16, #tpu.memory_space<vmem>>, vector<16x40xbf16>
    %c0_147 = arith.constant 0 : index
    %c2440 = arith.constant 2440 : index
    %139 = vector.load %arg10[%c0_147, %c2440] : memref<16x2520xbf16, #tpu.memory_space<vmem>>, vector<16x40xbf16>
    tpu.vector_store %arg10[%c0_147, %c2440], %138 {strides = array<i32>} : memref<16x2520xbf16, #tpu.memory_space<vmem>>, vector<16x40xbf16>,
    %c992 = arith.constant 992 : index
    %c0_148 = arith.constant 0 : index
    %140 = vector.load %arg9[%c992, %c0_148] : memref<1008x40xbf16, #tpu.memory_space<vmem>>, vector<16x40xbf16>
    %c0_149 = arith.constant 0 : index
    %c2480 = arith.constant 2480 : index
    %141 = vector.load %arg10[%c0_149, %c2480] : memref<16x2520xbf16, #tpu.memory_space<vmem>>, vector<16x40xbf16>
    tpu.vector_store %arg10[%c0_149, %c2480], %140 {strides = array<i32>} : memref<16x2520xbf16, #tpu.memory_space<vmem>>, vector<16x40xbf16>,
    %c0_150 = arith.constant 0 : index
    %c0_151 = arith.constant 0 : index
    %142 = vector.load %arg10[%c0_150, %c0_151] : memref<16x2520xbf16, #tpu.memory_space<vmem>>, vector<16x2520xbf16>
    %c0_152 = arith.constant 0 : index
    %c0_153 = arith.constant 0 : index
    %143 = vector.load %arg4[%c0_152, %c0_153] : memref<2520x40xbf16, #tpu.memory_space<vmem>>, vector<2520x40xbf16>
    %cst_154 = arith.constant dense<0.000000e+00> : vector<16x40xf32>
    %144 = tpu.matmul %142, %143, %cst_154 {dimension_numbers = #tpu.dot_dimension_numbers<[1], [0], [0], [1], [0, 0, 1, 1], [], []>} : vector<16x2520xbf16>, vector<2520x40xbf16>, vector<16x40xf32> -> vector<16x40xf32>
    %c0_155 = arith.constant 0 : index
    %c0_156 = arith.constant 0 : index
    %145 = vector.load %arg5[%c0_155, %c0_156] : memref<1x40xf32, #tpu.memory_space<vmem>>, vector<1x40xf32>
    %146 = vector.broadcast %145 : vector<1x40xf32> to vector<16x40xf32>
    %147 = arith.addf %144, %146 : vector<16x40xf32>
    %cst_157 = arith.constant 0.000000e+00 : f32
    %148 = vector.broadcast %cst_157 : f32 to vector<16x40xf32>
    %149 = arith.cmpf ogt, %147, %148 : vector<16x40xf32>
    %cst_158 = arith.constant 0.000000e+00 : f32
    %150 = vector.broadcast %cst_158 : f32 to vector<16x40xf32>
    %151 = arith.minimumf %147, %150 : vector<16x40xf32>
    %152 = math.exp %151 : vector<16x40xf32>
    %cst_159 = arith.constant 1.000000e+00 : f32
    %153 = vector.broadcast %cst_159 : f32 to vector<16x40xf32>
    %154 = arith.subf %152, %153 : vector<16x40xf32>
    %155 = arith.select %149, %147, %154 : vector<16x40xi1>, vector<16x40xf32>
    %c0_160 = arith.constant 0 : index
    %c0_161 = arith.constant 0 : index
    %156 = vector.load %arg6[%c0_160, %c0_161] : memref<40x128xf32, #tpu.memory_space<vmem>>, vector<40x128xf32>
    %cst_162 = arith.constant dense<0.000000e+00> : vector<16x128xf32>
    %157 = tpu.matmul %155, %156, %cst_162 {dimension_numbers = #tpu.dot_dimension_numbers<[1], [0], [0], [1], [0, 0, 1, 1], [], []>} : vector<16x40xf32>, vector<40x128xf32>, vector<16x128xf32> -> vector<16x128xf32>
    %c0_163 = arith.constant 0 : index
    %c0_164 = arith.constant 0 : index
    %158 = vector.load %arg7[%c0_163, %c0_164] : memref<1x128xf32, #tpu.memory_space<vmem>>, vector<1x128xf32>
    %159 = vector.broadcast %158 : vector<1x128xf32> to vector<16x128xf32>
    %160 = arith.addf %157, %159 : vector<16x128xf32>
    %c0_165 = arith.constant 0 : index
    %c0_166 = arith.constant 0 : index
    %161 = vector.load %arg8[%c0_165, %c0_166] : memref<16x128xf32, #tpu.memory_space<vmem>>, vector<16x128xf32>
    tpu.vector_store %arg8[%c0_165, %c0_166], %160 {strides = array<i32>} : memref<16x128xf32, #tpu.memory_space<vmem>>, vector<16x128xf32>,
    return
  }
  func.func @transform_0(%arg0: i32) -> (i32, i32) {
    %c0_i32 = arith.constant 0 : i32
    %c0_i32_0 = arith.constant 0 : i32
    return %arg0, %c0_i32 : i32, i32
  }
  func.func @transform_1(%arg0: i32) -> (i32, i32) {
    %c0_i32 = arith.constant 0 : i32
    %c0_i32_0 = arith.constant 0 : i32
    %c0_i32_1 = arith.constant 0 : i32
    return %c0_i32, %c0_i32_0 : i32, i32
  }
  func.func @transform_2(%arg0: i32) -> (i32, i32) {
    %c0_i32 = arith.constant 0 : i32
    %c0_i32_0 = arith.constant 0 : i32
    %c0_i32_1 = arith.constant 0 : i32
    return %c0_i32, %c0_i32_0 : i32, i32
  }
  func.func @transform_3(%arg0: i32) -> (i32, i32) {
    %c0_i32 = arith.constant 0 : i32
    %c0_i32_0 = arith.constant 0 : i32
    %c0_i32_1 = arith.constant 0 : i32
    return %c0_i32, %c0_i32_0 : i32, i32
  }
  func.func @transform_4(%arg0: i32) -> (i32, i32) {
    %c0_i32 = arith.constant 0 : i32
    %c0_i32_0 = arith.constant 0 : i32
    %c0_i32_1 = arith.constant 0 : i32
    return %c0_i32, %c0_i32_0 : i32, i32
  }
  func.func @transform_5(%arg0: i32) -> (i32, i32) {
    %c0_i32 = arith.constant 0 : i32
    %c0_i32_0 = arith.constant 0 : i32
    %c0_i32_1 = arith.constant 0 : i32
    return %c0_i32, %c0_i32_0 : i32, i32
  }
  func.func @transform_6(%arg0: i32) -> (i32, i32) {
    %c0_i32 = arith.constant 0 : i32
    %c0_i32_0 = arith.constant 0 : i32
    %c0_i32_1 = arith.constant 0 : i32
    return %c0_i32, %c0_i32_0 : i32, i32
  }
  func.func @transform_7(%arg0: i32) -> (i32, i32) {
    %c0_i32 = arith.constant 0 : i32
    %c0_i32_0 = arith.constant 0 : i32
    return %arg0, %c0_i32 : i32, i32
  }
}

</mosaic_0001>

<llo_original>
// kernel: tpu_custom_call.1
$region0: #{tpu_custom_call.1}
  #allocation0 [shape = 'u32[]', space=smem, size = 0x4, offset = 0x4, fixed_abs, tag = 'smem constant byte address 0x4 - core index']
  #allocation1 [shape = 'u32[72,128]{1,0:T(1,128)}', space=vmem, size = 0x9000, scoped, tag = 'internal scratch']
  #allocation2 [shape = 'bf16[1008,40]{1,0:T(8,128)(2,1)}', space=vmem, size = 0x3f000, scoped, tag = 'scratch operand']
  #allocation3 [shape = 'bf16[16,2520]{1,0:T(8,128)(2,1)}', space=vmem, size = 0x14000, scoped, tag = 'scratch operand']
  %s0 = inlined_call_operand.vmem [shape: bf16[2016,75], index: 0, kind: input, shape index: {}]
  %s1 = inlined_call_operand.vmem [shape: bf16[75,40], index: 1, kind: input, shape index: {}]
  %s2 = inlined_call_operand.vmem [shape: f32[1,40], index: 2, kind: input, shape index: {}]
  %s3 = inlined_call_operand.vmem [shape: bf16[2520,40], index: 3, kind: input, shape index: {}]
  %s4 = inlined_call_operand.vmem [shape: f32[1,40], index: 4, kind: input, shape index: {}]
  %s5 = inlined_call_operand.vmem [shape: f32[40,128], index: 5, kind: input, shape index: {}]
  %s6 = inlined_call_operand.vmem [shape: f32[1,128], index: 6, kind: input, shape index: {}]
  %s7 = inlined_call_operand.hbm [shape: f32[32,128], index: 7, kind: output, shape index: {}]
  %s8 = sld [smem:[#allocation0]]
  $region61: #{tpu_custom_call.1} parent=0
    _
  %s10 = ssub.s32 1, %s8
  %s11 = scalar_select 0, %s10, %s8
  $region1: #{tpu_custom_call.1} parent=0
    #allocation4 [shape = 'u8[16384]{0}', space=vmem, size = 0x4000, scoped, tag = 'output window, operand 0']
    #allocation5 [shape = 's32[2]{0}', space=sflag, size = 0x8, scoped, tag = 'scoped memory for tpu_custom_call.1']
    %12 = vsyncpa [#allocation5], 0
    %s13 = scalar_lea.sflag [#allocation5], 1
    %14 = vsyncpa %s13, 0
    loop: start=0, step=1, limit=4
    $region2: #{tpu_custom_call.1} parent=1 // loop_pre_header
      _
    $region3: #{tpu_custom_call.1} parent=1 // loop_header
      %s16 = sphi 0, %s20
      %p17 = scmp.ge.s32.totalorder %s16, 4
      %s26 = sphi 0, %s28
      %s29 = sphi 0, %s26
      %s30 = sphi 0, %s29
      %s46 = sphi 0, %s30
      %s50 = sphi 0, %s50
      %s52 = sphi 0, %s50
      %s53 = sphi 0, %s52
      %s67 = sphi 0, %s53
      %s71 = sphi 0, %s71
      %s73 = sphi 0, %s71
      %s74 = sphi 0, %s73
      %s88 = sphi 0, %s74
      %s92 = sphi 0, %s92
      %s94 = sphi 0, %s92
      %s95 = sphi 0, %s94
      %s109 = sphi 0, %s95
      %s113 = sphi 0, %s113
      %s115 = sphi 0, %s113
      %s116 = sphi 0, %s115
      %s130 = sphi 0, %s116
      %s134 = sphi 0, %s134
      %s136 = sphi 0, %s134
      %s137 = sphi 0, %s136
      %s151 = sphi 0, %s137
      %s155 = sphi 0, %s155
      %s157 = sphi 0, %s155
      %s158 = sphi 0, %s157
      %s172 = sphi 0, %s158
      %s178 = sphi 0, %s180
      %s181 = sphi 0, %s178
      %s182 = sphi 0, %s181
      %s198 = sphi 0, %s182
    $region4: #{tpu_custom_call.1} parent=1 // loop_header_branch
      %19 = sbr.rel (%p17) target = $region8
    $region5: #{tpu_custom_call.1} parent=1 // loop_body
      %s21 = ssub.s32 %s16, 1
      %s22 = ssub.s32 %s16, 2
      %s23 = sadd.s32 %s16, 1
      %s24 = ssub.s32 %s16, %s23
      %p25 = scmp.eq.s32.totalorder %s24, 0
      %s27 = sadd.s32 %s26, 1
      %s28 = scalar_select %p25, %s26, %s27
      %p31 = pneg %p25
      %p32 = scmp.eq.s32.totalorder %s16, 1
      %p33 = por %p31, %p32
      %p34 = scmp.ne.s32.totalorder %s26, %s29
      %p35 = scmp.eq.s32.totalorder %s16, 0
      %p36 = por %p34, %p35
      %p37 = scmp.ne.s32.totalorder %s26, %s29
      %p38 = scmp.eq.s32.totalorder %s21, 1
      %p39 = por %p37, %p38
      %p40 = scmp.ne.s32.totalorder %s29, %s30
      %p41 = scmp.eq.s32.totalorder %s21, 0
      %p42 = por %p40, %p41
      %p43 = scmp.ne.s32.totalorder %s29, %s30
      %p44 = scmp.eq.s32.totalorder %s22, 1
      %p45 = por %p43, %p44
      %p47 = scmp.ne.s32.totalorder %s30, %s46
      %p48 = scmp.eq.s32.totalorder %s22, 0
      %p49 = por %p47, %p48
      %s51 = sadd.s32 %s50, 1
      %p54 = scmp.eq.s32.totalorder %s16, 1
      %p55 = scmp.ne.s32.totalorder %s50, %s52
      %p56 = scmp.eq.s32.totalorder %s16, 0
      %p57 = por %p55, %p56
      %p58 = scmp.ne.s32.totalorder %s50, %s52
      %p59 = scmp.eq.s32.totalorder %s21, 1
      %p60 = por %p58, %p59
      %p61 = scmp.ne.s32.totalorder %s52, %s53
      %p62 = scmp.eq.s32.totalorder %s21, 0
      %p63 = por %p61, %p62
      %p64 = scmp.ne.s32.totalorder %s52, %s53
      %p65 = scmp.eq.s32.totalorder %s22, 1
      %p66 = por %p64, %p65
      %p68 = scmp.ne.s32.totalorder %s53, %s67
      %p69 = scmp.eq.s32.totalorder %s22, 0
      %p70 = por %p68, %p69
      %s72 = sadd.s32 %s71, 1
      %p75 = scmp.eq.s32.totalorder %s16, 1
      %p76 = scmp.ne.s32.totalorder %s71, %s73
      %p77 = scmp.eq.s32.totalorder %s16, 0
      %p78 = por %p76, %p77
      %p79 = scmp.ne.s32.totalorder %s71, %s73
      %p80 = scmp.eq.s32.totalorder %s21, 1
      %p81 = por %p79, %p80
      %p82 = scmp.ne.s32.totalorder %s73, %s74
      %p83 = scmp.eq.s32.totalorder %s21, 0
      %p84 = por %p82, %p83
      %p85 = scmp.ne.s32.totalorder %s73, %s74
      %p86 = scmp.eq.s32.totalorder %s22, 1
      %p87 = por %p85, %p86
      %p89 = scmp.ne.s32.totalorder %s74, %s88
      %p90 = scmp.eq.s32.totalorder %s22, 0
      %p91 = por %p89, %p90
      %s93 = sadd.s32 %s92, 1
      %p96 = scmp.eq.s32.totalorder %s16, 1
      %p97 = scmp.ne.s32.totalorder %s92, %s94
      %p98 = scmp.eq.s32.totalorder %s16, 0
      %p99 = por %p97, %p98
      %p100 = scmp.ne.s32.totalorder %s92, %s94
      %p101 = scmp.eq.s32.totalorder %s21, 1
      %p102 = por %p100, %p101
      %p103 = scmp.ne.s32.totalorder %s94, %s95
      %p104 = scmp.eq.s32.totalorder %s21, 0
      %p105 = por %p103, %p104
      %p106 = scmp.ne.s32.totalorder %s94, %s95
      %p107 = scmp.eq.s32.totalorder %s22, 1
      %p108 = por %p106, %p107
      %p110 = scmp.ne.s32.totalorder %s95, %s109
      %p111 = scmp.eq.s32.totalorder %s22, 0
      %p112 = por %p110, %p111
      %s114 = sadd.s32 %s113, 1
      %p117 = scmp.eq.s32.totalorder %s16, 1
      %p118 = scmp.ne.s32.totalorder %s113, %s115
      %p119 = scmp.eq.s32.totalorder %s16, 0
      %p120 = por %p118, %p119
      %p121 = scmp.ne.s32.totalorder %s113, %s115
      %p122 = scmp.eq.s32.totalorder %s21, 1
      %p123 = por %p121, %p122
      %p124 = scmp.ne.s32.totalorder %s115, %s116
      %p125 = scmp.eq.s32.totalorder %s21, 0
      %p126 = por %p124, %p125
      %p127 = scmp.ne.s32.totalorder %s115, %s116
      %p128 = scmp.eq.s32.totalorder %s22, 1
      %p129 = por %p127, %p128
      %p131 = scmp.ne.s32.totalorder %s116, %s130
      %p132 = scmp.eq.s32.totalorder %s22, 0
      %p133 = por %p131, %p132
      %s135 = sadd.s32 %s134, 1
      %p138 = scmp.eq.s32.totalorder %s16, 1
      %p139 = scmp.ne.s32.totalorder %s134, %s136
      %p140 = scmp.eq.s32.totalorder %s16, 0
      %p141 = por %p139, %p140
      %p142 = scmp.ne.s32.totalorder %s134, %s136
      %p143 = scmp.eq.s32.totalorder %s21, 1
      %p144 = por %p142, %p143
      %p145 = scmp.ne.s32.totalorder %s136, %s137
      %p146 = scmp.eq.s32.totalorder %s21, 0
      %p147 = por %p145, %p146
      %p148 = scmp.ne.s32.totalorder %s136, %s137
      %p149 = scmp.eq.s32.totalorder %s22, 1
      %p150 = por %p148, %p149
      %p152 = scmp.ne.s32.totalorder %s137, %s151
      %p153 = scmp.eq.s32.totalorder %s22, 0
      %p154 = por %p152, %p153
      %s156 = sadd.s32 %s155, 1
      %p159 = scmp.eq.s32.totalorder %s16, 1
      %p160 = scmp.ne.s32.totalorder %s155, %s157
      %p161 = scmp.eq.s32.totalorder %s16, 0
      %p162 = por %p160, %p161
      %p163 = scmp.ne.s32.totalorder %s155, %s157
      %p164 = scmp.eq.s32.totalorder %s21, 1
      %p165 = por %p163, %p164
      %p166 = scmp.ne.s32.totalorder %s157, %s158
      %p167 = scmp.eq.s32.totalorder %s21, 0
      %p168 = por %p166, %p167
      %p169 = scmp.ne.s32.totalorder %s157, %s158
      %p170 = scmp.eq.s32.totalorder %s22, 1
      %p171 = por %p169, %p170
      %p173 = scmp.ne.s32.totalorder %s158, %s172
      %p174 = scmp.eq.s32.totalorder %s22, 0
      %p175 = por %p173, %p174
      %s176 = ssub.s32 %s16, %s23
      %p177 = scmp.eq.s32.totalorder %s176, 0
      %s179 = sadd.s32 %s178, 1
      %s180 = scalar_select %p177, %s178, %s179
      %p183 = pneg %p177
      %p184 = scmp.eq.s32.totalorder %s16, 1
      %p185 = por %p183, %p184
      %p186 = scmp.ne.s32.totalorder %s178, %s181
      %p187 = scmp.eq.s32.totalorder %s16, 0
      %p188 = por %p186, %p187
      %p189 = scmp.ne.s32.totalorder %s178, %s181
      %p190 = scmp.eq.s32.totalorder %s21, 1
      %p191 = por %p189, %p190
      %p192 = scmp.ne.s32.totalorder %s181, %s182
      %p193 = scmp.eq.s32.totalorder %s21, 0
      %p194 = por %p192, %p193
      %p195 = scmp.ne.s32.totalorder %s181, %s182
      %p196 = scmp.eq.s32.totalorder %s22, 1
      %p197 = por %p195, %p196
      %p199 = scmp.ne.s32.totalorder %s182, %s198
      %p200 = scmp.eq.s32.totalorder %s22, 0
      %p201 = por %p199, %p200
      %p202 = scmp.le.s32.totalorder 1, %s16
      %p203 = scmp.lt.s32.totalorder %s16, 3
      %p204 = pnand %p202, %p203
      %p205 = pneg %p204
      // Predicated region
      $region9: #{tpu_custom_call.1} parent=5 // pred_check
        _
      $region10: #{tpu_custom_call.1} parent=5 // pred_check_branch
        %207 = sbr.rel (%p204) target = $region12
      $region11: #{tpu_custom_call.1} parent=5 // pred_region
        %s208 = ssub.s32 %s16, 1
        // Predicated region
        $region13: #{tpu_custom_call.1} parent=11 // pred_check
          %p209 = pneg %p63
        $region14: #{tpu_custom_call.1} parent=11 // pred_check_branch
          %211 = sbr.rel (%p209) target = $region16
        $region15: #{tpu_custom_call.1} parent=11 // pred_region
          _
        $region16: #{tpu_custom_call.1} parent=11 // pred_fallthru
          _
        // Predicated region
        $region17: #{tpu_custom_call.1} parent=11 // pred_check
          %p212 = pneg %p84
        $region18: #{tpu_custom_call.1} parent=11 // pred_check_branch
          %214 = sbr.rel (%p212) target = $region20
        $region19: #{tpu_custom_call.1} parent=11 // pred_region
          _
        $region20: #{tpu_custom_call.1} parent=11 // pred_fallthru
          _
        // Predicated region
        $region21: #{tpu_custom_call.1} parent=11 // pred_check
          %p215 = pneg %p105
        $region22: #{tpu_custom_call.1} parent=11 // pred_check_branch
          %217 = sbr.rel (%p215) target = $region24
        $region23: #{tpu_custom_call.1} parent=11 // pred_region
          _
        $region24: #{tpu_custom_call.1} parent=11 // pred_fallthru
          _
        // Predicated region
        $region25: #{tpu_custom_call.1} parent=11 // pred_check
          %p218 = pneg %p126
        $region26: #{tpu_custom_call.1} parent=11 // pred_check_branch
          %220 = sbr.rel (%p218) target = $region28
        $region27: #{tpu_custom_call.1} parent=11 // pred_region
          _
        $region28: #{tpu_custom_call.1} parent=11 // pred_fallthru
          _
        // Predicated region
        $region29: #{tpu_custom_call.1} parent=11 // pred_check
          %p221 = pneg %p147
        $region30: #{tpu_custom_call.1} parent=11 // pred_check_branch
          %223 = sbr.rel (%p221) target = $region32
        $region31: #{tpu_custom_call.1} parent=11 // pred_region
          _
        $region32: #{tpu_custom_call.1} parent=11 // pred_fallthru
          _
        // Predicated region
        $region33: #{tpu_custom_call.1} parent=11 // pred_check
          %p224 = pneg %p168
        $region34: #{tpu_custom_call.1} parent=11 // pred_check_branch
          %226 = sbr.rel (%p224) target = $region36
        $region35: #{tpu_custom_call.1} parent=11 // pred_region
          _
        $region36: #{tpu_custom_call.1} parent=11 // pred_fallthru
          _
      $region12: #{tpu_custom_call.1} parent=5 // pred_fallthru
        _
      %p227 = scmp.lt.s32.totalorder %s16, 2
      // Predicated region
      $region37: #{tpu_custom_call.1} parent=5 // pred_check
        %p228 = pneg %p227
      $region38: #{tpu_custom_call.1} parent=5 // pred_check_branch
        %230 = sbr.rel (%p228) target = $region40
      $region39: #{tpu_custom_call.1} parent=5 // pred_region
        // Predicated region
        $region41: #{tpu_custom_call.1} parent=39 // pred_check
          %p231 = pneg %p36
        $region42: #{tpu_custom_call.1} parent=39 // pred_check_branch
          %233 = sbr.rel (%p231) target = $region44
        $region43: #{tpu_custom_call.1} parent=39 // pred_region
          %s234 = smul.u32 126, %s16
          %p235 = scmp.lt.s32.totalorder %s234, 251
          %s236 = scalar_select %p235, %s234, 251
          %s237 = smul.addr %s236, 4
          %s238 = scalar_lea.vmem %s0, %s237
          %s239 = smul.u32 126, %s16
        $region44: #{tpu_custom_call.1} parent=39 // pred_fallthru
          _
      $region40: #{tpu_custom_call.1} parent=5 // pred_fallthru
        _
      %p240 = scmp.le.s32.totalorder 1, %s16
      %p241 = scmp.lt.s32.totalorder %s16, 3
      %p242 = pnand %p240, %p241
      %p243 = pneg %p242
      // Predicated region
      $region45: #{tpu_custom_call.1} parent=5 // pred_check
        _
      $region46: #{tpu_custom_call.1} parent=5 // pred_check_branch
        %245 = sbr.rel (%p242) target = $region48
      $region47: #{tpu_custom_call.1} parent=5 // pred_region
        %s246 = ssub.s32 %s16, 1
        %s247 = smul.u32 126, %s21
        %p248 = scmp.lt.s32.totalorder %s247, 251
        %s249 = scalar_select %p248, %s247, 251
        %s250 = smul.addr %s249, 4
        %s251 = scalar_lea.vmem %s0, %s250
        %p252 = pneg %p42
        %p253 = pneg %p39
        %p254 = pneg %p63
        %p255 = pneg %p60
        %p256 = pneg %p84
        %p257 = pneg %p81
        %p258 = pneg %p105
        %p259 = pneg %p102
        %p260 = pneg %p126
        %p261 = pneg %p123
        %p262 = pneg %p147
        %p263 = pneg %p144
        %p264 = pneg %p168
        %p265 = pneg %p165
        %p266 = pneg %p194
        %p267 = pneg %p191
        %s268 = sand.u32 %s181, 1
        %s269 = scalar_lea.sflag [#allocation5], %s268
        %s270 = sand.u32 %s181, 1
        %s271 = smul.addr %s270, 16
        %s272 = scalar_lea.vmem [#allocation4], %s271
        %s273 = smul.u32 126, %s21
        %p274 = scmp.lt.s32.totalorder %s273, 251
        %s275 = scalar_select %p274, %s273, 251
        %s276 = smul.addr %s275, 4
        %s277 = scalar_lea.vmem %s0, %s276
        %s278 = smul.u32 126, %s21
        %s279 = smul.u32 2, %s21
        %v281 = vld [vmem:[%s277] sm:$0xf]
        %v282 = vld [vmem:[%s277 + $0x4] sm:$0xf]
        %v283 = vld [vmem:[%s277 + $0x8] sm:$0xf]
        %v284 = vld [vmem:[%s277 + $0xc] sm:$0xf]
        %v285 = vld [vmem:[%s277 + $0x10] sm:$0xf]
        %v286 = vld [vmem:[%s277 + $0x14] sm:$0xf]
        %v287 = vld [vmem:[%s277 + $0x18] sm:$0xf]
        %v288 = vld [vmem:[%s277 + $0x1c] sm:$0xf]
        %v289 = vld [vmem:[%s277 + $0x20] sm:$0xf]
        %v290 = vld [vmem:[%s277 + $0x24] sm:$0xf]
        %v291 = vld [vmem:[%s277 + $0x28] sm:$0xf]
        %v292 = vld [vmem:[%s277 + $0x2c] sm:$0xf]
        %v293 = vld [vmem:[%s277 + $0x30] sm:$0xf]
        %v294 = vld [vmem:[%s277 + $0x34] sm:$0xf]
        %v295 = vld [vmem:[%s277 + $0x38] sm:$0xf]
        %v296 = vld [vmem:[%s277 + $0x3c] sm:$0xf]
        %v297 = vld [vmem:[%s277 + $0x40] sm:$0xf]
        %v298 = vld [vmem:[%s277 + $0x44] sm:$0xf]
        %v299 = vld [vmem:[%s277 + $0x48] sm:$0xf]
        %v300 = vld [vmem:[%s277 + $0x4c] sm:$0xf]
        %v301 = vld [vmem:[%s277 + $0x50] sm:$0xf]
        %v302 = vld [vmem:[%s277 + $0x54] sm:$0xf]
        %v303 = vld [vmem:[%s277 + $0x58] sm:$0xf]
        %v304 = vld [vmem:[%s277 + $0x5c] sm:$0xf]
        %v305 = vld [vmem:[%s277 + $0x60] sm:$0xf]
        %v306 = vld [vmem:[%s277 + $0x64] sm:$0xf]
        %v307 = vld [vmem:[%s277 + $0x68] sm:$0xf]
        %v308 = vld [vmem:[%s277 + $0x6c] sm:$0xf]
        %v309 = vld [vmem:[%s277 + $0x70] sm:$0xf]
        %v310 = vld [vmem:[%s277 + $0x74] sm:$0xf]
        %v311 = vld [vmem:[%s277 + $0x78] sm:$0xf]
        %v312 = vld [vmem:[%s277 + $0x7c] sm:$0xf]
        %v313 = vld [vmem:[%s277 + $0x80] sm:$0xf]
        %v314 = vld [vmem:[%s277 + $0x84] sm:$0xf]
        %v315 = vld [vmem:[%s277 + $0x88] sm:$0xf]
        %v316 = vld [vmem:[%s277 + $0x8c] sm:$0xf]
        %v317 = vld [vmem:[%s277 + $0x90] sm:$0xf]
        %v318 = vld [vmem:[%s277 + $0x94] sm:$0xf]
        %v319 = vld [vmem:[%s277 + $0x98] sm:$0xf]
        %v320 = vld [vmem:[%s277 + $0x9c] sm:$0xf]
        %v321 = vld [vmem:[%s277 + $0xa0] sm:$0xf]
        %v322 = vld [vmem:[%s277 + $0xa4] sm:$0xf]
        %v323 = vld [vmem:[%s277 + $0xa8] sm:$0xf]
        %v324 = vld [vmem:[%s277 + $0xac] sm:$0xf]
        %v325 = vld [vmem:[%s277 + $0xb0] sm:$0xf]
        %v326 = vld [vmem:[%s277 + $0xb4] sm:$0xf]
        %v327 = vld [vmem:[%s277 + $0xb8] sm:$0xf]
        %v328 = vld [vmem:[%s277 + $0xbc] sm:$0xf]
        %v329 = vld [vmem:[%s277 + $0xc0] sm:$0xf]
        %v330 = vld [vmem:[%s277 + $0xc4] sm:$0xf]
        %v331 = vld [vmem:[%s277 + $0xc8] sm:$0xf]
        %v332 = vld [vmem:[%s277 + $0xcc] sm:$0xf]
        %v333 = vld [vmem:[%s277 + $0xd0] sm:$0xf]
        %v334 = vld [vmem:[%s277 + $0xd4] sm:$0xf]
        %v335 = vld [vmem:[%s277 + $0xd8] sm:$0xf]
        %v336 = vld [vmem:[%s277 + $0xdc] sm:$0xf]
        %v337 = vld [vmem:[%s277 + $0xe0] sm:$0xf]
        %v338 = vld [vmem:[%s277 + $0xe4] sm:$0xf]
        %v339 = vld [vmem:[%s277 + $0xe8] sm:$0xf]
        %v340 = vld [vmem:[%s277 + $0xec] sm:$0xf]
        %v341 = vld [vmem:[%s277 + $0xf0] sm:$0xf]
        %v342 = vld [vmem:[%s277 + $0xf4] sm:$0xf]
        %v343 = vld [vmem:[%s277 + $0xf8] sm:$0xf]
        %v344 = vld [vmem:[%s277 + $0xfc] sm:$0xf]
        %v345 = vld [vmem:[%s277 + $0x100] sm:$0xf]
        %v346 = vld [vmem:[%s277 + $0x104] sm:$0xf]
        %v347 = vld [vmem:[%s277 + $0x108] sm:$0xf]
        %v348 = vld [vmem:[%s277 + $0x10c] sm:$0xf]
        %v349 = vld [vmem:[%s277 + $0x110] sm:$0xf]
        %v350 = vld [vmem:[%s277 + $0x114] sm:$0xf]
        %v351 = vld [vmem:[%s277 + $0x118] sm:$0xf]
        %v352 = vld [vmem:[%s277 + $0x11c] sm:$0xf]
        %v353 = vld [vmem:[%s277 + $0x120] sm:$0xf]
        %v354 = vld [vmem:[%s277 + $0x124] sm:$0xf]
        %v355 = vld [vmem:[%s277 + $0x128] sm:$0xf]
        %v356 = vld [vmem:[%s277 + $0x12c] sm:$0xf]
        %v357 = vld [vmem:[%s277 + $0x130] sm:$0xf]
        %v358 = vld [vmem:[%s277 + $0x134] sm:$0xf]
        %v359 = vld [vmem:[%s277 + $0x138] sm:$0xf]
        %v360 = vld [vmem:[%s277 + $0x13c] sm:$0xf]
        %v361 = vld [vmem:[%s277 + $0x140] sm:$0xf]
        %v362 = vld [vmem:[%s277 + $0x144] sm:$0xf]
        %v363 = vld [vmem:[%s277 + $0x148] sm:$0xf]
        %v364 = vld [vmem:[%s277 + $0x14c] sm:$0xf]
        %v365 = vld [vmem:[%s277 + $0x150] sm:$0xf]
        %v366 = vld [vmem:[%s277 + $0x154] sm:$0xf]
        %v367 = vld [vmem:[%s277 + $0x158] sm:$0xf]
        %v368 = vld [vmem:[%s277 + $0x15c] sm:$0xf]
        %v369 = vld [vmem:[%s277 + $0x160] sm:$0xf]
        %v370 = vld [vmem:[%s277 + $0x164] sm:$0xf]
        %v371 = vld [vmem:[%s277 + $0x168] sm:$0xf]
        %v372 = vld [vmem:[%s277 + $0x16c] sm:$0xf]
        %v373 = vld [vmem:[%s277 + $0x170] sm:$0xf]
        %v374 = vld [vmem:[%s277 + $0x174] sm:$0xf]
        %v375 = vld [vmem:[%s277 + $0x178] sm:$0xf]
        %v376 = vld [vmem:[%s277 + $0x17c] sm:$0xf]
        %v377 = vld [vmem:[%s277 + $0x180] sm:$0xf]
        %v378 = vld [vmem:[%s277 + $0x184] sm:$0xf]
        %v379 = vld [vmem:[%s277 + $0x188] sm:$0xf]
        %v380 = vld [vmem:[%s277 + $0x18c] sm:$0xf]
        %v381 = vld [vmem:[%s277 + $0x190] sm:$0xf]
        %v382 = vld [vmem:[%s277 + $0x194] sm:$0xf]
        %v383 = vld [vmem:[%s277 + $0x198] sm:$0xf]
        %v384 = vld [vmem:[%s277 + $0x19c] sm:$0xf]
        %v385 = vld [vmem:[%s277 + $0x1a0] sm:$0xf]
        %v386 = vld [vmem:[%s277 + $0x1a4] sm:$0xf]
        %v387 = vld [vmem:[%s277 + $0x1a8] sm:$0xf]
        %v388 = vld [vmem:[%s277 + $0x1ac] sm:$0xf]
        %v389 = vld [vmem:[%s277 + $0x1b0] sm:$0xf]
        %v390 = vld [vmem:[%s277 + $0x1b4] sm:$0xf]
        %v391 = vld [vmem:[%s277 + $0x1b8] sm:$0xf]
        %v392 = vld [vmem:[%s277 + $0x1bc] sm:$0xf]
        %v393 = vld [vmem:[%s277 + $0x1c0] sm:$0xf]
        %v394 = vld [vmem:[%s277 + $0x1c4] sm:$0xf]
        %v395 = vld [vmem:[%s277 + $0x1c8] sm:$0xf]
        %v396 = vld [vmem:[%s277 + $0x1cc] sm:$0xf]
        %v397 = vld [vmem:[%s277 + $0x1d0] sm:$0xf]
        %v398 = vld [vmem:[%s277 + $0x1d4] sm:$0xf]
        %v399 = vld [vmem:[%s277 + $0x1d8] sm:$0xf]
        %v400 = vld [vmem:[%s277 + $0x1dc] sm:$0xf]
        %v401 = vld [vmem:[%s277 + $0x1e0] sm:$0xf]
        %v402 = vld [vmem:[%s277 + $0x1e4] sm:$0xf]
        %v403 = vld [vmem:[%s277 + $0x1e8] sm:$0xf]
        %v404 = vld [vmem:[%s277 + $0x1ec] sm:$0xf]
        %v405 = vld [vmem:[%s277 + $0x1f0] sm:$0xf]
        %v406 = vld [vmem:[%s277 + $0x1f4] sm:$0xf]
        %v407 = vld [vmem:[%s1] sm:$0xf]
        %v408 = vld [vmem:[%s1 + $0x4] sm:$0xf]
        %v409 = vld [vmem:[%s1 + $0x8] sm:$0xf]
        %v410 = vld [vmem:[%s1 + $0xc] sm:$0xf]
        %v411 = vld [vmem:[%s1 + $0x10] sm:$0xf]
        %v412 = vld [vmem:[%s1 + $0x14] sm:$0xf]
        %v413 = vld [vmem:[%s1 + $0x18] sm:$0xf]
        %v414 = vld [vmem:[%s1 + $0x1c] sm:$0xf]
        %v415 = vld [vmem:[%s1 + $0x20] sm:$0xf]
        %v416 = vld [vmem:[%s1 + $0x24] sm:$0x3]
        %v417 = vld [vmem:[%s2] sm:$0x1]
        %v419 = vperm.slane %v417, 0
        %v547 = vunpack.c.l.b16 %v281
        %v548 = vunpack.c.l.b16 %v282
        %v549 = vunpack.c.l.b16 %v283
        %v550 = vunpack.c.l.b16 %v284
        %v551 = vunpack.c.l.b16 %v285
        %v552 = vunpack.c.l.b16 %v286
        %v553 = vunpack.c.l.b16 %v287
        %v554 = vunpack.c.l.b16 %v288
        %v555 = vunpack.c.l.b16 %v289
        %v556 = vunpack.c.l.b16 %v290
        %v557 = vunpack.c.l.b16 %v291
        %v558 = vunpack.c.l.b16 %v292
        %v559 = vunpack.c.l.b16 %v293
        %v560 = vunpack.c.l.b16 %v294
        %v561 = vunpack.c.l.b16 %v295
        %v562 = vunpack.c.l.b16 %v296
        %v563 = vunpack.c.l.b16 %v297
        %v564 = vunpack.c.l.b16 %v298
        %v565 = vunpack.c.l.b16 %v299
        %v566 = vunpack.c.l.b16 %v300
        %v567 = vunpack.c.l.b16 %v301
        %v568 = vunpack.c.l.b16 %v302
        %v569 = vunpack.c.l.b16 %v303
        %v570 = vunpack.c.l.b16 %v304
        %v571 = vunpack.c.l.b16 %v305
        %v572 = vunpack.c.l.b16 %v306
        %v573 = vunpack.c.l.b16 %v307
        %v574 = vunpack.c.l.b16 %v308
        %v575 = vunpack.c.l.b16 %v309
        %v576 = vunpack.c.l.b16 %v310
        %v577 = vunpack.c.l.b16 %v311
        %v578 = vunpack.c.l.b16 %v312
        %v579 = vunpack.c.l.b16 %v313
        %v580 = vunpack.c.l.b16 %v314
        %v581 = vunpack.c.l.b16 %v315
        %v582 = vunpack.c.l.b16 %v316
        %v583 = vunpack.c.l.b16 %v317
        %v584 = vunpack.c.l.b16 %v318
        %v585 = vunpack.c.l.b16 %v319
        %v586 = vunpack.c.l.b16 %v320
        %v587 = vunpack.c.l.b16 %v321
        %v588 = vunpack.c.l.b16 %v322
        %v589 = vunpack.c.l.b16 %v323
        %v590 = vunpack.c.l.b16 %v324
        %v591 = vunpack.c.l.b16 %v325
        %v592 = vunpack.c.l.b16 %v326
        %v593 = vunpack.c.l.b16 %v327
        %v594 = vunpack.c.l.b16 %v328
        %v595 = vunpack.c.l.b16 %v329
        %v596 = vunpack.c.l.b16 %v330
        %v597 = vunpack.c.l.b16 %v331
        %v598 = vunpack.c.l.b16 %v332
        %v599 = vunpack.c.l.b16 %v333
        %v600 = vunpack.c.l.b16 %v334
        %v601 = vunpack.c.l.b16 %v335
        %v602 = vunpack.c.l.b16 %v336
        %v603 = vunpack.c.l.b16 %v337
        %v604 = vunpack.c.l.b16 %v338
        %v605 = vunpack.c.l.b16 %v339
        %v606 = vunpack.c.l.b16 %v340
        %v607 = vunpack.c.l.b16 %v341
        %v608 = vunpack.c.l.b16 %v342
        %v609 = vunpack.c.l.b16 %v343
        %v610 = vunpack.c.l.b16 %v344
        %v611 = vunpack.c.l.b16 %v345
        %v612 = vunpack.c.l.b16 %v346
        %v613 = vunpack.c.l.b16 %v347
        %v614 = vunpack.c.l.b16 %v348
        %v615 = vunpack.c.l.b16 %v349
        %v616 = vunpack.c.l.b16 %v350
        %v617 = vunpack.c.l.b16 %v351
        %v618 = vunpack.c.l.b16 %v352
        %v619 = vunpack.c.l.b16 %v353
        %v620 = vunpack.c.l.b16 %v354
        %v621 = vunpack.c.l.b16 %v355
        %v622 = vunpack.c.l.b16 %v356
        %v623 = vunpack.c.l.b16 %v357
        %v624 = vunpack.c.l.b16 %v358
        %v625 = vunpack.c.l.b16 %v359
        %v626 = vunpack.c.l.b16 %v360
        %v627 = vunpack.c.l.b16 %v361
        %v628 = vunpack.c.l.b16 %v362
        %v629 = vunpack.c.l.b16 %v363
        %v630 = vunpack.c.l.b16 %v364
        %v631 = vunpack.c.l.b16 %v365
        %v632 = vunpack.c.l.b16 %v366
        %v633 = vunpack.c.l.b16 %v367
        %v634 = vunpack.c.l.b16 %v368
        %v635 = vunpack.c.l.b16 %v369
        %v636 = vunpack.c.l.b16 %v370
        %v637 = vunpack.c.l.b16 %v371
        %v638 = vunpack.c.l.b16 %v372
        %v639 = vunpack.c.l.b16 %v373
        %v640 = vunpack.c.l.b16 %v374
        %v641 = vunpack.c.l.b16 %v375
        %v642 = vunpack.c.l.b16 %v376
        %v643 = vunpack.c.l.b16 %v377
        %v644 = vunpack.c.l.b16 %v378
        %v645 = vunpack.c.l.b16 %v379
        %v646 = vunpack.c.l.b16 %v380
        %v647 = vunpack.c.l.b16 %v381
        %v648 = vunpack.c.l.b16 %v382
        %v649 = vunpack.c.l.b16 %v383
        %v650 = vunpack.c.l.b16 %v384
        %v651 = vunpack.c.l.b16 %v385
        %v652 = vunpack.c.l.b16 %v386
        %v653 = vunpack.c.l.b16 %v387
        %v654 = vunpack.c.l.b16 %v388
        %v655 = vunpack.c.l.b16 %v389
        %v656 = vunpack.c.l.b16 %v390
        %v657 = vunpack.c.l.b16 %v391
        %v658 = vunpack.c.l.b16 %v392
        %v659 = vunpack.c.l.b16 %v393
        %v660 = vunpack.c.l.b16 %v394
        %v661 = vunpack.c.l.b16 %v395
        %v662 = vunpack.c.l.b16 %v396
        %v663 = vunpack.c.l.b16 %v397
        %v664 = vunpack.c.l.b16 %v398
        %v665 = vunpack.c.l.b16 %v399
        %v666 = vunpack.c.l.b16 %v400
        %v667 = vunpack.c.l.b16 %v401
        %v668 = vunpack.c.l.b16 %v402
        %v669 = vunpack.c.l.b16 %v403
        %v670 = vunpack.c.l.b16 %v404
        %v671 = vunpack.c.l.b16 %v405
        %v672 = vunpack.c.l.b16 %v406
        %v673 = vpack.c.b16 %v548, %v547
        %v674 = vpack.c.b16 %v550, %v549
        %v675 = vpack.c.b16 %v552, %v551
        %v676 = vpack.c.b16 %v554, %v553
        %v677 = vpack.c.b16 %v556, %v555
        %v678 = vpack.c.b16 %v558, %v557
        %v679 = vpack.c.b16 %v560, %v559
        %v680 = vpack.c.b16 %v562, %v561
        %v681 = vpack.c.b16 %v564, %v563
        %v682 = vpack.c.b16 %v566, %v565
        %v683 = vpack.c.b16 %v568, %v567
        %v684 = vpack.c.b16 %v570, %v569
        %v685 = vpack.c.b16 %v572, %v571
        %v686 = vpack.c.b16 %v574, %v573
        %v687 = vpack.c.b16 %v576, %v575
        %v688 = vpack.c.b16 %v578, %v577
        %v689 = vpack.c.b16 %v580, %v579
        %v690 = vpack.c.b16 %v582, %v581
        %v691 = vpack.c.b16 %v584, %v583
        %v692 = vpack.c.b16 %v586, %v585
        %v693 = vpack.c.b16 %v588, %v587
        %v694 = vpack.c.b16 %v590, %v589
        %v695 = vpack.c.b16 %v592, %v591
        %v696 = vpack.c.b16 %v594, %v593
        %v697 = vpack.c.b16 %v596, %v595
        %v698 = vpack.c.b16 %v598, %v597
        %v699 = vpack.c.b16 %v600, %v599
        %v700 = vpack.c.b16 %v602, %v601
        %v701 = vpack.c.b16 %v604, %v603
        %v702 = vpack.c.b16 %v606, %v605
        %v703 = vpack.c.b16 %v608, %v607
        %v704 = vpack.c.b16 %v610, %v609
        %v705 = vpack.c.b16 %v612, %v611
        %v706 = vpack.c.b16 %v614, %v613
        %v707 = vpack.c.b16 %v616, %v615
        %v708 = vpack.c.b16 %v618, %v617
        %v709 = vpack.c.b16 %v620, %v619
        %v710 = vpack.c.b16 %v622, %v621
        %v711 = vpack.c.b16 %v624, %v623
        %v712 = vpack.c.b16 %v626, %v625
        %v713 = vpack.c.b16 %v628, %v627
        %v714 = vpack.c.b16 %v630, %v629
        %v715 = vpack.c.b16 %v632, %v631
        %v716 = vpack.c.b16 %v634, %v633
        %v717 = vpack.c.b16 %v636, %v635
        %v718 = vpack.c.b16 %v638, %v637
        %v719 = vpack.c.b16 %v640, %v639
        %v720 = vpack.c.b16 %v642, %v641
        %v721 = vpack.c.b16 %v644, %v643
        %v722 = vpack.c.b16 %v646, %v645
        %v723 = vpack.c.b16 %v648, %v647
        %v724 = vpack.c.b16 %v650, %v649
        %v725 = vpack.c.b16 %v652, %v651
        %v726 = vpack.c.b16 %v654, %v653
        %v727 = vpack.c.b16 %v656, %v655
        %v728 = vpack.c.b16 %v658, %v657
        %v729 = vpack.c.b16 %v660, %v659
        %v730 = vpack.c.b16 %v662, %v661
        %v731 = vpack.c.b16 %v664, %v663
        %v732 = vpack.c.b16 %v666, %v665
        %v733 = vpack.c.b16 %v668, %v667
        %v734 = vpack.c.b16 %v670, %v669
        %v735 = vpack.c.b16 %v672, %v671
        %v746 = vunpack.c.l.b16 %v407
        %v747 = vunpack.c.l.b16 %v408
        %v748 = vunpack.c.l.b16 %v409
        %v749 = vunpack.c.l.b16 %v410
        %v750 = vunpack.c.l.b16 %v411
        %v751 = vunpack.c.l.b16 %v412
        %v752 = vunpack.c.l.b16 %v413
        %v753 = vunpack.c.l.b16 %v414
        %v754 = vunpack.c.l.b16 %v415
        %v755 = vunpack.c.l.b16 %v416
        %v756 = vpack.c.b16 %v747, %v746
        %v757 = vpack.c.b16 %v749, %v748
        %v758 = vpack.c.b16 %v751, %v750
        %v759 = vpack.c.b16 %v753, %v752
        %v760 = vpack.c.b16 %v755, %v754
        %vm765 = vcmask 613376
        %v767 = vsel %vm765, %v673, 0
        %v770 = vsel %vm765, %v674, 0
        %v773 = vsel %vm765, %v675, 0
        %v776 = vsel %vm765, %v676, 0
        %v779 = vsel %vm765, %v677, 0
        %v782 = vsel %vm765, %v678, 0
        %v785 = vsel %vm765, %v679, 0
        %v788 = vsel %vm765, %v680, 0
        %v791 = vsel %vm765, %v681, 0
        %v794 = vsel %vm765, %v682, 0
        %v797 = vsel %vm765, %v683, 0
        %v800 = vsel %vm765, %v684, 0
        %v803 = vsel %vm765, %v685, 0
        %v806 = vsel %vm765, %v686, 0
        %v809 = vsel %vm765, %v687, 0
        %v812 = vsel %vm765, %v688, 0
        %v815 = vsel %vm765, %v689, 0
        %v818 = vsel %vm765, %v690, 0
        %v821 = vsel %vm765, %v691, 0
        %v824 = vsel %vm765, %v692, 0
        %v827 = vsel %vm765, %v693, 0
        %v830 = vsel %vm765, %v694, 0
        %v833 = vsel %vm765, %v695, 0
        %v836 = vsel %vm765, %v696, 0
        %v839 = vsel %vm765, %v697, 0
        %v842 = vsel %vm765, %v698, 0
        %v845 = vsel %vm765, %v699, 0
        %v848 = vsel %vm765, %v700, 0
        %v851 = vsel %vm765, %v701, 0
        %v854 = vsel %vm765, %v702, 0
        %v857 = vsel %vm765, %v703, 0
        %v860 = vsel %vm765, %v704, 0
        %v863 = vsel %vm765, %v705, 0
        %v866 = vsel %vm765, %v706, 0
        %v869 = vsel %vm765, %v707, 0
        %v872 = vsel %vm765, %v708, 0
        %v875 = vsel %vm765, %v709, 0
        %v878 = vsel %vm765, %v710, 0
        %v881 = vsel %vm765, %v711, 0
        %v884 = vsel %vm765, %v712, 0
        %v887 = vsel %vm765, %v713, 0
        %v890 = vsel %vm765, %v714, 0
        %v893 = vsel %vm765, %v715, 0
        %v896 = vsel %vm765, %v716, 0
        %v899 = vsel %vm765, %v717, 0
        %v902 = vsel %vm765, %v718, 0
        %v905 = vsel %vm765, %v719, 0
        %v908 = vsel %vm765, %v720, 0
        %v911 = vsel %vm765, %v721, 0
        %v914 = vsel %vm765, %v722, 0
        %v917 = vsel %vm765, %v723, 0
        %v920 = vsel %vm765, %v724, 0
        %v923 = vsel %vm765, %v725, 0
        %v926 = vsel %vm765, %v726, 0
        %v929 = vsel %vm765, %v727, 0
        %v932 = vsel %vm765, %v728, 0
        %v935 = vsel %vm765, %v729, 0
        %v938 = vsel %vm765, %v730, 0
        %v941 = vsel %vm765, %v731, 0
        %v944 = vsel %vm765, %v732, 0
        %v947 = vsel %vm765, %v733, 0
        %v950 = vsel %vm765, %v734, 0
        %v953 = vsel %vm765, %v735, 0
        %vm955 = vcmask 1044480
        %vm956 = vcmask 1045504
        %v957 = vsel %vm955, 4294967295, 65535
        %v958 = vsel %vm956, %v957, 0
        %v960 = vand.u32 %v760, %v958
        %962 = vmatpush.bf16.msra.mxu0 0
        %963 = vmatpush.bf16.msra.mxu0 0
        %964 = vmatpush.bf16.msra.mxu0 0
        %965 = vmatpush.bf16.msra.mxu0 %v960
        %966 = vmatpush.bf16.msra.mxu0 %v759
        %967 = vmatpush.bf16.msra.mxu0 %v758
        %968 = vmatpush.bf16.msra.mxu0 %v757
        %969 = vmatpush.bf16.msra.mxu0 %v756
        %970 = vmatmul.bf16.gmra.mxu0 %v767
        %v971 = vpop.f32.mrf.mxu0
        %v972 = vadd.f32 %v419, %v971
        %v973 = vpop.f32.mrf.mxu0
        %v974 = vadd.f32 %v419, %v973
        %975 = vmatmul.bf16.gmra.mxu0 %v770
        %v976 = vpop.f32.mrf.mxu0
        %v977 = vadd.f32 %v419, %v976
        %v978 = vpop.f32.mrf.mxu0
        %v979 = vadd.f32 %v419, %v978
        %980 = vmatmul.bf16.gmra.mxu0 %v773
        %v981 = vpop.f32.mrf.mxu0
        %v982 = vadd.f32 %v419, %v981
        %v983 = vpop.f32.mrf.mxu0
        %v984 = vadd.f32 %v419, %v983
        %985 = vmatmul.bf16.gmra.mxu0 %v776
        %v986 = vpop.f32.mrf.mxu0
        %v987 = vadd.f32 %v419, %v986
        %v988 = vpop.f32.mrf.mxu0
        %v989 = vadd.f32 %v419, %v988
        %990 = vmatmul.bf16.gmra.mxu0 %v779
        %v991 = vpop.f32.mrf.mxu0
        %v992 = vadd.f32 %v419, %v991
        %v993 = vpop.f32.mrf.mxu0
        %v994 = vadd.f32 %v419, %v993
        %995 = vmatmul.bf16.gmra.mxu0 %v782
        %v996 = vpop.f32.mrf.mxu0
        %v997 = vadd.f32 %v419, %v996
        %v998 = vpop.f32.mrf.mxu0
        %v999 = vadd.f32 %v419, %v998
        %1000 = vmatmul.bf16.gmra.mxu0 %v785
        %v1001 = vpop.f32.mrf.mxu0
        %v1002 = vadd.f32 %v419, %v1001
        %v1003 = vpop.f32.mrf.mxu0
        %v1004 = vadd.f32 %v419, %v1003
        %1005 = vmatmul.bf16.gmra.mxu0 %v788
        %v1006 = vpop.f32.mrf.mxu0
        %v1007 = vadd.f32 %v419, %v1006
        %v1008 = vpop.f32.mrf.mxu0
        %v1009 = vadd.f32 %v419, %v1008
        %1010 = vmatmul.bf16.gmra.mxu0 %v791
        %v1011 = vpop.f32.mrf.mxu0
        %v1012 = vadd.f32 %v419, %v1011
        %v1013 = vpop.f32.mrf.mxu0
        %v1014 = vadd.f32 %v419, %v1013
        %1015 = vmatmul.bf16.gmra.mxu0 %v794
        %v1016 = vpop.f32.mrf.mxu0
        %v1017 = vadd.f32 %v419, %v1016
        %v1018 = vpop.f32.mrf.mxu0
        %v1019 = vadd.f32 %v419, %v1018
        %1020 = vmatmul.bf16.gmra.mxu0 %v797
        %v1021 = vpop.f32.mrf.mxu0
        %v1022 = vadd.f32 %v419, %v1021
        %v1023 = vpop.f32.mrf.mxu0
        %v1024 = vadd.f32 %v419, %v1023
        %1025 = vmatmul.bf16.gmra.mxu0 %v800
        %v1026 = vpop.f32.mrf.mxu0
        %v1027 = vadd.f32 %v419, %v1026
        %v1028 = vpop.f32.mrf.mxu0
        %v1029 = vadd.f32 %v419, %v1028
        %1030 = vmatmul.bf16.gmra.mxu0 %v803
        %v1031 = vpop.f32.mrf.mxu0
        %v1032 = vadd.f32 %v419, %v1031
        %v1033 = vpop.f32.mrf.mxu0
        %v1034 = vadd.f32 %v419, %v1033
        %1035 = vmatmul.bf16.gmra.mxu0 %v806
        %v1036 = vpop.f32.mrf.mxu0
        %v1037 = vadd.f32 %v419, %v1036
        %v1038 = vpop.f32.mrf.mxu0
        %v1039 = vadd.f32 %v419, %v1038
        %1040 = vmatmul.bf16.gmra.mxu0 %v809
        %v1041 = vpop.f32.mrf.mxu0
        %v1042 = vadd.f32 %v419, %v1041
        %v1043 = vpop.f32.mrf.mxu0
        %v1044 = vadd.f32 %v419, %v1043
        %1045 = vmatmul.bf16.gmra.mxu0 %v812
        %v1046 = vpop.f32.mrf.mxu0
        %v1047 = vadd.f32 %v419, %v1046
        %v1048 = vpop.f32.mrf.mxu0
        %v1049 = vadd.f32 %v419, %v1048
        %1050 = vmatmul.bf16.gmra.mxu0 %v815
        %v1051 = vpop.f32.mrf.mxu0
        %v1052 = vadd.f32 %v419, %v1051
        %v1053 = vpop.f32.mrf.mxu0
        %v1054 = vadd.f32 %v419, %v1053
        %1055 = vmatmul.bf16.gmra.mxu0 %v818
        %v1056 = vpop.f32.mrf.mxu0
        %v1057 = vadd.f32 %v419, %v1056
        %v1058 = vpop.f32.mrf.mxu0
        %v1059 = vadd.f32 %v419, %v1058
        %1060 = vmatmul.bf16.gmra.mxu0 %v821
        %v1061 = vpop.f32.mrf.mxu0
        %v1062 = vadd.f32 %v419, %v1061
        %v1063 = vpop.f32.mrf.mxu0
        %v1064 = vadd.f32 %v419, %v1063
        %1065 = vmatmul.bf16.gmra.mxu0 %v824
        %v1066 = vpop.f32.mrf.mxu0
        %v1067 = vadd.f32 %v419, %v1066
        %v1068 = vpop.f32.mrf.mxu0
        %v1069 = vadd.f32 %v419, %v1068
        %1070 = vmatmul.bf16.gmra.mxu0 %v827
        %v1071 = vpop.f32.mrf.mxu0
        %v1072 = vadd.f32 %v419, %v1071
        %v1073 = vpop.f32.mrf.mxu0
        %v1074 = vadd.f32 %v419, %v1073
        %1075 = vmatmul.bf16.gmra.mxu0 %v830
        %v1076 = vpop.f32.mrf.mxu0
        %v1077 = vadd.f32 %v419, %v1076
        %v1078 = vpop.f32.mrf.mxu0
        %v1079 = vadd.f32 %v419, %v1078
        %1080 = vmatmul.bf16.gmra.mxu0 %v833
        %v1081 = vpop.f32.mrf.mxu0
        %v1082 = vadd.f32 %v419, %v1081
        %v1083 = vpop.f32.mrf.mxu0
        %v1084 = vadd.f32 %v419, %v1083
        %1085 = vmatmul.bf16.gmra.mxu0 %v836
        %v1086 = vpop.f32.mrf.mxu0
        %v1087 = vadd.f32 %v419, %v1086
        %v1088 = vpop.f32.mrf.mxu0
        %v1089 = vadd.f32 %v419, %v1088
        %1090 = vmatmul.bf16.gmra.mxu0 %v839
        %v1091 = vpop.f32.mrf.mxu0
        %v1092 = vadd.f32 %v419, %v1091
        %v1093 = vpop.f32.mrf.mxu0
        %v1094 = vadd.f32 %v419, %v1093
        %1095 = vmatmul.bf16.gmra.mxu0 %v842
        %v1096 = vpop.f32.mrf.mxu0
        %v1097 = vadd.f32 %v419, %v1096
        %v1098 = vpop.f32.mrf.mxu0
        %v1099 = vadd.f32 %v419, %v1098
        %1100 = vmatmul.bf16.gmra.mxu0 %v845
        %v1101 = vpop.f32.mrf.mxu0
        %v1102 = vadd.f32 %v419, %v1101
        %v1103 = vpop.f32.mrf.mxu0
        %v1104 = vadd.f32 %v419, %v1103
        %1105 = vmatmul.bf16.gmra.mxu0 %v848
        %v1106 = vpop.f32.mrf.mxu0
        %v1107 = vadd.f32 %v419, %v1106
        %v1108 = vpop.f32.mrf.mxu0
        %v1109 = vadd.f32 %v419, %v1108
        %1110 = vmatmul.bf16.gmra.mxu0 %v851
        %v1111 = vpop.f32.mrf.mxu0
        %v1112 = vadd.f32 %v419, %v1111
        %v1113 = vpop.f32.mrf.mxu0
        %v1114 = vadd.f32 %v419, %v1113
        %1115 = vmatmul.bf16.gmra.mxu0 %v854
        %v1116 = vpop.f32.mrf.mxu0
        %v1117 = vadd.f32 %v419, %v1116
        %v1118 = vpop.f32.mrf.mxu0
        %v1119 = vadd.f32 %v419, %v1118
        %1120 = vmatmul.bf16.gmra.mxu0 %v857
        %v1121 = vpop.f32.mrf.mxu0
        %v1122 = vadd.f32 %v419, %v1121
        %v1123 = vpop.f32.mrf.mxu0
        %v1124 = vadd.f32 %v419, %v1123
        %1125 = vmatmul.bf16.gmra.mxu0 %v860
        %v1126 = vpop.f32.mrf.mxu0
        %v1127 = vadd.f32 %v419, %v1126
        %v1128 = vpop.f32.mrf.mxu0
        %v1129 = vadd.f32 %v419, %v1128
        %1130 = vmatmul.bf16.gmra.mxu0 %v863
        %v1131 = vpop.f32.mrf.mxu0
        %v1132 = vadd.f32 %v419, %v1131
        %v1133 = vpop.f32.mrf.mxu0
        %v1134 = vadd.f32 %v419, %v1133
        %1135 = vmatmul.bf16.gmra.mxu0 %v866
        %v1136 = vpop.f32.mrf.mxu0
        %v1137 = vadd.f32 %v419, %v1136
        %v1138 = vpop.f32.mrf.mxu0
        %v1139 = vadd.f32 %v419, %v1138
        %1140 = vmatmul.bf16.gmra.mxu0 %v869
        %v1141 = vpop.f32.mrf.mxu0
        %v1142 = vadd.f32 %v419, %v1141
        %v1143 = vpop.f32.mrf.mxu0
        %v1144 = vadd.f32 %v419, %v1143
        %1145 = vmatmul.bf16.gmra.mxu0 %v872
        %v1146 = vpop.f32.mrf.mxu0
        %v1147 = vadd.f32 %v419, %v1146
        %v1148 = vpop.f32.mrf.mxu0
        %v1149 = vadd.f32 %v419, %v1148
        %1150 = vmatmul.bf16.gmra.mxu0 %v875
        %v1151 = vpop.f32.mrf.mxu0
        %v1152 = vadd.f32 %v419, %v1151
        %v1153 = vpop.f32.mrf.mxu0
        %v1154 = vadd.f32 %v419, %v1153
        %1155 = vmatmul.bf16.gmra.mxu0 %v878
        %v1156 = vpop.f32.mrf.mxu0
        %v1157 = vadd.f32 %v419, %v1156
        %v1158 = vpop.f32.mrf.mxu0
        %v1159 = vadd.f32 %v419, %v1158
        %1160 = vmatmul.bf16.gmra.mxu0 %v881
        %v1161 = vpop.f32.mrf.mxu0
        %v1162 = vadd.f32 %v419, %v1161
        %v1163 = vpop.f32.mrf.mxu0
        %v1164 = vadd.f32 %v419, %v1163
        %1165 = vmatmul.bf16.gmra.mxu0 %v884
        %v1166 = vpop.f32.mrf.mxu0
        %v1167 = vadd.f32 %v419, %v1166
        %v1168 = vpop.f32.mrf.mxu0
        %v1169 = vadd.f32 %v419, %v1168
        %1170 = vmatmul.bf16.gmra.mxu0 %v887
        %v1171 = vpop.f32.mrf.mxu0
        %v1172 = vadd.f32 %v419, %v1171
        %v1173 = vpop.f32.mrf.mxu0
        %v1174 = vadd.f32 %v419, %v1173
        %1175 = vmatmul.bf16.gmra.mxu0 %v890
        %v1176 = vpop.f32.mrf.mxu0
        %v1177 = vadd.f32 %v419, %v1176
        %v1178 = vpop.f32.mrf.mxu0
        %v1179 = vadd.f32 %v419, %v1178
        %1180 = vmatmul.bf16.gmra.mxu0 %v893
        %v1181 = vpop.f32.mrf.mxu0
        %v1182 = vadd.f32 %v419, %v1181
        %v1183 = vpop.f32.mrf.mxu0
        %v1184 = vadd.f32 %v419, %v1183
        %1185 = vmatmul.bf16.gmra.mxu0 %v896
        %v1186 = vpop.f32.mrf.mxu0
        %v1187 = vadd.f32 %v419, %v1186
        %v1188 = vpop.f32.mrf.mxu0
        %v1189 = vadd.f32 %v419, %v1188
        %1190 = vmatmul.bf16.gmra.mxu0 %v899
        %v1191 = vpop.f32.mrf.mxu0
        %v1192 = vadd.f32 %v419, %v1191
        %v1193 = vpop.f32.mrf.mxu0
        %v1194 = vadd.f32 %v419, %v1193
        %1195 = vmatmul.bf16.gmra.mxu0 %v902
        %v1196 = vpop.f32.mrf.mxu0
        %v1197 = vadd.f32 %v419, %v1196
        %v1198 = vpop.f32.mrf.mxu0
        %v1199 = vadd.f32 %v419, %v1198
        %1200 = vmatmul.bf16.gmra.mxu0 %v905
        %v1201 = vpop.f32.mrf.mxu0
        %v1202 = vadd.f32 %v419, %v1201
        %v1203 = vpop.f32.mrf.mxu0
        %v1204 = vadd.f32 %v419, %v1203
        %1205 = vmatmul.bf16.gmra.mxu0 %v908
        %v1206 = vpop.f32.mrf.mxu0
        %v1207 = vadd.f32 %v419, %v1206
        %v1208 = vpop.f32.mrf.mxu0
        %v1209 = vadd.f32 %v419, %v1208
        %1210 = vmatmul.bf16.gmra.mxu0 %v911
        %v1211 = vpop.f32.mrf.mxu0
        %v1212 = vadd.f32 %v419, %v1211
        %v1213 = vpop.f32.mrf.mxu0
        %v1214 = vadd.f32 %v419, %v1213
        %1215 = vmatmul.bf16.gmra.mxu0 %v914
        %v1216 = vpop.f32.mrf.mxu0
        %v1217 = vadd.f32 %v419, %v1216
        %v1218 = vpop.f32.mrf.mxu0
        %v1219 = vadd.f32 %v419, %v1218
        %1220 = vmatmul.bf16.gmra.mxu0 %v917
        %v1221 = vpop.f32.mrf.mxu0
        %v1222 = vadd.f32 %v419, %v1221
        %v1223 = vpop.f32.mrf.mxu0
        %v1224 = vadd.f32 %v419, %v1223
        %1225 = vmatmul.bf16.gmra.mxu0 %v920
        %v1226 = vpop.f32.mrf.mxu0
        %v1227 = vadd.f32 %v419, %v1226
        %v1228 = vpop.f32.mrf.mxu0
        %v1229 = vadd.f32 %v419, %v1228
        %1230 = vmatmul.bf16.gmra.mxu0 %v923
        %v1231 = vpop.f32.mrf.mxu0
        %v1232 = vadd.f32 %v419, %v1231
        %v1233 = vpop.f32.mrf.mxu0
        %v1234 = vadd.f32 %v419, %v1233
        %1235 = vmatmul.bf16.gmra.mxu0 %v926
        %v1236 = vpop.f32.mrf.mxu0
        %v1237 = vadd.f32 %v419, %v1236
        %v1238 = vpop.f32.mrf.mxu0
        %v1239 = vadd.f32 %v419, %v1238
        %1240 = vmatmul.bf16.gmra.mxu0 %v929
        %v1241 = vpop.f32.mrf.mxu0
        %v1242 = vadd.f32 %v419, %v1241
        %v1243 = vpop.f32.mrf.mxu0
        %v1244 = vadd.f32 %v419, %v1243
        %1245 = vmatmul.bf16.gmra.mxu0 %v932
        %v1246 = vpop.f32.mrf.mxu0
        %v1247 = vadd.f32 %v419, %v1246
        %v1248 = vpop.f32.mrf.mxu0
        %v1249 = vadd.f32 %v419, %v1248
        %1250 = vmatmul.bf16.gmra.mxu0 %v935
        %v1251 = vpop.f32.mrf.mxu0
        %v1252 = vadd.f32 %v419, %v1251
        %v1253 = vpop.f32.mrf.mxu0
        %v1254 = vadd.f32 %v419, %v1253
        %1255 = vmatmul.bf16.gmra.mxu0 %v938
        %v1256 = vpop.f32.mrf.mxu0
        %v1257 = vadd.f32 %v419, %v1256
        %v1258 = vpop.f32.mrf.mxu0
        %v1259 = vadd.f32 %v419, %v1258
        %1260 = vmatmul.bf16.gmra.mxu0 %v941
        %v1261 = vpop.f32.mrf.mxu0
        %v1262 = vadd.f32 %v419, %v1261
        %v1263 = vpop.f32.mrf.mxu0
        %v1264 = vadd.f32 %v419, %v1263
        %1265 = vmatmul.bf16.gmra.mxu0 %v944
        %v1266 = vpop.f32.mrf.mxu0
        %v1267 = vadd.f32 %v419, %v1266
        %v1268 = vpop.f32.mrf.mxu0
        %v1269 = vadd.f32 %v419, %v1268
        %1270 = vmatmul.bf16.gmra.mxu0 %v947
        %v1271 = vpop.f32.mrf.mxu0
        %v1272 = vadd.f32 %v419, %v1271
        %v1273 = vpop.f32.mrf.mxu0
        %v1274 = vadd.f32 %v419, %v1273
        %1275 = vmatmul.bf16.gmra.mxu0 %v950
        %v1276 = vpop.f32.mrf.mxu0
        %v1277 = vadd.f32 %v419, %v1276
        %v1278 = vpop.f32.mrf.mxu0
        %v1279 = vadd.f32 %v419, %v1278
        %1280 = vmatmul.bf16.gmra.mxu0 %v953
        %v1281 = vpop.f32.mrf.mxu0
        %v1282 = vadd.f32 %v419, %v1281
        %v1283 = vpop.f32.mrf.mxu0
        %v1284 = vadd.f32 %v419, %v1283
        %1285 = vdwg.mxu0
        %vm1286 = vcmp.gt.f32.partialorder %v972, 0.0
        %vm1287 = vcmp.gt.f32.partialorder %v974, 0.0
        %vm1288 = vcmp.gt.f32.partialorder %v977, 0.0
        %vm1289 = vcmp.gt.f32.partialorder %v979, 0.0
        %vm1290 = vcmp.gt.f32.partialorder %v982, 0.0
        %vm1291 = vcmp.gt.f32.partialorder %v984, 0.0
        %vm1292 = vcmp.gt.f32.partialorder %v987, 0.0
        %vm1293 = vcmp.gt.f32.partialorder %v989, 0.0
        %vm1294 = vcmp.gt.f32.partialorder %v992, 0.0
        %vm1295 = vcmp.gt.f32.partialorder %v994, 0.0
        %vm1296 = vcmp.gt.f32.partialorder %v997, 0.0
        %vm1297 = vcmp.gt.f32.partialorder %v999, 0.0
        %vm1298 = vcmp.gt.f32.partialorder %v1002, 0.0
        %vm1299 = vcmp.gt.f32.partialorder %v1004, 0.0
        %vm1300 = vcmp.gt.f32.partialorder %v1007, 0.0
        %vm1301 = vcmp.gt.f32.partialorder %v1009, 0.0
        %vm1302 = vcmp.gt.f32.partialorder %v1012, 0.0
        %vm1303 = vcmp.gt.f32.partialorder %v1014, 0.0
        %vm1304 = vcmp.gt.f32.partialorder %v1017, 0.0
        %vm1305 = vcmp.gt.f32.partialorder %v1019, 0.0
        %vm1306 = vcmp.gt.f32.partialorder %v1022, 0.0
        %vm1307 = vcmp.gt.f32.partialorder %v1024, 0.0
        %vm1308 = vcmp.gt.f32.partialorder %v1027, 0.0
        %vm1309 = vcmp.gt.f32.partialorder %v1029, 0.0
        %vm1310 = vcmp.gt.f32.partialorder %v1032, 0.0
        %vm1311 = vcmp.gt.f32.partialorder %v1034, 0.0
        %vm1312 = vcmp.gt.f32.partialorder %v1037, 0.0
        %vm1313 = vcmp.gt.f32.partialorder %v1039, 0.0
        %vm1314 = vcmp.gt.f32.partialorder %v1042, 0.0
        %vm1315 = vcmp.gt.f32.partialorder %v1044, 0.0
        %vm1316 = vcmp.gt.f32.partialorder %v1047, 0.0
        %vm1317 = vcmp.gt.f32.partialorder %v1049, 0.0
        %vm1318 = vcmp.gt.f32.partialorder %v1052, 0.0
        %vm1319 = vcmp.gt.f32.partialorder %v1054, 0.0
        %vm1320 = vcmp.gt.f32.partialorder %v1057, 0.0
        %vm1321 = vcmp.gt.f32.partialorder %v1059, 0.0
        %vm1322 = vcmp.gt.f32.partialorder %v1062, 0.0
        %vm1323 = vcmp.gt.f32.partialorder %v1064, 0.0
        %vm1324 = vcmp.gt.f32.partialorder %v1067, 0.0
        %vm1325 = vcmp.gt.f32.partialorder %v1069, 0.0
        %vm1326 = vcmp.gt.f32.partialorder %v1072, 0.0
        %vm1327 = vcmp.gt.f32.partialorder %v1074, 0.0
        %vm1328 = vcmp.gt.f32.partialorder %v1077, 0.0
        %vm1329 = vcmp.gt.f32.partialorder %v1079, 0.0
        %vm1330 = vcmp.gt.f32.partialorder %v1082, 0.0
        %vm1331 = vcmp.gt.f32.partialorder %v1084, 0.0
        %vm1332 = vcmp.gt.f32.partialorder %v1087, 0.0
        %vm1333 = vcmp.gt.f32.partialorder %v1089, 0.0
        %vm1334 = vcmp.gt.f32.partialorder %v1092, 0.0
        %vm1335 = vcmp.gt.f32.partialorder %v1094, 0.0
        %vm1336 = vcmp.gt.f32.partialorder %v1097, 0.0
        %vm1337 = vcmp.gt.f32.partialorder %v1099, 0.0
        %vm1338 = vcmp.gt.f32.partialorder %v1102, 0.0
        %vm1339 = vcmp.gt.f32.partialorder %v1104, 0.0
        %vm1340 = vcmp.gt.f32.partialorder %v1107, 0.0
        %vm1341 = vcmp.gt.f32.partialorder %v1109, 0.0
        %vm1342 = vcmp.gt.f32.partialorder %v1112, 0.0
        %vm1343 = vcmp.gt.f32.partialorder %v1114, 0.0
        %vm1344 = vcmp.gt.f32.partialorder %v1117, 0.0
        %vm1345 = vcmp.gt.f32.partialorder %v1119, 0.0
        %vm1346 = vcmp.gt.f32.partialorder %v1122, 0.0
        %vm1347 = vcmp.gt.f32.partialorder %v1124, 0.0
        %vm1348 = vcmp.gt.f32.partialorder %v1127, 0.0
        %vm1349 = vcmp.gt.f32.partialorder %v1129, 0.0
        %vm1350 = vcmp.gt.f32.partialorder %v1132, 0.0
        %vm1351 = vcmp.gt.f32.partialorder %v1134, 0.0
        %vm1352 = vcmp.gt.f32.partialorder %v1137, 0.0
        %vm1353 = vcmp.gt.f32.partialorder %v1139, 0.0
        %vm1354 = vcmp.gt.f32.partialorder %v1142, 0.0
        %vm1355 = vcmp.gt.f32.partialorder %v1144, 0.0
        %vm1356 = vcmp.gt.f32.partialorder %v1147, 0.0
        %vm1357 = vcmp.gt.f32.partialorder %v1149, 0.0
        %vm1358 = vcmp.gt.f32.partialorder %v1152, 0.0
        %vm1359 = vcmp.gt.f32.partialorder %v1154, 0.0
        %vm1360 = vcmp.gt.f32.partialorder %v1157, 0.0
        %vm1361 = vcmp.gt.f32.partialorder %v1159, 0.0
        %vm1362 = vcmp.gt.f32.partialorder %v1162, 0.0
        %vm1363 = vcmp.gt.f32.partialorder %v1164, 0.0
        %vm1364 = vcmp.gt.f32.partialorder %v1167, 0.0
        %vm1365 = vcmp.gt.f32.partialorder %v1169, 0.0
        %vm1366 = vcmp.gt.f32.partialorder %v1172, 0.0
        %vm1367 = vcmp.gt.f32.partialorder %v1174, 0.0
        %vm1368 = vcmp.gt.f32.partialorder %v1177, 0.0
        %vm1369 = vcmp.gt.f32.partialorder %v1179, 0.0
        %vm1370 = vcmp.gt.f32.partialorder %v1182, 0.0
        %vm1371 = vcmp.gt.f32.partialorder %v1184, 0.0
        %vm1372 = vcmp.gt.f32.partialorder %v1187, 0.0
        %vm1373 = vcmp.gt.f32.partialorder %v1189, 0.0
        %vm1374 = vcmp.gt.f32.partialorder %v1192, 0.0
        %vm1375 = vcmp.gt.f32.partialorder %v1194, 0.0
        %vm1376 = vcmp.gt.f32.partialorder %v1197, 0.0
        %vm1377 = vcmp.gt.f32.partialorder %v1199, 0.0
        %vm1378 = vcmp.gt.f32.partialorder %v1202, 0.0
        %vm1379 = vcmp.gt.f32.partialorder %v1204, 0.0
        %vm1380 = vcmp.gt.f32.partialorder %v1207, 0.0
        %vm1381 = vcmp.gt.f32.partialorder %v1209, 0.0
        %vm1382 = vcmp.gt.f32.partialorder %v1212, 0.0
        %vm1383 = vcmp.gt.f32.partialorder %v1214, 0.0
        %vm1384 = vcmp.gt.f32.partialorder %v1217, 0.0
        %vm1385 = vcmp.gt.f32.partialorder %v1219, 0.0
        %vm1386 = vcmp.gt.f32.partialorder %v1222, 0.0
        %vm1387 = vcmp.gt.f32.partialorder %v1224, 0.0
        %vm1388 = vcmp.gt.f32.partialorder %v1227, 0.0
        %vm1389 = vcmp.gt.f32.partialorder %v1229, 0.0
        %vm1390 = vcmp.gt.f32.partialorder %v1232, 0.0
        %vm1391 = vcmp.gt.f32.partialorder %v1234, 0.0
        %vm1392 = vcmp.gt.f32.partialorder %v1237, 0.0
        %vm1393 = vcmp.gt.f32.partialorder %v1239, 0.0
        %vm1394 = vcmp.gt.f32.partialorder %v1242, 0.0
        %vm1395 = vcmp.gt.f32.partialorder %v1244, 0.0
        %vm1396 = vcmp.gt.f32.partialorder %v1247, 0.0
        %vm1397 = vcmp.gt.f32.partialorder %v1249, 0.0
        %vm1398 = vcmp.gt.f32.partialorder %v1252, 0.0
        %vm1399 = vcmp.gt.f32.partialorder %v1254, 0.0
        %vm1400 = vcmp.gt.f32.partialorder %v1257, 0.0
        %vm1401 = vcmp.gt.f32.partialorder %v1259, 0.0
        %vm1402 = vcmp.gt.f32.partialorder %v1262, 0.0
        %vm1403 = vcmp.gt.f32.partialorder %v1264, 0.0
        %vm1404 = vcmp.gt.f32.partialorder %v1267, 0.0
        %vm1405 = vcmp.gt.f32.partialorder %v1269, 0.0
        %vm1406 = vcmp.gt.f32.partialorder %v1272, 0.0
        %vm1407 = vcmp.gt.f32.partialorder %v1274, 0.0
        %vm1408 = vcmp.gt.f32.partialorder %v1277, 0.0
        %vm1409 = vcmp.gt.f32.partialorder %v1279, 0.0
        %vm1410 = vcmp.gt.f32.partialorder %v1282, 0.0
        %vm1411 = vcmp.gt.f32.partialorder %v1284, 0.0
        %v1412 = vmin.f32 %v972, 0.0
        %v1413 = vmin.f32 %v974, 0.0
        %v1414 = vmin.f32 %v977, 0.0
        %v1415 = vmin.f32 %v979, 0.0
        %v1416 = vmin.f32 %v982, 0.0
        %v1417 = vmin.f32 %v984, 0.0
        %v1418 = vmin.f32 %v987, 0.0
        %v1419 = vmin.f32 %v989, 0.0
        %v1420 = vmin.f32 %v992, 0.0
        %v1421 = vmin.f32 %v994, 0.0
        %v1422 = vmin.f32 %v997, 0.0
        %v1423 = vmin.f32 %v999, 0.0
        %v1424 = vmin.f32 %v1002, 0.0
        %v1425 = vmin.f32 %v1004, 0.0
        %v1426 = vmin.f32 %v1007, 0.0
        %v1427 = vmin.f32 %v1009, 0.0
        %v1428 = vmin.f32 %v1012, 0.0
        %v1429 = vmin.f32 %v1014, 0.0
        %v1430 = vmin.f32 %v1017, 0.0
        %v1431 = vmin.f32 %v1019, 0.0
        %v1432 = vmin.f32 %v1022, 0.0
        %v1433 = vmin.f32 %v1024, 0.0
        %v1434 = vmin.f32 %v1027, 0.0
        %v1435 = vmin.f32 %v1029, 0.0
        %v1436 = vmin.f32 %v1032, 0.0
        %v1437 = vmin.f32 %v1034, 0.0
        %v1438 = vmin.f32 %v1037, 0.0
        %v1439 = vmin.f32 %v1039, 0.0
        %v1440 = vmin.f32 %v1042, 0.0
        %v1441 = vmin.f32 %v1044, 0.0
        %v1442 = vmin.f32 %v1047, 0.0
        %v1443 = vmin.f32 %v1049, 0.0
        %v1444 = vmin.f32 %v1052, 0.0
        %v1445 = vmin.f32 %v1054, 0.0
        %v1446 = vmin.f32 %v1057, 0.0
        %v1447 = vmin.f32 %v1059, 0.0
        %v1448 = vmin.f32 %v1062, 0.0
        %v1449 = vmin.f32 %v1064, 0.0
        %v1450 = vmin.f32 %v1067, 0.0
        %v1451 = vmin.f32 %v1069, 0.0
        %v1452 = vmin.f32 %v1072, 0.0
        %v1453 = vmin.f32 %v1074, 0.0
        %v1454 = vmin.f32 %v1077, 0.0
        %v1455 = vmin.f32 %v1079, 0.0
        %v1456 = vmin.f32 %v1082, 0.0
        %v1457 = vmin.f32 %v1084, 0.0
        %v1458 = vmin.f32 %v1087, 0.0
        %v1459 = vmin.f32 %v1089, 0.0
        %v1460 = vmin.f32 %v1092, 0.0
        %v1461 = vmin.f32 %v1094, 0.0
        %v1462 = vmin.f32 %v1097, 0.0
        %v1463 = vmin.f32 %v1099, 0.0
        %v1464 = vmin.f32 %v1102, 0.0
        %v1465 = vmin.f32 %v1104, 0.0
        %v1466 = vmin.f32 %v1107, 0.0
        %v1467 = vmin.f32 %v1109, 0.0
        %v1468 = vmin.f32 %v1112, 0.0
        %v1469 = vmin.f32 %v1114, 0.0
        %v1470 = vmin.f32 %v1117, 0.0
        %v1471 = vmin.f32 %v1119, 0.0
        %v1472 = vmin.f32 %v1122, 0.0
        %v1473 = vmin.f32 %v1124, 0.0
        %v1474 = vmin.f32 %v1127, 0.0
        %v1475 = vmin.f32 %v1129, 0.0
        %v1476 = vmin.f32 %v1132, 0.0
        %v1477 = vmin.f32 %v1134, 0.0
        %v1478 = vmin.f32 %v1137, 0.0
        %v1479 = vmin.f32 %v1139, 0.0
        %v1480 = vmin.f32 %v1142, 0.0
        %v1481 = vmin.f32 %v1144, 0.0
        %v1482 = vmin.f32 %v1147, 0.0
        %v1483 = vmin.f32 %v1149, 0.0
        %v1484 = vmin.f32 %v1152, 0.0
        %v1485 = vmin.f32 %v1154, 0.0
        %v1486 = vmin.f32 %v1157, 0.0
        %v1487 = vmin.f32 %v1159, 0.0
        %v1488 = vmin.f32 %v1162, 0.0
        %v1489 = vmin.f32 %v1164, 0.0
        %v1490 = vmin.f32 %v1167, 0.0
        %v1491 = vmin.f32 %v1169, 0.0
        %v1492 = vmin.f32 %v1172, 0.0
        %v1493 = vmin.f32 %v1174, 0.0
        %v1494 = vmin.f32 %v1177, 0.0
        %v1495 = vmin.f32 %v1179, 0.0
        %v1496 = vmin.f32 %v1182, 0.0
        %v1497 = vmin.f32 %v1184, 0.0
        %v1498 = vmin.f32 %v1187, 0.0
        %v1499 = vmin.f32 %v1189, 0.0
        %v1500 = vmin.f32 %v1192, 0.0
        %v1501 = vmin.f32 %v1194, 0.0
        %v1502 = vmin.f32 %v1197, 0.0
        %v1503 = vmin.f32 %v1199, 0.0
        %v1504 = vmin.f32 %v1202, 0.0
        %v1505 = vmin.f32 %v1204, 0.0
        %v1506 = vmin.f32 %v1207, 0.0
        %v1507 = vmin.f32 %v1209, 0.0
        %v1508 = vmin.f32 %v1212, 0.0
        %v1509 = vmin.f32 %v1214, 0.0
        %v1510 = vmin.f32 %v1217, 0.0
        %v1511 = vmin.f32 %v1219, 0.0
        %v1512 = vmin.f32 %v1222, 0.0
        %v1513 = vmin.f32 %v1224, 0.0
        %v1514 = vmin.f32 %v1227, 0.0
        %v1515 = vmin.f32 %v1229, 0.0
        %v1516 = vmin.f32 %v1232, 0.0
        %v1517 = vmin.f32 %v1234, 0.0
        %v1518 = vmin.f32 %v1237, 0.0
        %v1519 = vmin.f32 %v1239, 0.0
        %v1520 = vmin.f32 %v1242, 0.0
        %v1521 = vmin.f32 %v1244, 0.0
        %v1522 = vmin.f32 %v1247, 0.0
        %v1523 = vmin.f32 %v1249, 0.0
        %v1524 = vmin.f32 %v1252, 0.0
        %v1525 = vmin.f32 %v1254, 0.0
        %v1526 = vmin.f32 %v1257, 0.0
        %v1527 = vmin.f32 %v1259, 0.0
        %v1528 = vmin.f32 %v1262, 0.0
        %v1529 = vmin.f32 %v1264, 0.0
        %v1530 = vmin.f32 %v1267, 0.0
        %v1531 = vmin.f32 %v1269, 0.0
        %v1532 = vmin.f32 %v1272, 0.0
        %v1533 = vmin.f32 %v1274, 0.0
        %v1534 = vmin.f32 %v1277, 0.0
        %v1535 = vmin.f32 %v1279, 0.0
        %v1536 = vmin.f32 %v1282, 0.0
        %v1537 = vmin.f32 %v1284, 0.0
        %v1538 = vmul.f32 %v1412, 1.442695
        %v1539 = vpow.pop %v1538
        %v1540 = vmul.f32 %v1413, 1.442695
        %v1541 = vpow.pop %v1540
        %v1542 = vmul.f32 %v1414, 1.442695
        %v1543 = vpow.pop %v1542
        %v1544 = vmul.f32 %v1415, 1.442695
        %v1545 = vpow.pop %v1544
        %v1546 = vmul.f32 %v1416, 1.442695
        %v1547 = vpow.pop %v1546
        %v1548 = vmul.f32 %v1417, 1.442695
        %v1549 = vpow.pop %v1548
        %v1550 = vmul.f32 %v1418, 1.442695
        %v1551 = vpow.pop %v1550
        %v1552 = vmul.f32 %v1419, 1.442695
        %v1553 = vpow.pop %v1552
        %v1554 = vmul.f32 %v1420, 1.442695
        %v1555 = vpow.pop %v1554
        %v1556 = vmul.f32 %v1421, 1.442695
        %v1557 = vpow.pop %v1556
        %v1558 = vmul.f32 %v1422, 1.442695
        %v1559 = vpow.pop %v1558
        %v1560 = vmul.f32 %v1423, 1.442695
        %v1561 = vpow.pop %v1560
        %v1562 = vmul.f32 %v1424, 1.442695
        %v1563 = vpow.pop %v1562
        %v1564 = vmul.f32 %v1425, 1.442695
        %v1565 = vpow.pop %v1564
        %v1566 = vmul.f32 %v1426, 1.442695
        %v1567 = vpow.pop %v1566
        %v1568 = vmul.f32 %v1427, 1.442695
        %v1569 = vpow.pop %v1568
        %v1570 = vmul.f32 %v1428, 1.442695
        %v1571 = vpow.pop %v1570
        %v1572 = vmul.f32 %v1429, 1.442695
        %v1573 = vpow.pop %v1572
        %v1574 = vmul.f32 %v1430, 1.442695
        %v1575 = vpow.pop %v1574
        %v1576 = vmul.f32 %v1431, 1.442695
        %v1577 = vpow.pop %v1576
        %v1578 = vmul.f32 %v1432, 1.442695
        %v1579 = vpow.pop %v1578
        %v1580 = vmul.f32 %v1433, 1.442695
        %v1581 = vpow.pop %v1580
        %v1582 = vmul.f32 %v1434, 1.442695
        %v1583 = vpow.pop %v1582
        %v1584 = vmul.f32 %v1435, 1.442695
        %v1585 = vpow.pop %v1584
        %v1586 = vmul.f32 %v1436, 1.442695
        %v1587 = vpow.pop %v1586
        %v1588 = vmul.f32 %v1437, 1.442695
        %v1589 = vpow.pop %v1588
        %v1590 = vmul.f32 %v1438, 1.442695
        %v1591 = vpow.pop %v1590
        %v1592 = vmul.f32 %v1439, 1.442695
        %v1593 = vpow.pop %v1592
        %v1594 = vmul.f32 %v1440, 1.442695
        %v1595 = vpow.pop %v1594
        %v1596 = vmul.f32 %v1441, 1.442695
        %v1597 = vpow.pop %v1596
        %v1598 = vmul.f32 %v1442, 1.442695
        %v1599 = vpow.pop %v1598
        %v1600 = vmul.f32 %v1443, 1.442695
        %v1601 = vpow.pop %v1600
        %v1602 = vmul.f32 %v1444, 1.442695
        %v1603 = vpow.pop %v1602
        %v1604 = vmul.f32 %v1445, 1.442695
        %v1605 = vpow.pop %v1604
        %v1606 = vmul.f32 %v1446, 1.442695
        %v1607 = vpow.pop %v1606
        %v1608 = vmul.f32 %v1447, 1.442695
        %v1609 = vpow.pop %v1608
        %v1610 = vmul.f32 %v1448, 1.442695
        %v1611 = vpow.pop %v1610
        %v1612 = vmul.f32 %v1449, 1.442695
        %v1613 = vpow.pop %v1612
        %v1614 = vmul.f32 %v1450, 1.442695
        %v1615 = vpow.pop %v1614
        %v1616 = vmul.f32 %v1451, 1.442695
        %v1617 = vpow.pop %v1616
        %v1618 = vmul.f32 %v1452, 1.442695
        %v1619 = vpow.pop %v1618
        %v1620 = vmul.f32 %v1453, 1.442695
        %v1621 = vpow.pop %v1620
        %v1622 = vmul.f32 %v1454, 1.442695
        %v1623 = vpow.pop %v1622
        %v1624 = vmul.f32 %v1455, 1.442695
        %v1625 = vpow.pop %v1624
        %v1626 = vmul.f32 %v1456, 1.442695
        %v1627 = vpow.pop %v1626
        %v1628 = vmul.f32 %v1457, 1.442695
        %v1629 = vpow.pop %v1628
        %v1630 = vmul.f32 %v1458, 1.442695
        %v1631 = vpow.pop %v1630
        %v1632 = vmul.f32 %v1459, 1.442695
        %v1633 = vpow.pop %v1632
        %v1634 = vmul.f32 %v1460, 1.442695
        %v1635 = vpow.pop %v1634
        %v1636 = vmul.f32 %v1461, 1.442695
        %v1637 = vpow.pop %v1636
        %v1638 = vmul.f32 %v1462, 1.442695
        %v1639 = vpow.pop %v1638
        %v1640 = vmul.f32 %v1463, 1.442695
        %v1641 = vpow.pop %v1640
        %v1642 = vmul.f32 %v1464, 1.442695
        %v1643 = vpow.pop %v1642
        %v1644 = vmul.f32 %v1465, 1.442695
        %v1645 = vpow.pop %v1644
        %v1646 = vmul.f32 %v1466, 1.442695
        %v1647 = vpow.pop %v1646
        %v1648 = vmul.f32 %v1467, 1.442695
        %v1649 = vpow.pop %v1648
        %v1650 = vmul.f32 %v1468, 1.442695
        %v1651 = vpow.pop %v1650
        %v1652 = vmul.f32 %v1469, 1.442695
        %v1653 = vpow.pop %v1652
        %v1654 = vmul.f32 %v1470, 1.442695
        %v1655 = vpow.pop %v1654
        %v1656 = vmul.f32 %v1471, 1.442695
        %v1657 = vpow.pop %v1656
        %v1658 = vmul.f32 %v1472, 1.442695
        %v1659 = vpow.pop %v1658
        %v1660 = vmul.f32 %v1473, 1.442695
        %v1661 = vpow.pop %v1660
        %v1662 = vmul.f32 %v1474, 1.442695
        %v1663 = vpow.pop %v1662
        %v1664 = vmul.f32 %v1475, 1.442695
        %v1665 = vpow.pop %v1664
        %v1666 = vmul.f32 %v1476, 1.442695
        %v1667 = vpow.pop %v1666
        %v1668 = vmul.f32 %v1477, 1.442695
        %v1669 = vpow.pop %v1668
        %v1670 = vmul.f32 %v1478, 1.442695
        %v1671 = vpow.pop %v1670
        %v1672 = vmul.f32 %v1479, 1.442695
        %v1673 = vpow.pop %v1672
        %v1674 = vmul.f32 %v1480, 1.442695
        %v1675 = vpow.pop %v1674
        %v1676 = vmul.f32 %v1481, 1.442695
        %v1677 = vpow.pop %v1676
        %v1678 = vmul.f32 %v1482, 1.442695
        %v1679 = vpow.pop %v1678
        %v1680 = vmul.f32 %v1483, 1.442695
        %v1681 = vpow.pop %v1680
        %v1682 = vmul.f32 %v1484, 1.442695
        %v1683 = vpow.pop %v1682
        %v1684 = vmul.f32 %v1485, 1.442695
        %v1685 = vpow.pop %v1684
        %v1686 = vmul.f32 %v1486, 1.442695
        %v1687 = vpow.pop %v1686
        %v1688 = vmul.f32 %v1487, 1.442695
        %v1689 = vpow.pop %v1688
        %v1690 = vmul.f32 %v1488, 1.442695
        %v1691 = vpow.pop %v1690
        %v1692 = vmul.f32 %v1489, 1.442695
        %v1693 = vpow.pop %v1692
        %v1694 = vmul.f32 %v1490, 1.442695
        %v1695 = vpow.pop %v1694
        %v1696 = vmul.f32 %v1491, 1.442695
        %v1697 = vpow.pop %v1696
        %v1698 = vmul.f32 %v1492, 1.442695
        %v1699 = vpow.pop %v1698
        %v1700 = vmul.f32 %v1493, 1.442695
        %v1701 = vpow.pop %v1700
        %v1702 = vmul.f32 %v1494, 1.442695
        %v1703 = vpow.pop %v1702
        %v1704 = vmul.f32 %v1495, 1.442695
        %v1705 = vpow.pop %v1704
        %v1706 = vmul.f32 %v1496, 1.442695
        %v1707 = vpow.pop %v1706
        %v1708 = vmul.f32 %v1497, 1.442695
        %v1709 = vpow.pop %v1708
        %v1710 = vmul.f32 %v1498, 1.442695
        %v1711 = vpow.pop %v1710
        %v1712 = vmul.f32 %v1499, 1.442695
        %v1713 = vpow.pop %v1712
        %v1714 = vmul.f32 %v1500, 1.442695
        %v1715 = vpow.pop %v1714
        %v1716 = vmul.f32 %v1501, 1.442695
        %v1717 = vpow.pop %v1716
        %v1718 = vmul.f32 %v1502, 1.442695
        %v1719 = vpow.pop %v1718
        %v1720 = vmul.f32 %v1503, 1.442695
        %v1721 = vpow.pop %v1720
        %v1722 = vmul.f32 %v1504, 1.442695
        %v1723 = vpow.pop %v1722
        %v1724 = vmul.f32 %v1505, 1.442695
        %v1725 = vpow.pop %v1724
        %v1726 = vmul.f32 %v1506, 1.442695
        %v1727 = vpow.pop %v1726
        %v1728 = vmul.f32 %v1507, 1.442695
        %v1729 = vpow.pop %v1728
        %v1730 = vmul.f32 %v1508, 1.442695
        %v1731 = vpow.pop %v1730
        %v1732 = vmul.f32 %v1509, 1.442695
        %v1733 = vpow.pop %v1732
        %v1734 = vmul.f32 %v1510, 1.442695
        %v1735 = vpow.pop %v1734
        %v1736 = vmul.f32 %v1511, 1.442695
        %v1737 = vpow.pop %v1736
        %v1738 = vmul.f32 %v1512, 1.442695
        %v1739 = vpow.pop %v1738
        %v1740 = vmul.f32 %v1513, 1.442695
        %v1741 = vpow.pop %v1740
        %v1742 = vmul.f32 %v1514, 1.442695
        %v1743 = vpow.pop %v1742
        %v1744 = vmul.f32 %v1515, 1.442695
        %v1745 = vpow.pop %v1744
        %v1746 = vmul.f32 %v1516, 1.442695
        %v1747 = vpow.pop %v1746
        %v1748 = vmul.f32 %v1517, 1.442695
        %v1749 = vpow.pop %v1748
        %v1750 = vmul.f32 %v1518, 1.442695
        %v1751 = vpow.pop %v1750
        %v1752 = vmul.f32 %v1519, 1.442695
        %v1753 = vpow.pop %v1752
        %v1754 = vmul.f32 %v1520, 1.442695
        %v1755 = vpow.pop %v1754
        %v1756 = vmul.f32 %v1521, 1.442695
        %v1757 = vpow.pop %v1756
        %v1758 = vmul.f32 %v1522, 1.442695
        %v1759 = vpow.pop %v1758
        %v1760 = vmul.f32 %v1523, 1.442695
        %v1761 = vpow.pop %v1760
        %v1762 = vmul.f32 %v1524, 1.442695
        %v1763 = vpow.pop %v1762
        %v1764 = vmul.f32 %v1525, 1.442695
        %v1765 = vpow.pop %v1764
        %v1766 = vmul.f32 %v1526, 1.442695
        %v1767 = vpow.pop %v1766
        %v1768 = vmul.f32 %v1527, 1.442695
        %v1769 = vpow.pop %v1768
        %v1770 = vmul.f32 %v1528, 1.442695
        %v1771 = vpow.pop %v1770
        %v1772 = vmul.f32 %v1529, 1.442695
        %v1773 = vpow.pop %v1772
        %v1774 = vmul.f32 %v1530, 1.442695
        %v1775 = vpow.pop %v1774
        %v1776 = vmul.f32 %v1531, 1.442695
        %v1777 = vpow.pop %v1776
        %v1778 = vmul.f32 %v1532, 1.442695
        %v1779 = vpow.pop %v1778
        %v1780 = vmul.f32 %v1533, 1.442695
        %v1781 = vpow.pop %v1780
        %v1782 = vmul.f32 %v1534, 1.442695
        %v1783 = vpow.pop %v1782
        %v1784 = vmul.f32 %v1535, 1.442695
        %v1785 = vpow.pop %v1784
        %v1786 = vmul.f32 %v1536, 1.442695
        %v1787 = vpow.pop %v1786
        %v1788 = vmul.f32 %v1537, 1.442695
        %v1789 = vpow.pop %v1788
        %v1790 = vsub.f32 %v1539, 1.0
        %v1791 = vsub.f32 %v1541, 1.0
        %v1792 = vsub.f32 %v1543, 1.0
        %v1793 = vsub.f32 %v1545, 1.0
        %v1794 = vsub.f32 %v1547, 1.0
        %v1795 = vsub.f32 %v1549, 1.0
        %v1796 = vsub.f32 %v1551, 1.0
        %v1797 = vsub.f32 %v1553, 1.0
        %v1798 = vsub.f32 %v1555, 1.0
        %v1799 = vsub.f32 %v1557, 1.0
        %v1800 = vsub.f32 %v1559, 1.0
        %v1801 = vsub.f32 %v1561, 1.0
        %v1802 = vsub.f32 %v1563, 1.0
        %v1803 = vsub.f32 %v1565, 1.0
        %v1804 = vsub.f32 %v1567, 1.0
        %v1805 = vsub.f32 %v1569, 1.0
        %v1806 = vsub.f32 %v1571, 1.0
        %v1807 = vsub.f32 %v1573, 1.0
        %v1808 = vsub.f32 %v1575, 1.0
        %v1809 = vsub.f32 %v1577, 1.0
        %v1810 = vsub.f32 %v1579, 1.0
        %v1811 = vsub.f32 %v1581, 1.0
        %v1812 = vsub.f32 %v1583, 1.0
        %v1813 = vsub.f32 %v1585, 1.0
        %v1814 = vsub.f32 %v1587, 1.0
        %v1815 = vsub.f32 %v1589, 1.0
        %v1816 = vsub.f32 %v1591, 1.0
        %v1817 = vsub.f32 %v1593, 1.0
        %v1818 = vsub.f32 %v1595, 1.0
        %v1819 = vsub.f32 %v1597, 1.0
        %v1820 = vsub.f32 %v1599, 1.0
        %v1821 = vsub.f32 %v1601, 1.0
        %v1822 = vsub.f32 %v1603, 1.0
        %v1823 = vsub.f32 %v1605, 1.0
        %v1824 = vsub.f32 %v1607, 1.0
        %v1825 = vsub.f32 %v1609, 1.0
        %v1826 = vsub.f32 %v1611, 1.0
        %v1827 = vsub.f32 %v1613, 1.0
        %v1828 = vsub.f32 %v1615, 1.0
        %v1829 = vsub.f32 %v1617, 1.0
        %v1830 = vsub.f32 %v1619, 1.0
        %v1831 = vsub.f32 %v1621, 1.0
        %v1832 = vsub.f32 %v1623, 1.0
        %v1833 = vsub.f32 %v1625, 1.0
        %v1834 = vsub.f32 %v1627, 1.0
        %v1835 = vsub.f32 %v1629, 1.0
        %v1836 = vsub.f32 %v1631, 1.0
        %v1837 = vsub.f32 %v1633, 1.0
        %v1838 = vsub.f32 %v1635, 1.0
        %v1839 = vsub.f32 %v1637, 1.0
        %v1840 = vsub.f32 %v1639, 1.0
        %v1841 = vsub.f32 %v1641, 1.0
        %v1842 = vsub.f32 %v1643, 1.0
        %v1843 = vsub.f32 %v1645, 1.0
        %v1844 = vsub.f32 %v1647, 1.0
        %v1845 = vsub.f32 %v1649, 1.0
        %v1846 = vsub.f32 %v1651, 1.0
        %v1847 = vsub.f32 %v1653, 1.0
        %v1848 = vsub.f32 %v1655, 1.0
        %v1849 = vsub.f32 %v1657, 1.0
        %v1850 = vsub.f32 %v1659, 1.0
        %v1851 = vsub.f32 %v1661, 1.0
        %v1852 = vsub.f32 %v1663, 1.0
        %v1853 = vsub.f32 %v1665, 1.0
        %v1854 = vsub.f32 %v1667, 1.0
        %v1855 = vsub.f32 %v1669, 1.0
        %v1856 = vsub.f32 %v1671, 1.0
        %v1857 = vsub.f32 %v1673, 1.0
        %v1858 = vsub.f32 %v1675, 1.0
        %v1859 = vsub.f32 %v1677, 1.0
        %v1860 = vsub.f32 %v1679, 1.0
        %v1861 = vsub.f32 %v1681, 1.0
        %v1862 = vsub.f32 %v1683, 1.0
        %v1863 = vsub.f32 %v1685, 1.0
        %v1864 = vsub.f32 %v1687, 1.0
        %v1865 = vsub.f32 %v1689, 1.0
        %v1866 = vsub.f32 %v1691, 1.0
        %v1867 = vsub.f32 %v1693, 1.0
        %v1868 = vsub.f32 %v1695, 1.0
        %v1869 = vsub.f32 %v1697, 1.0
        %v1870 = vsub.f32 %v1699, 1.0
        %v1871 = vsub.f32 %v1701, 1.0
        %v1872 = vsub.f32 %v1703, 1.0
        %v1873 = vsub.f32 %v1705, 1.0
        %v1874 = vsub.f32 %v1707, 1.0
        %v1875 = vsub.f32 %v1709, 1.0
        %v1876 = vsub.f32 %v1711, 1.0
        %v1877 = vsub.f32 %v1713, 1.0
        %v1878 = vsub.f32 %v1715, 1.0
        %v1879 = vsub.f32 %v1717, 1.0
        %v1880 = vsub.f32 %v1719, 1.0
        %v1881 = vsub.f32 %v1721, 1.0
        %v1882 = vsub.f32 %v1723, 1.0
        %v1883 = vsub.f32 %v1725, 1.0
        %v1884 = vsub.f32 %v1727, 1.0
        %v1885 = vsub.f32 %v1729, 1.0
        %v1886 = vsub.f32 %v1731, 1.0
        %v1887 = vsub.f32 %v1733, 1.0
        %v1888 = vsub.f32 %v1735, 1.0
        %v1889 = vsub.f32 %v1737, 1.0
        %v1890 = vsub.f32 %v1739, 1.0
        %v1891 = vsub.f32 %v1741, 1.0
        %v1892 = vsub.f32 %v1743, 1.0
        %v1893 = vsub.f32 %v1745, 1.0
        %v1894 = vsub.f32 %v1747, 1.0
        %v1895 = vsub.f32 %v1749, 1.0
        %v1896 = vsub.f32 %v1751, 1.0
        %v1897 = vsub.f32 %v1753, 1.0
        %v1898 = vsub.f32 %v1755, 1.0
        %v1899 = vsub.f32 %v1757, 1.0
        %v1900 = vsub.f32 %v1759, 1.0
        %v1901 = vsub.f32 %v1761, 1.0
        %v1902 = vsub.f32 %v1763, 1.0
        %v1903 = vsub.f32 %v1765, 1.0
        %v1904 = vsub.f32 %v1767, 1.0
        %v1905 = vsub.f32 %v1769, 1.0
        %v1906 = vsub.f32 %v1771, 1.0
        %v1907 = vsub.f32 %v1773, 1.0
        %v1908 = vsub.f32 %v1775, 1.0
        %v1909 = vsub.f32 %v1777, 1.0
        %v1910 = vsub.f32 %v1779, 1.0
        %v1911 = vsub.f32 %v1781, 1.0
        %v1912 = vsub.f32 %v1783, 1.0
        %v1913 = vsub.f32 %v1785, 1.0
        %v1914 = vsub.f32 %v1787, 1.0
        %v1915 = vsub.f32 %v1789, 1.0
        %v1916 = vsel %vm1286, %v972, %v1790
        %v1917 = vsel %vm1287, %v974, %v1791
        %v1918 = vsel %vm1288, %v977, %v1792
        %v1919 = vsel %vm1289, %v979, %v1793
        %v1920 = vsel %vm1290, %v982, %v1794
        %v1921 = vsel %vm1291, %v984, %v1795
        %v1922 = vsel %vm1292, %v987, %v1796
        %v1923 = vsel %vm1293, %v989, %v1797
        %v1924 = vsel %vm1294, %v992, %v1798
        %v1925 = vsel %vm1295, %v994, %v1799
        %v1926 = vsel %vm1296, %v997, %v1800
        %v1927 = vsel %vm1297, %v999, %v1801
        %v1928 = vsel %vm1298, %v1002, %v1802
        %v1929 = vsel %vm1299, %v1004, %v1803
        %v1930 = vsel %vm1300, %v1007, %v1804
        %v1931 = vsel %vm1301, %v1009, %v1805
        %v1932 = vsel %vm1302, %v1012, %v1806
        %v1933 = vsel %vm1303, %v1014, %v1807
        %v1934 = vsel %vm1304, %v1017, %v1808
        %v1935 = vsel %vm1305, %v1019, %v1809
        %v1936 = vsel %vm1306, %v1022, %v1810
        %v1937 = vsel %vm1307, %v1024, %v1811
        %v1938 = vsel %vm1308, %v1027, %v1812
        %v1939 = vsel %vm1309, %v1029, %v1813
        %v1940 = vsel %vm1310, %v1032, %v1814
        %v1941 = vsel %vm1311, %v1034, %v1815
        %v1942 = vsel %vm1312, %v1037, %v1816
        %v1943 = vsel %vm1313, %v1039, %v1817
        %v1944 = vsel %vm1314, %v1042, %v1818
        %v1945 = vsel %vm1315, %v1044, %v1819
        %v1946 = vsel %vm1316, %v1047, %v1820
        %v1947 = vsel %vm1317, %v1049, %v1821
        %v1948 = vsel %vm1318, %v1052, %v1822
        %v1949 = vsel %vm1319, %v1054, %v1823
        %v1950 = vsel %vm1320, %v1057, %v1824
        %v1951 = vsel %vm1321, %v1059, %v1825
        %v1952 = vsel %vm1322, %v1062, %v1826
        %v1953 = vsel %vm1323, %v1064, %v1827
        %v1954 = vsel %vm1324, %v1067, %v1828
        %v1955 = vsel %vm1325, %v1069, %v1829
        %v1956 = vsel %vm1326, %v1072, %v1830
        %v1957 = vsel %vm1327, %v1074, %v1831
        %v1958 = vsel %vm1328, %v1077, %v1832
        %v1959 = vsel %vm1329, %v1079, %v1833
        %v1960 = vsel %vm1330, %v1082, %v1834
        %v1961 = vsel %vm1331, %v1084, %v1835
        %v1962 = vsel %vm1332, %v1087, %v1836
        %v1963 = vsel %vm1333, %v1089, %v1837
        %v1964 = vsel %vm1334, %v1092, %v1838
        %v1965 = vsel %vm1335, %v1094, %v1839
        %v1966 = vsel %vm1336, %v1097, %v1840
        %v1967 = vsel %vm1337, %v1099, %v1841
        %v1968 = vsel %vm1338, %v1102, %v1842
        %v1969 = vsel %vm1339, %v1104, %v1843
        %v1970 = vsel %vm1340, %v1107, %v1844
        %v1971 = vsel %vm1341, %v1109, %v1845
        %v1972 = vsel %vm1342, %v1112, %v1846
        %v1973 = vsel %vm1343, %v1114, %v1847
        %v1974 = vsel %vm1344, %v1117, %v1848
        %v1975 = vsel %vm1345, %v1119, %v1849
        %v1976 = vsel %vm1346, %v1122, %v1850
        %v1977 = vsel %vm1347, %v1124, %v1851
        %v1978 = vsel %vm1348, %v1127, %v1852
        %v1979 = vsel %vm1349, %v1129, %v1853
        %v1980 = vsel %vm1350, %v1132, %v1854
        %v1981 = vsel %vm1351, %v1134, %v1855
        %v1982 = vsel %vm1352, %v1137, %v1856
        %v1983 = vsel %vm1353, %v1139, %v1857
        %v1984 = vsel %vm1354, %v1142, %v1858
        %v1985 = vsel %vm1355, %v1144, %v1859
        %v1986 = vsel %vm1356, %v1147, %v1860
        %v1987 = vsel %vm1357, %v1149, %v1861
        %v1988 = vsel %vm1358, %v1152, %v1862
        %v1989 = vsel %vm1359, %v1154, %v1863
        %v1990 = vsel %vm1360, %v1157, %v1864
        %v1991 = vsel %vm1361, %v1159, %v1865
        %v1992 = vsel %vm1362, %v1162, %v1866
        %v1993 = vsel %vm1363, %v1164, %v1867
        %v1994 = vsel %vm1364, %v1167, %v1868
        %v1995 = vsel %vm1365, %v1169, %v1869
        %v1996 = vsel %vm1366, %v1172, %v1870
        %v1997 = vsel %vm1367, %v1174, %v1871
        %v1998 = vsel %vm1368, %v1177, %v1872
        %v1999 = vsel %vm1369, %v1179, %v1873
        %v2000 = vsel %vm1370, %v1182, %v1874
        %v2001 = vsel %vm1371, %v1184, %v1875
        %v2002 = vsel %vm1372, %v1187, %v1876
        %v2003 = vsel %vm1373, %v1189, %v1877
        %v2004 = vsel %vm1374, %v1192, %v1878
        %v2005 = vsel %vm1375, %v1194, %v1879
        %v2006 = vsel %vm1376, %v1197, %v1880
        %v2007 = vsel %vm1377, %v1199, %v1881
        %v2008 = vsel %vm1378, %v1202, %v1882
        %v2009 = vsel %vm1379, %v1204, %v1883
        %v2010 = vsel %vm1380, %v1207, %v1884
        %v2011 = vsel %vm1381, %v1209, %v1885
        %v2012 = vsel %vm1382, %v1212, %v1886
        %v2013 = vsel %vm1383, %v1214, %v1887
        %v2014 = vsel %vm1384, %v1217, %v1888
        %v2015 = vsel %vm1385, %v1219, %v1889
        %v2016 = vsel %vm1386, %v1222, %v1890
        %v2017 = vsel %vm1387, %v1224, %v1891
        %v2018 = vsel %vm1388, %v1227, %v1892
        %v2019 = vsel %vm1389, %v1229, %v1893
        %v2020 = vsel %vm1390, %v1232, %v1894
        %v2021 = vsel %vm1391, %v1234, %v1895
        %v2022 = vsel %vm1392, %v1237, %v1896
        %v2023 = vsel %vm1393, %v1239, %v1897
        %v2024 = vsel %vm1394, %v1242, %v1898
        %v2025 = vsel %vm1395, %v1244, %v1899
        %v2026 = vsel %vm1396, %v1247, %v1900
        %v2027 = vsel %vm1397, %v1249, %v1901
        %v2028 = vsel %vm1398, %v1252, %v1902
        %v2029 = vsel %vm1399, %v1254, %v1903
        %v2030 = vsel %vm1400, %v1257, %v1904
        %v2031 = vsel %vm1401, %v1259, %v1905
        %v2032 = vsel %vm1402, %v1262, %v1906
        %v2033 = vsel %vm1403, %v1264, %v1907
        %v2034 = vsel %vm1404, %v1267, %v1908
        %v2035 = vsel %vm1405, %v1269, %v1909
        %v2036 = vsel %vm1406, %v1272, %v1910
        %v2037 = vsel %vm1407, %v1274, %v1911
        %v2038 = vsel %vm1408, %v1277, %v1912
        %v2039 = vsel %vm1409, %v1279, %v1913
        %v2040 = vsel %vm1410, %v1282, %v1914
        %v2041 = vsel %vm1411, %v1284, %v1915
        %v2042 = vpack.c.bf16 %v1916, %v1916
        %v2043 = vpack.c.bf16 %v1917, %v1917
        %v2044 = vpack.c.bf16 %v1918, %v1918
        %v2045 = vpack.c.bf16 %v1919, %v1919
        %v2046 = vpack.c.bf16 %v1920, %v1920
        %v2047 = vpack.c.bf16 %v1921, %v1921
        %v2048 = vpack.c.bf16 %v1922, %v1922
        %v2049 = vpack.c.bf16 %v1923, %v1923
        %v2050 = vpack.c.bf16 %v1924, %v1924
        %v2051 = vpack.c.bf16 %v1925, %v1925
        %v2052 = vpack.c.bf16 %v1926, %v1926
        %v2053 = vpack.c.bf16 %v1927, %v1927
        %v2054 = vpack.c.bf16 %v1928, %v1928
        %v2055 = vpack.c.bf16 %v1929, %v1929
        %v2056 = vpack.c.bf16 %v1930, %v1930
        %v2057 = vpack.c.bf16 %v1931, %v1931
        %v2058 = vpack.c.bf16 %v1932, %v1932
        %v2059 = vpack.c.bf16 %v1933, %v1933
        %v2060 = vpack.c.bf16 %v1934, %v1934
        %v2061 = vpack.c.bf16 %v1935, %v1935
        %v2062 = vpack.c.bf16 %v1936, %v1936
        %v2063 = vpack.c.bf16 %v1937, %v1937
        %v2064 = vpack.c.bf16 %v1938, %v1938
        %v2065 = vpack.c.bf16 %v1939, %v1939
        %v2066 = vpack.c.bf16 %v1940, %v1940
        %v2067 = vpack.c.bf16 %v1941, %v1941
        %v2068 = vpack.c.bf16 %v1942, %v1942
        %v2069 = vpack.c.bf16 %v1943, %v1943
        %v2070 = vpack.c.bf16 %v1944, %v1944
        %v2071 = vpack.c.bf16 %v1945, %v1945
        %v2072 = vpack.c.bf16 %v1946, %v1946
        %v2073 = vpack.c.bf16 %v1947, %v1947
        %v2074 = vpack.c.bf16 %v1948, %v1948
        %v2075 = vpack.c.bf16 %v1949, %v1949
        %v2076 = vpack.c.bf16 %v1950, %v1950
        %v2077 = vpack.c.bf16 %v1951, %v1951
        %v2078 = vpack.c.bf16 %v1952, %v1952
        %v2079 = vpack.c.bf16 %v1953, %v1953
        %v2080 = vpack.c.bf16 %v1954, %v1954
        %v2081 = vpack.c.bf16 %v1955, %v1955
        %v2082 = vpack.c.bf16 %v1956, %v1956
        %v2083 = vpack.c.bf16 %v1957, %v1957
        %v2084 = vpack.c.bf16 %v1958, %v1958
        %v2085 = vpack.c.bf16 %v1959, %v1959
        %v2086 = vpack.c.bf16 %v1960, %v1960
        %v2087 = vpack.c.bf16 %v1961, %v1961
        %v2088 = vpack.c.bf16 %v1962, %v1962
        %v2089 = vpack.c.bf16 %v1963, %v1963
        %v2090 = vpack.c.bf16 %v1964, %v1964
        %v2091 = vpack.c.bf16 %v1965, %v1965
        %v2092 = vpack.c.bf16 %v1966, %v1966
        %v2093 = vpack.c.bf16 %v1967, %v1967
        %v2094 = vpack.c.bf16 %v1968, %v1968
        %v2095 = vpack.c.bf16 %v1969, %v1969
        %v2096 = vpack.c.bf16 %v1970, %v1970
        %v2097 = vpack.c.bf16 %v1971, %v1971
        %v2098 = vpack.c.bf16 %v1972, %v1972
        %v2099 = vpack.c.bf16 %v1973, %v1973
        %v2100 = vpack.c.bf16 %v1974, %v1974
        %v2101 = vpack.c.bf16 %v1975, %v1975
        %v2102 = vpack.c.bf16 %v1976, %v1976
        %v2103 = vpack.c.bf16 %v1977, %v1977
        %v2104 = vpack.c.bf16 %v1978, %v1978
        %v2105 = vpack.c.bf16 %v1979, %v1979
        %v2106 = vpack.c.bf16 %v1980, %v1980
        %v2107 = vpack.c.bf16 %v1981, %v1981
        %v2108 = vpack.c.bf16 %v1982, %v1982
        %v2109 = vpack.c.bf16 %v1983, %v1983
        %v2110 = vpack.c.bf16 %v1984, %v1984
        %v2111 = vpack.c.bf16 %v1985, %v1985
        %v2112 = vpack.c.bf16 %v1986, %v1986
        %v2113 = vpack.c.bf16 %v1987, %v1987
        %v2114 = vpack.c.bf16 %v1988, %v1988
        %v2115 = vpack.c.bf16 %v1989, %v1989
        %v2116 = vpack.c.bf16 %v1990, %v1990
        %v2117 = vpack.c.bf16 %v1991, %v1991
        %v2118 = vpack.c.bf16 %v1992, %v1992
        %v2119 = vpack.c.bf16 %v1993, %v1993
        %v2120 = vpack.c.bf16 %v1994, %v1994
        %v2121 = vpack.c.bf16 %v1995, %v1995
        %v2122 = vpack.c.bf16 %v1996, %v1996
        %v2123 = vpack.c.bf16 %v1997, %v1997
        %v2124 = vpack.c.bf16 %v1998, %v1998
        %v2125 = vpack.c.bf16 %v1999, %v1999
        %v2126 = vpack.c.bf16 %v2000, %v2000
        %v2127 = vpack.c.bf16 %v2001, %v2001
        %v2128 = vpack.c.bf16 %v2002, %v2002
        %v2129 = vpack.c.bf16 %v2003, %v2003
        %v2130 = vpack.c.bf16 %v2004, %v2004
        %v2131 = vpack.c.bf16 %v2005, %v2005
        %v2132 = vpack.c.bf16 %v2006, %v2006
        %v2133 = vpack.c.bf16 %v2007, %v2007
        %v2134 = vpack.c.bf16 %v2008, %v2008
        %v2135 = vpack.c.bf16 %v2009, %v2009
        %v2136 = vpack.c.bf16 %v2010, %v2010
        %v2137 = vpack.c.bf16 %v2011, %v2011
        %v2138 = vpack.c.bf16 %v2012, %v2012
        %v2139 = vpack.c.bf16 %v2013, %v2013
        %v2140 = vpack.c.bf16 %v2014, %v2014
        %v2141 = vpack.c.bf16 %v2015, %v2015
        %v2142 = vpack.c.bf16 %v2016, %v2016
        %v2143 = vpack.c.bf16 %v2017, %v2017
        %v2144 = vpack.c.bf16 %v2018, %v2018
        %v2145 = vpack.c.bf16 %v2019, %v2019
        %v2146 = vpack.c.bf16 %v2020, %v2020
        %v2147 = vpack.c.bf16 %v2021, %v2021
        %v2148 = vpack.c.bf16 %v2022, %v2022
        %v2149 = vpack.c.bf16 %v2023, %v2023
        %v2150 = vpack.c.bf16 %v2024, %v2024
        %v2151 = vpack.c.bf16 %v2025, %v2025
        %v2152 = vpack.c.bf16 %v2026, %v2026
        %v2153 = vpack.c.bf16 %v2027, %v2027
        %v2154 = vpack.c.bf16 %v2028, %v2028
        %v2155 = vpack.c.bf16 %v2029, %v2029
        %v2156 = vpack.c.bf16 %v2030, %v2030
        %v2157 = vpack.c.bf16 %v2031, %v2031
        %v2158 = vpack.c.bf16 %v2032, %v2032
        %v2159 = vpack.c.bf16 %v2033, %v2033
        %v2160 = vpack.c.bf16 %v2034, %v2034
        %v2161 = vpack.c.bf16 %v2035, %v2035
        %v2162 = vpack.c.bf16 %v2036, %v2036
        %v2163 = vpack.c.bf16 %v2037, %v2037
        %v2164 = vpack.c.bf16 %v2038, %v2038
        %v2165 = vpack.c.bf16 %v2039, %v2039
        %v2166 = vpack.c.bf16 %v2040, %v2040
        %v2167 = vpack.c.bf16 %v2041, %v2041
        %vm2168 = vcmask 322560
        %2169 = vst.msk [vmem:[#allocation2] sm:$0xf] %vm2168, %v2042
        %2170 = vst.msk [vmem:[#allocation2 + $0x4] sm:$0xf] %vm2168, %v2043
        %2171 = vst.msk [vmem:[#allocation2 + $0x8] sm:$0xf] %vm2168, %v2044
        %2172 = vst.msk [vmem:[#allocation2 + $0xc] sm:$0xf] %vm2168, %v2045
        %2173 = vst.msk [vmem:[#allocation2 + $0x10] sm:$0xf] %vm2168, %v2046
        %2174 = vst.msk [vmem:[#allocation2 + $0x14] sm:$0xf] %vm2168, %v2047
        %2175 = vst.msk [vmem:[#allocation2 + $0x18] sm:$0xf] %vm2168, %v2048
        %2176 = vst.msk [vmem:[#allocation2 + $0x1c] sm:$0xf] %vm2168, %v2049
        %2177 = vst.msk [vmem:[#allocation2 + $0x20] sm:$0xf] %vm2168, %v2050
        %2178 = vst.msk [vmem:[#allocation2 + $0x24] sm:$0xf] %vm2168, %v2051
        %2179 = vst.msk [vmem:[#allocation2 + $0x28] sm:$0xf] %vm2168, %v2052
        %2180 = vst.msk [vmem:[#allocation2 + $0x2c] sm:$0xf] %vm2168, %v2053
        %2181 = vst.msk [vmem:[#allocation2 + $0x30] sm:$0xf] %vm2168, %v2054
        %2182 = vst.msk [vmem:[#allocation2 + $0x34] sm:$0xf] %vm2168, %v2055
        %2183 = vst.msk [vmem:[#allocation2 + $0x38] sm:$0xf] %vm2168, %v2056
        %2184 = vst.msk [vmem:[#allocation2 + $0x3c] sm:$0xf] %vm2168, %v2057
        %2185 = vst.msk [vmem:[#allocation2 + $0x40] sm:$0xf] %vm2168, %v2058
        %2186 = vst.msk [vmem:[#allocation2 + $0x44] sm:$0xf] %vm2168, %v2059
        %2187 = vst.msk [vmem:[#allocation2 + $0x48] sm:$0xf] %vm2168, %v2060
        %2188 = vst.msk [vmem:[#allocation2 + $0x4c] sm:$0xf] %vm2168, %v2061
        %2189 = vst.msk [vmem:[#allocation2 + $0x50] sm:$0xf] %vm2168, %v2062
        %2190 = vst.msk [vmem:[#allocation2 + $0x54] sm:$0xf] %vm2168, %v2063
        %2191 = vst.msk [vmem:[#allocation2 + $0x58] sm:$0xf] %vm2168, %v2064
        %2192 = vst.msk [vmem:[#allocation2 + $0x5c] sm:$0xf] %vm2168, %v2065
        %2193 = vst.msk [vmem:[#allocation2 + $0x60] sm:$0xf] %vm2168, %v2066
        %2194 = vst.msk [vmem:[#allocation2 + $0x64] sm:$0xf] %vm2168, %v2067
        %2195 = vst.msk [vmem:[#allocation2 + $0x68] sm:$0xf] %vm2168, %v2068
        %2196 = vst.msk [vmem:[#allocation2 + $0x6c] sm:$0xf] %vm2168, %v2069
        %2197 = vst.msk [vmem:[#allocation2 + $0x70] sm:$0xf] %vm2168, %v2070
        %2198 = vst.msk [vmem:[#allocation2 + $0x74] sm:$0xf] %vm2168, %v2071
        %2199 = vst.msk [vmem:[#allocation2 + $0x78] sm:$0xf] %vm2168, %v2072
        %2200 = vst.msk [vmem:[#allocation2 + $0x7c] sm:$0xf] %vm2168, %v2073
        %2201 = vst.msk [vmem:[#allocation2 + $0x80] sm:$0xf] %vm2168, %v2074
        %2202 = vst.msk [vmem:[#allocation2 + $0x84] sm:$0xf] %vm2168, %v2075
        %2203 = vst.msk [vmem:[#allocation2 + $0x88] sm:$0xf] %vm2168, %v2076
        %2204 = vst.msk [vmem:[#allocation2 + $0x8c] sm:$0xf] %vm2168, %v2077
        %2205 = vst.msk [vmem:[#allocation2 + $0x90] sm:$0xf] %vm2168, %v2078
        %2206 = vst.msk [vmem:[#allocation2 + $0x94] sm:$0xf] %vm2168, %v2079
        %2207 = vst.msk [vmem:[#allocation2 + $0x98] sm:$0xf] %vm2168, %v2080
        %2208 = vst.msk [vmem:[#allocation2 + $0x9c] sm:$0xf] %vm2168, %v2081
        %2209 = vst.msk [vmem:[#allocation2 + $0xa0] sm:$0xf] %vm2168, %v2082
        %2210 = vst.msk [vmem:[#allocation2 + $0xa4] sm:$0xf] %vm2168, %v2083
        %2211 = vst.msk [vmem:[#allocation2 + $0xa8] sm:$0xf] %vm2168, %v2084
        %2212 = vst.msk [vmem:[#allocation2 + $0xac] sm:$0xf] %vm2168, %v2085
        %2213 = vst.msk [vmem:[#allocation2 + $0xb0] sm:$0xf] %vm2168, %v2086
        %2214 = vst.msk [vmem:[#allocation2 + $0xb4] sm:$0xf] %vm2168, %v2087
        %2215 = vst.msk [vmem:[#allocation2 + $0xb8] sm:$0xf] %vm2168, %v2088
        %2216 = vst.msk [vmem:[#allocation2 + $0xbc] sm:$0xf] %vm2168, %v2089
        %2217 = vst.msk [vmem:[#allocation2 + $0xc0] sm:$0xf] %vm2168, %v2090
        %2218 = vst.msk [vmem:[#allocation2 + $0xc4] sm:$0xf] %vm2168, %v2091
        %2219 = vst.msk [vmem:[#allocation2 + $0xc8] sm:$0xf] %vm2168, %v2092
        %2220 = vst.msk [vmem:[#allocation2 + $0xcc] sm:$0xf] %vm2168, %v2093
        %2221 = vst.msk [vmem:[#allocation2 + $0xd0] sm:$0xf] %vm2168, %v2094
        %2222 = vst.msk [vmem:[#allocation2 + $0xd4] sm:$0xf] %vm2168, %v2095
        %2223 = vst.msk [vmem:[#allocation2 + $0xd8] sm:$0xf] %vm2168, %v2096
        %2224 = vst.msk [vmem:[#allocation2 + $0xdc] sm:$0xf] %vm2168, %v2097
        %2225 = vst.msk [vmem:[#allocation2 + $0xe0] sm:$0xf] %vm2168, %v2098
        %2226 = vst.msk [vmem:[#allocation2 + $0xe4] sm:$0xf] %vm2168, %v2099
        %2227 = vst.msk [vmem:[#allocation2 + $0xe8] sm:$0xf] %vm2168, %v2100
        %2228 = vst.msk [vmem:[#allocation2 + $0xec] sm:$0xf] %vm2168, %v2101
        %2229 = vst.msk [vmem:[#allocation2 + $0xf0] sm:$0xf] %vm2168, %v2102
        %2230 = vst.msk [vmem:[#allocation2 + $0xf4] sm:$0xf] %vm2168, %v2103
        %2231 = vst.msk [vmem:[#allocation2 + $0xf8] sm:$0xf] %vm2168, %v2104
        %2232 = vst.msk [vmem:[#allocation2 + $0xfc] sm:$0xf] %vm2168, %v2105
        %2233 = vst.msk [vmem:[#allocation2 + $0x100] sm:$0xf] %vm2168, %v2106
        %2234 = vst.msk [vmem:[#allocation2 + $0x104] sm:$0xf] %vm2168, %v2107
        %2235 = vst.msk [vmem:[#allocation2 + $0x108] sm:$0xf] %vm2168, %v2108
        %2236 = vst.msk [vmem:[#allocation2 + $0x10c] sm:$0xf] %vm2168, %v2109
        %2237 = vst.msk [vmem:[#allocation2 + $0x110] sm:$0xf] %vm2168, %v2110
        %2238 = vst.msk [vmem:[#allocation2 + $0x114] sm:$0xf] %vm2168, %v2111
        %2239 = vst.msk [vmem:[#allocation2 + $0x118] sm:$0xf] %vm2168, %v2112
        %2240 = vst.msk [vmem:[#allocation2 + $0x11c] sm:$0xf] %vm2168, %v2113
        %2241 = vst.msk [vmem:[#allocation2 + $0x120] sm:$0xf] %vm2168, %v2114
        %2242 = vst.msk [vmem:[#allocation2 + $0x124] sm:$0xf] %vm2168, %v2115
        %2243 = vst.msk [vmem:[#allocation2 + $0x128] sm:$0xf] %vm2168, %v2116
        %2244 = vst.msk [vmem:[#allocation2 + $0x12c] sm:$0xf] %vm2168, %v2117
        %2245 = vst.msk [vmem:[#allocation2 + $0x130] sm:$0xf] %vm2168, %v2118
        %2246 = vst.msk [vmem:[#allocation2 + $0x134] sm:$0xf] %vm2168, %v2119
        %2247 = vst.msk [vmem:[#allocation2 + $0x138] sm:$0xf] %vm2168, %v2120
        %2248 = vst.msk [vmem:[#allocation2 + $0x13c] sm:$0xf] %vm2168, %v2121
        %2249 = vst.msk [vmem:[#allocation2 + $0x140] sm:$0xf] %vm2168, %v2122
        %2250 = vst.msk [vmem:[#allocation2 + $0x144] sm:$0xf] %vm2168, %v2123
        %2251 = vst.msk [vmem:[#allocation2 + $0x148] sm:$0xf] %vm2168, %v2124
        %2252 = vst.msk [vmem:[#allocation2 + $0x14c] sm:$0xf] %vm2168, %v2125
        %2253 = vst.msk [vmem:[#allocation2 + $0x150] sm:$0xf] %vm2168, %v2126
        %2254 = vst.msk [vmem:[#allocation2 + $0x154] sm:$0xf] %vm2168, %v2127
        %2255 = vst.msk [vmem:[#allocation2 + $0x158] sm:$0xf] %vm2168, %v2128
        %2256 = vst.msk [vmem:[#allocation2 + $0x15c] sm:$0xf] %vm2168, %v2129
        %2257 = vst.msk [vmem:[#allocation2 + $0x160] sm:$0xf] %vm2168, %v2130
        %2258 = vst.msk [vmem:[#allocation2 + $0x164] sm:$0xf] %vm2168, %v2131
        %2259 = vst.msk [vmem:[#allocation2 + $0x168] sm:$0xf] %vm2168, %v2132
        %2260 = vst.msk [vmem:[#allocation2 + $0x16c] sm:$0xf] %vm2168, %v2133
        %2261 = vst.msk [vmem:[#allocation2 + $0x170] sm:$0xf] %vm2168, %v2134
        %2262 = vst.msk [vmem:[#allocation2 + $0x174] sm:$0xf] %vm2168, %v2135
        %2263 = vst.msk [vmem:[#allocation2 + $0x178] sm:$0xf] %vm2168, %v2136
        %2264 = vst.msk [vmem:[#allocation2 + $0x17c] sm:$0xf] %vm2168, %v2137
        %2265 = vst.msk [vmem:[#allocation2 + $0x180] sm:$0xf] %vm2168, %v2138
        %2266 = vst.msk [vmem:[#allocation2 + $0x184] sm:$0xf] %vm2168, %v2139
        %2267 = vst.msk [vmem:[#allocation2 + $0x188] sm:$0xf] %vm2168, %v2140
        %2268 = vst.msk [vmem:[#allocation2 + $0x18c] sm:$0xf] %vm2168, %v2141
        %2269 = vst.msk [vmem:[#allocation2 + $0x190] sm:$0xf] %vm2168, %v2142
        %2270 = vst.msk [vmem:[#allocation2 + $0x194] sm:$0xf] %vm2168, %v2143
        %2271 = vst.msk [vmem:[#allocation2 + $0x198] sm:$0xf] %vm2168, %v2144
        %2272 = vst.msk [vmem:[#allocation2 + $0x19c] sm:$0xf] %vm2168, %v2145
        %2273 = vst.msk [vmem:[#allocation2 + $0x1a0] sm:$0xf] %vm2168, %v2146
        %2274 = vst.msk [vmem:[#allocation2 + $0x1a4] sm:$0xf] %vm2168, %v2147
        %2275 = vst.msk [vmem:[#allocation2 + $0x1a8] sm:$0xf] %vm2168, %v2148
        %2276 = vst.msk [vmem:[#allocation2 + $0x1ac] sm:$0xf] %vm2168, %v2149
        %2277 = vst.msk [vmem:[#allocation2 + $0x1b0] sm:$0xf] %vm2168, %v2150
        %2278 = vst.msk [vmem:[#allocation2 + $0x1b4] sm:$0xf] %vm2168, %v2151
        %2279 = vst.msk [vmem:[#allocation2 + $0x1b8] sm:$0xf] %vm2168, %v2152
        %2280 = vst.msk [vmem:[#allocation2 + $0x1bc] sm:$0xf] %vm2168, %v2153
        %2281 = vst.msk [vmem:[#allocation2 + $0x1c0] sm:$0xf] %vm2168, %v2154
        %2282 = vst.msk [vmem:[#allocation2 + $0x1c4] sm:$0xf] %vm2168, %v2155
        %2283 = vst.msk [vmem:[#allocation2 + $0x1c8] sm:$0xf] %vm2168, %v2156
        %2284 = vst.msk [vmem:[#allocation2 + $0x1cc] sm:$0xf] %vm2168, %v2157
        %2285 = vst.msk [vmem:[#allocation2 + $0x1d0] sm:$0xf] %vm2168, %v2158
        %2286 = vst.msk [vmem:[#allocation2 + $0x1d4] sm:$0xf] %vm2168, %v2159
        %2287 = vst.msk [vmem:[#allocation2 + $0x1d8] sm:$0xf] %vm2168, %v2160
        %2288 = vst.msk [vmem:[#allocation2 + $0x1dc] sm:$0xf] %vm2168, %v2161
        %2289 = vst.msk [vmem:[#allocation2 + $0x1e0] sm:$0xf] %vm2168, %v2162
        %2290 = vst.msk [vmem:[#allocation2 + $0x1e4] sm:$0xf] %vm2168, %v2163
        %2291 = vst.msk [vmem:[#allocation2 + $0x1e8] sm:$0xf] %vm2168, %v2164
        %2292 = vst.msk [vmem:[#allocation2 + $0x1ec] sm:$0xf] %vm2168, %v2165
        %2293 = vst.msk [vmem:[#allocation2 + $0x1f0] sm:$0xf] %vm2168, %v2166
        %2294 = vst.msk [vmem:[#allocation2 + $0x1f4] sm:$0xf] %vm2168, %v2167
        %v2295 = vld [vmem:[#allocation2] sm:$0xf]
        %v2296 = vld [vmem:[#allocation2 + $0x4] sm:$0xf]
        %2297 = vst.msk [vmem:[#allocation3] sm:$0xf] %vm2168, %v2295
        %2298 = vst.msk [vmem:[#allocation3 + $0x50] sm:$0xf] %vm2168, %v2296
        %v2299 = vld [vmem:[#allocation2 + $0x8] sm:$0xf]
        %v2300 = vld [vmem:[#allocation2 + $0xc] sm:$0xf]
        %2303 = vrot.lane.b32.xlu0 %v2299, 40
        %v2304 = vpop.permute.xlu0 %2303
        %2305 = vrot.lane.b32.xlu0 %v2300, 40
        %v2306 = vpop.permute.xlu0 %2305
        %vm2309 = vcmask 650560
        %2310 = vst.msk [vmem:[#allocation3] sm:$0xf] %vm2309, %v2304
        %2311 = vst.msk [vmem:[#allocation3 + $0x50] sm:$0xf] %vm2309, %v2306
        %v2312 = vld [vmem:[#allocation2 + $0x10] sm:$0xf]
        %v2313 = vld [vmem:[#allocation2 + $0x14] sm:$0xf]
        %2316 = vrot.lane.b32.xlu0 %v2312, 80
        %v2317 = vpop.permute.xlu0 %2316
        %2318 = vrot.lane.b32.xlu0 %v2313, 80
        %v2319 = vpop.permute.xlu0 %2318
        %vm2322 = vcmask 978560
        %2323 = vst.msk [vmem:[#allocation3] sm:$0xf] %vm2322, %v2317
        %2324 = vst.msk [vmem:[#allocation3 + $0x50] sm:$0xf] %vm2322, %v2319
        %v2325 = vld [vmem:[#allocation2 + $0x18] sm:$0xf]
        %v2326 = vld [vmem:[#allocation2 + $0x1c] sm:$0xf]
        %2329 = vrot.lane.b32.xlu0 %v2325, 120
        %v2330 = vpop.permute.xlu0 %2329
        %2331 = vrot.lane.b32.xlu0 %v2326, 120
        %v2332 = vpop.permute.xlu0 %2331
        %v2333 = vrot.slane %v2330, 4
        %v2334 = vrot.slane %v2332, 4
        %vm2335 = vcmask 982016
        %v2336 = vsel %vm2335, %v2333, %v2330
        %v2337 = vsel %vm2335, %v2334, %v2332
        %vm2340 = vcmask 1044416
        %vm2341 = vcmask 261124
        %vm2342 = vmor %vm2341, %vm2340
        %2343 = vst.msk [vmem:[#allocation3] sm:$0xff] %vm2342, %v2336
        %2344 = vst.msk [vmem:[#allocation3 + $0x50] sm:$0xff] %vm2342, %v2337
        %v2345 = vld [vmem:[#allocation2 + $0x20] sm:$0xf]
        %v2346 = vld [vmem:[#allocation2 + $0x24] sm:$0xf]
        %2349 = vrot.lane.b32.xlu0 %v2345, 32
        %v2350 = vpop.permute.xlu0 %2349
        %2351 = vrot.lane.b32.xlu0 %v2346, 32
        %v2352 = vpop.permute.xlu0 %2351
        %vm2355 = vcmask 584960
        %2356 = vst.msk [vmem:[#allocation3 + $0x4] sm:$0xf] %vm2355, %v2350
        %2357 = vst.msk [vmem:[#allocation3 + $0x54] sm:$0xf] %vm2355, %v2352
        %v2358 = vld [vmem:[#allocation2 + $0x28] sm:$0xf]
        %v2359 = vld [vmem:[#allocation2 + $0x2c] sm:$0xf]
        %2362 = vrot.lane.b32.xlu0 %v2358, 72
        %v2363 = vpop.permute.xlu0 %2362
        %2364 = vrot.lane.b32.xlu0 %v2359, 72
        %v2365 = vpop.permute.xlu0 %2364
        %vm2368 = vcmask 912960
        %2369 = vst.msk [vmem:[#allocation3 + $0x4] sm:$0xf] %vm2368, %v2363
        %2370 = vst.msk [vmem:[#allocation3 + $0x54] sm:$0xf] %vm2368, %v2365
        %v2371 = vld [vmem:[#allocation2 + $0x30] sm:$0xf]
        %v2372 = vld [vmem:[#allocation2 + $0x34] sm:$0xf]
        %2375 = vrot.lane.b32.xlu0 %v2371, 112
        %v2376 = vpop.permute.xlu0 %2375
        %2377 = vrot.lane.b32.xlu0 %v2372, 112
        %v2378 = vpop.permute.xlu0 %2377
        %v2379 = vrot.slane %v2376, 4
        %v2380 = vrot.slane %v2378, 4
        %vm2381 = vcmask 916480
        %v2382 = vsel %vm2381, %v2379, %v2376
        %v2383 = vsel %vm2381, %v2380, %v2378
        %vm2386 = vcmask 1044352
        %vm2387 = vcmask 195588
        %vm2388 = vmor %vm2387, %vm2386
        %2389 = vst.msk [vmem:[#allocation3 + $0x4] sm:$0xff] %vm2388, %v2382
        %2390 = vst.msk [vmem:[#allocation3 + $0x54] sm:$0xff] %vm2388, %v2383
        %v2391 = vld [vmem:[#allocation2 + $0x38] sm:$0xf]
        %v2392 = vld [vmem:[#allocation2 + $0x3c] sm:$0xf]
        %2395 = vrot.lane.b32.xlu0 %v2391, 24
        %v2396 = vpop.permute.xlu0 %2395
        %2397 = vrot.lane.b32.xlu0 %v2392, 24
        %v2398 = vpop.permute.xlu0 %2397
        %vm2401 = vcmask 519360
        %2402 = vst.msk [vmem:[#allocation3 + $0x8] sm:$0xf] %vm2401, %v2396
        %2403 = vst.msk [vmem:[#allocation3 + $0x58] sm:$0xf] %vm2401, %v2398
        %v2404 = vld [vmem:[#allocation2 + $0x40] sm:$0xf]
        %v2405 = vld [vmem:[#allocation2 + $0x44] sm:$0xf]
        %2408 = vrot.lane.b32.xlu0 %v2404, 64
        %v2409 = vpop.permute.xlu0 %2408
        %2410 = vrot.lane.b32.xlu0 %v2405, 64
        %v2411 = vpop.permute.xlu0 %2410
        %vm2414 = vcmask 847360
        %2415 = vst.msk [vmem:[#allocation3 + $0x8] sm:$0xf] %vm2414, %v2409
        %2416 = vst.msk [vmem:[#allocation3 + $0x58] sm:$0xf] %vm2414, %v2411
        %v2417 = vld [vmem:[#allocation2 + $0x48] sm:$0xf]
        %v2418 = vld [vmem:[#allocation2 + $0x4c] sm:$0xf]
        %2421 = vrot.lane.b32.xlu0 %v2417, 104
        %v2422 = vpop.permute.xlu0 %2421
        %2423 = vrot.lane.b32.xlu0 %v2418, 104
        %v2424 = vpop.permute.xlu0 %2423
        %v2425 = vrot.slane %v2422, 4
        %v2426 = vrot.slane %v2424, 4
        %vm2427 = vcmask 850944
        %v2428 = vsel %vm2427, %v2425, %v2422
        %v2429 = vsel %vm2427, %v2426, %v2424
        %vm2432 = vcmask 1044288
        %vm2433 = vcmask 130052
        %vm2434 = vmor %vm2433, %vm2432
        %2435 = vst.msk [vmem:[#allocation3 + $0x8] sm:$0xff] %vm2434, %v2428
        %2436 = vst.msk [vmem:[#allocation3 + $0x58] sm:$0xff] %vm2434, %v2429
        %v2437 = vld [vmem:[#allocation2 + $0x50] sm:$0xf]
        %v2438 = vld [vmem:[#allocation2 + $0x54] sm:$0xf]
        %2441 = vrot.lane.b32.xlu0 %v2437, 16
        %v2442 = vpop.permute.xlu0 %2441
        %2443 = vrot.lane.b32.xlu0 %v2438, 16
        %v2444 = vpop.permute.xlu0 %2443
        %vm2447 = vcmask 453760
        %2448 = vst.msk [vmem:[#allocation3 + $0xc] sm:$0xf] %vm2447, %v2442
        %2449 = vst.msk [vmem:[#allocation3 + $0x5c] sm:$0xf] %vm2447, %v2444
        %v2450 = vld [vmem:[#allocation2 + $0x58] sm:$0xf]
        %v2451 = vld [vmem:[#allocation2 + $0x5c] sm:$0xf]
        %2454 = vrot.lane.b32.xlu0 %v2450, 56
        %v2455 = vpop.permute.xlu0 %2454
        %2456 = vrot.lane.b32.xlu0 %v2451, 56
        %v2457 = vpop.permute.xlu0 %2456
        %vm2460 = vcmask 781760
        %2461 = vst.msk [vmem:[#allocation3 + $0xc] sm:$0xf] %vm2460, %v2455
        %2462 = vst.msk [vmem:[#allocation3 + $0x5c] sm:$0xf] %vm2460, %v2457
        %v2463 = vld [vmem:[#allocation2 + $0x60] sm:$0xf]
        %v2464 = vld [vmem:[#allocation2 + $0x64] sm:$0xf]
        %2467 = vrot.lane.b32.xlu0 %v2463, 96
        %v2468 = vpop.permute.xlu0 %2467
        %2469 = vrot.lane.b32.xlu0 %v2464, 96
        %v2470 = vpop.permute.xlu0 %2469
        %v2471 = vrot.slane %v2468, 4
        %v2472 = vrot.slane %v2470, 4
        %vm2473 = vcmask 785408
        %v2474 = vsel %vm2473, %v2471, %v2468
        %v2475 = vsel %vm2473, %v2472, %v2470
        %vm2478 = vcmask 1044224
        %vm2479 = vcmask 64516
        %vm2480 = vmor %vm2479, %vm2478
        %2481 = vst.msk [vmem:[#allocation3 + $0xc] sm:$0xff] %vm2480, %v2474
        %2482 = vst.msk [vmem:[#allocation3 + $0x5c] sm:$0xff] %vm2480, %v2475
        %v2483 = vld [vmem:[#allocation2 + $0x68] sm:$0xf]
        %v2484 = vld [vmem:[#allocation2 + $0x6c] sm:$0xf]
        %2487 = vrot.lane.b32.xlu0 %v2483, 8
        %v2488 = vpop.permute.xlu0 %2487
        %2489 = vrot.lane.b32.xlu0 %v2484, 8
        %v2490 = vpop.permute.xlu0 %2489
        %vm2493 = vcmask 388160
        %2494 = vst.msk [vmem:[#allocation3 + $0x10] sm:$0xf] %vm2493, %v2488
        %2495 = vst.msk [vmem:[#allocation3 + $0x60] sm:$0xf] %vm2493, %v2490
        %v2496 = vld [vmem:[#allocation2 + $0x70] sm:$0xf]
        %v2497 = vld [vmem:[#allocation2 + $0x74] sm:$0xf]
        %2500 = vrot.lane.b32.xlu0 %v2496, 48
        %v2501 = vpop.permute.xlu0 %2500
        %2502 = vrot.lane.b32.xlu0 %v2497, 48
        %v2503 = vpop.permute.xlu0 %2502
        %vm2506 = vcmask 716160
        %2507 = vst.msk [vmem:[#allocation3 + $0x10] sm:$0xf] %vm2506, %v2501
        %2508 = vst.msk [vmem:[#allocation3 + $0x60] sm:$0xf] %vm2506, %v2503
        %v2509 = vld [vmem:[#allocation2 + $0x78] sm:$0xf]
        %v2510 = vld [vmem:[#allocation2 + $0x7c] sm:$0xf]
        %2513 = vrot.lane.b32.xlu0 %v2509, 88
        %v2514 = vpop.permute.xlu0 %2513
        %2515 = vrot.lane.b32.xlu0 %v2510, 88
        %v2516 = vpop.permute.xlu0 %2515
        %vm2519 = vcmask 1044160
        %2520 = vst.msk [vmem:[#allocation3 + $0x10] sm:$0xf] %vm2519, %v2514
        %2521 = vst.msk [vmem:[#allocation3 + $0x60] sm:$0xf] %vm2519, %v2516
        %v2522 = vld [vmem:[#allocation2 + $0x80] sm:$0xf]
        %v2523 = vld [vmem:[#allocation2 + $0x84] sm:$0xf]
        %2524 = vst.msk [vmem:[#allocation3 + $0x14] sm:$0xf] %vm2168, %v2522
        %2525 = vst.msk [vmem:[#allocation3 + $0x64] sm:$0xf] %vm2168, %v2523
        %v2526 = vld [vmem:[#allocation2 + $0x88] sm:$0xf]
        %v2527 = vld [vmem:[#allocation2 + $0x8c] sm:$0xf]
        %2530 = vrot.lane.b32.xlu0 %v2526, 40
        %v2531 = vpop.permute.xlu0 %2530
        %2532 = vrot.lane.b32.xlu0 %v2527, 40
        %v2533 = vpop.permute.xlu0 %2532
        %2536 = vst.msk [vmem:[#allocation3 + $0x14] sm:$0xf] %vm2309, %v2531
        %2537 = vst.msk [vmem:[#allocation3 + $0x64] sm:$0xf] %vm2309, %v2533
        %v2538 = vld [vmem:[#allocation2 + $0x90] sm:$0xf]
        %v2539 = vld [vmem:[#allocation2 + $0x94] sm:$0xf]
        %2542 = vrot.lane.b32.xlu0 %v2538, 80
        %v2543 = vpop.permute.xlu0 %2542
        %2544 = vrot.lane.b32.xlu0 %v2539, 80
        %v2545 = vpop.permute.xlu0 %2544
        %2548 = vst.msk [vmem:[#allocation3 + $0x14] sm:$0xf] %vm2322, %v2543
        %2549 = vst.msk [vmem:[#allocation3 + $0x64] sm:$0xf] %vm2322, %v2545
        %v2550 = vld [vmem:[#allocation2 + $0x98] sm:$0xf]
        %v2551 = vld [vmem:[#allocation2 + $0x9c] sm:$0xf]
        %2554 = vrot.lane.b32.xlu0 %v2550, 120
        %v2555 = vpop.permute.xlu0 %2554
        %2556 = vrot.lane.b32.xlu0 %v2551, 120
        %v2557 = vpop.permute.xlu0 %2556
        %v2558 = vrot.slane %v2555, 4
        %v2559 = vrot.slane %v2557, 4
        %v2560 = vsel %vm2335, %v2558, %v2555
        %v2561 = vsel %vm2335, %v2559, %v2557
        %2564 = vst.msk [vmem:[#allocation3 + $0x14] sm:$0xff] %vm2342, %v2560
        %2565 = vst.msk [vmem:[#allocation3 + $0x64] sm:$0xff] %vm2342, %v2561
        %v2566 = vld [vmem:[#allocation2 + $0xa0] sm:$0xf]
        %v2567 = vld [vmem:[#allocation2 + $0xa4] sm:$0xf]
        %2570 = vrot.lane.b32.xlu0 %v2566, 32
        %v2571 = vpop.permute.xlu0 %2570
        %2572 = vrot.lane.b32.xlu0 %v2567, 32
        %v2573 = vpop.permute.xlu0 %2572
        %2576 = vst.msk [vmem:[#allocation3 + $0x18] sm:$0xf] %vm2355, %v2571
        %2577 = vst.msk [vmem:[#allocation3 + $0x68] sm:$0xf] %vm2355, %v2573
        %v2578 = vld [vmem:[#allocation2 + $0xa8] sm:$0xf]
        %v2579 = vld [vmem:[#allocation2 + $0xac] sm:$0xf]
        %2582 = vrot.lane.b32.xlu0 %v2578, 72
        %v2583 = vpop.permute.xlu0 %2582
        %2584 = vrot.lane.b32.xlu0 %v2579, 72
        %v2585 = vpop.permute.xlu0 %2584
        %2588 = vst.msk [vmem:[#allocation3 + $0x18] sm:$0xf] %vm2368, %v2583
        %2589 = vst.msk [vmem:[#allocation3 + $0x68] sm:$0xf] %vm2368, %v2585
        %v2590 = vld [vmem:[#allocation2 + $0xb0] sm:$0xf]
        %v2591 = vld [vmem:[#allocation2 + $0xb4] sm:$0xf]
        %2594 = vrot.lane.b32.xlu0 %v2590, 112
        %v2595 = vpop.permute.xlu0 %2594
        %2596 = vrot.lane.b32.xlu0 %v2591, 112
        %v2597 = vpop.permute.xlu0 %2596
        %v2598 = vrot.slane %v2595, 4
        %v2599 = vrot.slane %v2597, 4
        %v2600 = vsel %vm2381, %v2598, %v2595
        %v2601 = vsel %vm2381, %v2599, %v2597
        %2604 = vst.msk [vmem:[#allocation3 + $0x18] sm:$0xff] %vm2388, %v2600
        %2605 = vst.msk [vmem:[#allocation3 + $0x68] sm:$0xff] %vm2388, %v2601
        %v2606 = vld [vmem:[#allocation2 + $0xb8] sm:$0xf]
        %v2607 = vld [vmem:[#allocation2 + $0xbc] sm:$0xf]
        %2610 = vrot.lane.b32.xlu0 %v2606, 24
        %v2611 = vpop.permute.xlu0 %2610
        %2612 = vrot.lane.b32.xlu0 %v2607, 24
        %v2613 = vpop.permute.xlu0 %2612
        %2616 = vst.msk [vmem:[#allocation3 + $0x1c] sm:$0xf] %vm2401, %v2611
        %2617 = vst.msk [vmem:[#allocation3 + $0x6c] sm:$0xf] %vm2401, %v2613
        %v2618 = vld [vmem:[#allocation2 + $0xc0] sm:$0xf]
        %v2619 = vld [vmem:[#allocation2 + $0xc4] sm:$0xf]
        %2622 = vrot.lane.b32.xlu0 %v2618, 64
        %v2623 = vpop.permute.xlu0 %2622
        %2624 = vrot.lane.b32.xlu0 %v2619, 64
        %v2625 = vpop.permute.xlu0 %2624
        %2628 = vst.msk [vmem:[#allocation3 + $0x1c] sm:$0xf] %vm2414, %v2623
        %2629 = vst.msk [vmem:[#allocation3 + $0x6c] sm:$0xf] %vm2414, %v2625
        %v2630 = vld [vmem:[#allocation2 + $0xc8] sm:$0xf]
        %v2631 = vld [vmem:[#allocation2 + $0xcc] sm:$0xf]
        %2634 = vrot.lane.b32.xlu0 %v2630, 104
        %v2635 = vpop.permute.xlu0 %2634
        %2636 = vrot.lane.b32.xlu0 %v2631, 104
        %v2637 = vpop.permute.xlu0 %2636
        %v2638 = vrot.slane %v2635, 4
        %v2639 = vrot.slane %v2637, 4
        %v2640 = vsel %vm2427, %v2638, %v2635
        %v2641 = vsel %vm2427, %v2639, %v2637
        %2644 = vst.msk [vmem:[#allocation3 + $0x1c] sm:$0xff] %vm2434, %v2640
        %2645 = vst.msk [vmem:[#allocation3 + $0x6c] sm:$0xff] %vm2434, %v2641
        %v2646 = vld [vmem:[#allocation2 + $0xd0] sm:$0xf]
        %v2647 = vld [vmem:[#allocation2 + $0xd4] sm:$0xf]
        %2650 = vrot.lane.b32.xlu0 %v2646, 16
        %v2651 = vpop.permute.xlu0 %2650
        %2652 = vrot.lane.b32.xlu0 %v2647, 16
        %v2653 = vpop.permute.xlu0 %2652
        %2656 = vst.msk [vmem:[#allocation3 + $0x20] sm:$0xf] %vm2447, %v2651
        %2657 = vst.msk [vmem:[#allocation3 + $0x70] sm:$0xf] %vm2447, %v2653
        %v2658 = vld [vmem:[#allocation2 + $0xd8] sm:$0xf]
        %v2659 = vld [vmem:[#allocation2 + $0xdc] sm:$0xf]
        %2662 = vrot.lane.b32.xlu0 %v2658, 56
        %v2663 = vpop.permute.xlu0 %2662
        %2664 = vrot.lane.b32.xlu0 %v2659, 56
        %v2665 = vpop.permute.xlu0 %2664
        %2668 = vst.msk [vmem:[#allocation3 + $0x20] sm:$0xf] %vm2460, %v2663
        %2669 = vst.msk [vmem:[#allocation3 + $0x70] sm:$0xf] %vm2460, %v2665
        %v2670 = vld [vmem:[#allocation2 + $0xe0] sm:$0xf]
        %v2671 = vld [vmem:[#allocation2 + $0xe4] sm:$0xf]
        %2674 = vrot.lane.b32.xlu0 %v2670, 96
        %v2675 = vpop.permute.xlu0 %2674
        %2676 = vrot.lane.b32.xlu0 %v2671, 96
        %v2677 = vpop.permute.xlu0 %2676
        %v2678 = vrot.slane %v2675, 4
        %v2679 = vrot.slane %v2677, 4
        %v2680 = vsel %vm2473, %v2678, %v2675
        %v2681 = vsel %vm2473, %v2679, %v2677
        %2684 = vst.msk [vmem:[#allocation3 + $0x20] sm:$0xff] %vm2480, %v2680
        %2685 = vst.msk [vmem:[#allocation3 + $0x70] sm:$0xff] %vm2480, %v2681
        %v2686 = vld [vmem:[#allocation2 + $0xe8] sm:$0xf]
        %v2687 = vld [vmem:[#allocation2 + $0xec] sm:$0xf]
        %2690 = vrot.lane.b32.xlu0 %v2686, 8
        %v2691 = vpop.permute.xlu0 %2690
        %2692 = vrot.lane.b32.xlu0 %v2687, 8
        %v2693 = vpop.permute.xlu0 %2692
        %2696 = vst.msk [vmem:[#allocation3 + $0x24] sm:$0xf] %vm2493, %v2691
        %2697 = vst.msk [vmem:[#allocation3 + $0x74] sm:$0xf] %vm2493, %v2693
        %v2698 = vld [vmem:[#allocation2 + $0xf0] sm:$0xf]
        %v2699 = vld [vmem:[#allocation2 + $0xf4] sm:$0xf]
        %2702 = vrot.lane.b32.xlu0 %v2698, 48
        %v2703 = vpop.permute.xlu0 %2702
        %2704 = vrot.lane.b32.xlu0 %v2699, 48
        %v2705 = vpop.permute.xlu0 %2704
        %2708 = vst.msk [vmem:[#allocation3 + $0x24] sm:$0xf] %vm2506, %v2703
        %2709 = vst.msk [vmem:[#allocation3 + $0x74] sm:$0xf] %vm2506, %v2705
        %v2710 = vld [vmem:[#allocation2 + $0xf8] sm:$0xf]
        %v2711 = vld [vmem:[#allocation2 + $0xfc] sm:$0xf]
        %2714 = vrot.lane.b32.xlu0 %v2710, 88
        %v2715 = vpop.permute.xlu0 %2714
        %2716 = vrot.lane.b32.xlu0 %v2711, 88
        %v2717 = vpop.permute.xlu0 %2716
        %2720 = vst.msk [vmem:[#allocation3 + $0x24] sm:$0xf] %vm2519, %v2715
        %2721 = vst.msk [vmem:[#allocation3 + $0x74] sm:$0xf] %vm2519, %v2717
        %v2722 = vld [vmem:[#allocation2 + $0x100] sm:$0xf]
        %v2723 = vld [vmem:[#allocation2 + $0x104] sm:$0xf]
        %2724 = vst.msk [vmem:[#allocation3 + $0x28] sm:$0xf] %vm2168, %v2722
        %2725 = vst.msk [vmem:[#allocation3 + $0x78] sm:$0xf] %vm2168, %v2723
        %v2726 = vld [vmem:[#allocation2 + $0x108] sm:$0xf]
        %v2727 = vld [vmem:[#allocation2 + $0x10c] sm:$0xf]
        %2730 = vrot.lane.b32.xlu0 %v2726, 40
        %v2731 = vpop.permute.xlu0 %2730
        %2732 = vrot.lane.b32.xlu0 %v2727, 40
        %v2733 = vpop.permute.xlu0 %2732
        %2736 = vst.msk [vmem:[#allocation3 + $0x28] sm:$0xf] %vm2309, %v2731
        %2737 = vst.msk [vmem:[#allocation3 + $0x78] sm:$0xf] %vm2309, %v2733
        %v2738 = vld [vmem:[#allocation2 + $0x110] sm:$0xf]
        %v2739 = vld [vmem:[#allocation2 + $0x114] sm:$0xf]
        %2742 = vrot.lane.b32.xlu0 %v2738, 80
        %v2743 = vpop.permute.xlu0 %2742
        %2744 = vrot.lane.b32.xlu0 %v2739, 80
        %v2745 = vpop.permute.xlu0 %2744
        %2748 = vst.msk [vmem:[#allocation3 + $0x28] sm:$0xf] %vm2322, %v2743
        %2749 = vst.msk [vmem:[#allocation3 + $0x78] sm:$0xf] %vm2322, %v2745
        %v2750 = vld [vmem:[#allocation2 + $0x118] sm:$0xf]
        %v2751 = vld [vmem:[#allocation2 + $0x11c] sm:$0xf]
        %2754 = vrot.lane.b32.xlu0 %v2750, 120
        %v2755 = vpop.permute.xlu0 %2754
        %2756 = vrot.lane.b32.xlu0 %v2751, 120
        %v2757 = vpop.permute.xlu0 %2756
        %v2758 = vrot.slane %v2755, 4
        %v2759 = vrot.slane %v2757, 4
        %v2760 = vsel %vm2335, %v2758, %v2755
        %v2761 = vsel %vm2335, %v2759, %v2757
        %2764 = vst.msk [vmem:[#allocation3 + $0x28] sm:$0xff] %vm2342, %v2760
        %2765 = vst.msk [vmem:[#allocation3 + $0x78] sm:$0xff] %vm2342, %v2761
        %v2766 = vld [vmem:[#allocation2 + $0x120] sm:$0xf]
        %v2767 = vld [vmem:[#allocation2 + $0x124] sm:$0xf]
        %2770 = vrot.lane.b32.xlu0 %v2766, 32
        %v2771 = vpop.permute.xlu0 %2770
        %2772 = vrot.lane.b32.xlu0 %v2767, 32
        %v2773 = vpop.permute.xlu0 %2772
        %2776 = vst.msk [vmem:[#allocation3 + $0x2c] sm:$0xf] %vm2355, %v2771
        %2777 = vst.msk [vmem:[#allocation3 + $0x7c] sm:$0xf] %vm2355, %v2773
        %v2778 = vld [vmem:[#allocation2 + $0x128] sm:$0xf]
        %v2779 = vld [vmem:[#allocation2 + $0x12c] sm:$0xf]
        %2782 = vrot.lane.b32.xlu0 %v2778, 72
        %v2783 = vpop.permute.xlu0 %2782
        %2784 = vrot.lane.b32.xlu0 %v2779, 72
        %v2785 = vpop.permute.xlu0 %2784
        %2788 = vst.msk [vmem:[#allocation3 + $0x2c] sm:$0xf] %vm2368, %v2783
        %2789 = vst.msk [vmem:[#allocation3 + $0x7c] sm:$0xf] %vm2368, %v2785
        %v2790 = vld [vmem:[#allocation2 + $0x130] sm:$0xf]
        %v2791 = vld [vmem:[#allocation2 + $0x134] sm:$0xf]
        %2794 = vrot.lane.b32.xlu0 %v2790, 112
        %v2795 = vpop.permute.xlu0 %2794
        %2796 = vrot.lane.b32.xlu0 %v2791, 112
        %v2797 = vpop.permute.xlu0 %2796
        %v2798 = vrot.slane %v2795, 4
        %v2799 = vrot.slane %v2797, 4
        %v2800 = vsel %vm2381, %v2798, %v2795
        %v2801 = vsel %vm2381, %v2799, %v2797
        %2804 = vst.msk [vmem:[#allocation3 + $0x2c] sm:$0xff] %vm2388, %v2800
        %2805 = vst.msk [vmem:[#allocation3 + $0x7c] sm:$0xff] %vm2388, %v2801
        %v2806 = vld [vmem:[#allocation2 + $0x138] sm:$0xf]
        %v2807 = vld [vmem:[#allocation2 + $0x13c] sm:$0xf]
        %2810 = vrot.lane.b32.xlu0 %v2806, 24
        %v2811 = vpop.permute.xlu0 %2810
        %2812 = vrot.lane.b32.xlu0 %v2807, 24
        %v2813 = vpop.permute.xlu0 %2812
        %2816 = vst.msk [vmem:[#allocation3 + $0x30] sm:$0xf] %vm2401, %v2811
        %2817 = vst.msk [vmem:[#allocation3 + $0x80] sm:$0xf] %vm2401, %v2813
        %v2818 = vld [vmem:[#allocation2 + $0x140] sm:$0xf]
        %v2819 = vld [vmem:[#allocation2 + $0x144] sm:$0xf]
        %2822 = vrot.lane.b32.xlu0 %v2818, 64
        %v2823 = vpop.permute.xlu0 %2822
        %2824 = vrot.lane.b32.xlu0 %v2819, 64
        %v2825 = vpop.permute.xlu0 %2824
        %2828 = vst.msk [vmem:[#allocation3 + $0x30] sm:$0xf] %vm2414, %v2823
        %2829 = vst.msk [vmem:[#allocation3 + $0x80] sm:$0xf] %vm2414, %v2825
        %v2830 = vld [vmem:[#allocation2 + $0x148] sm:$0xf]
        %v2831 = vld [vmem:[#allocation2 + $0x14c] sm:$0xf]
        %2834 = vrot.lane.b32.xlu0 %v2830, 104
        %v2835 = vpop.permute.xlu0 %2834
        %2836 = vrot.lane.b32.xlu0 %v2831, 104
        %v2837 = vpop.permute.xlu0 %2836
        %v2838 = vrot.slane %v2835, 4
        %v2839 = vrot.slane %v2837, 4
        %v2840 = vsel %vm2427, %v2838, %v2835
        %v2841 = vsel %vm2427, %v2839, %v2837
        %2844 = vst.msk [vmem:[#allocation3 + $0x30] sm:$0xff] %vm2434, %v2840
        %2845 = vst.msk [vmem:[#allocation3 + $0x80] sm:$0xff] %vm2434, %v2841
        %v2846 = vld [vmem:[#allocation2 + $0x150] sm:$0xf]
        %v2847 = vld [vmem:[#allocation2 + $0x154] sm:$0xf]
        %2850 = vrot.lane.b32.xlu0 %v2846, 16
        %v2851 = vpop.permute.xlu0 %2850
        %2852 = vrot.lane.b32.xlu0 %v2847, 16
        %v2853 = vpop.permute.xlu0 %2852
        %2856 = vst.msk [vmem:[#allocation3 + $0x34] sm:$0xf] %vm2447, %v2851
        %2857 = vst.msk [vmem:[#allocation3 + $0x84] sm:$0xf] %vm2447, %v2853
        %v2858 = vld [vmem:[#allocation2 + $0x158] sm:$0xf]
        %v2859 = vld [vmem:[#allocation2 + $0x15c] sm:$0xf]
        %2862 = vrot.lane.b32.xlu0 %v2858, 56
        %v2863 = vpop.permute.xlu0 %2862
        %2864 = vrot.lane.b32.xlu0 %v2859, 56
        %v2865 = vpop.permute.xlu0 %2864
        %2868 = vst.msk [vmem:[#allocation3 + $0x34] sm:$0xf] %vm2460, %v2863
        %2869 = vst.msk [vmem:[#allocation3 + $0x84] sm:$0xf] %vm2460, %v2865
        %v2870 = vld [vmem:[#allocation2 + $0x160] sm:$0xf]
        %v2871 = vld [vmem:[#allocation2 + $0x164] sm:$0xf]
        %2874 = vrot.lane.b32.xlu0 %v2870, 96
        %v2875 = vpop.permute.xlu0 %2874
        %2876 = vrot.lane.b32.xlu0 %v2871, 96
        %v2877 = vpop.permute.xlu0 %2876
        %v2878 = vrot.slane %v2875, 4
        %v2879 = vrot.slane %v2877, 4
        %v2880 = vsel %vm2473, %v2878, %v2875
        %v2881 = vsel %vm2473, %v2879, %v2877
        %2884 = vst.msk [vmem:[#allocation3 + $0x34] sm:$0xff] %vm2480, %v2880
        %2885 = vst.msk [vmem:[#allocation3 + $0x84] sm:$0xff] %vm2480, %v2881
        %v2886 = vld [vmem:[#allocation2 + $0x168] sm:$0xf]
        %v2887 = vld [vmem:[#allocation2 + $0x16c] sm:$0xf]
        %2890 = vrot.lane.b32.xlu0 %v2886, 8
        %v2891 = vpop.permute.xlu0 %2890
        %2892 = vrot.lane.b32.xlu0 %v2887, 8
        %v2893 = vpop.permute.xlu0 %2892
        %2896 = vst.msk [vmem:[#allocation3 + $0x38] sm:$0xf] %vm2493, %v2891
        %2897 = vst.msk [vmem:[#allocation3 + $0x88] sm:$0xf] %vm2493, %v2893
        %v2898 = vld [vmem:[#allocation2 + $0x170] sm:$0xf]
        %v2899 = vld [vmem:[#allocation2 + $0x174] sm:$0xf]
        %2902 = vrot.lane.b32.xlu0 %v2898, 48
        %v2903 = vpop.permute.xlu0 %2902
        %2904 = vrot.lane.b32.xlu0 %v2899, 48
        %v2905 = vpop.permute.xlu0 %2904
        %2908 = vst.msk [vmem:[#allocation3 + $0x38] sm:$0xf] %vm2506, %v2903
        %2909 = vst.msk [vmem:[#allocation3 + $0x88] sm:$0xf] %vm2506, %v2905
        %v2910 = vld [vmem:[#allocation2 + $0x178] sm:$0xf]
        %v2911 = vld [vmem:[#allocation2 + $0x17c] sm:$0xf]
        %2914 = vrot.lane.b32.xlu0 %v2910, 88
        %v2915 = vpop.permute.xlu0 %2914
        %2916 = vrot.lane.b32.xlu0 %v2911, 88
        %v2917 = vpop.permute.xlu0 %2916
        %2920 = vst.msk [vmem:[#allocation3 + $0x38] sm:$0xf] %vm2519, %v2915
        %2921 = vst.msk [vmem:[#allocation3 + $0x88] sm:$0xf] %vm2519, %v2917
        %v2922 = vld [vmem:[#allocation2 + $0x180] sm:$0xf]
        %v2923 = vld [vmem:[#allocation2 + $0x184] sm:$0xf]
        %2924 = vst.msk [vmem:[#allocation3 + $0x3c] sm:$0xf] %vm2168, %v2922
        %2925 = vst.msk [vmem:[#allocation3 + $0x8c] sm:$0xf] %vm2168, %v2923
        %v2926 = vld [vmem:[#allocation2 + $0x188] sm:$0xf]
        %v2927 = vld [vmem:[#allocation2 + $0x18c] sm:$0xf]
        %2930 = vrot.lane.b32.xlu0 %v2926, 40
        %v2931 = vpop.permute.xlu0 %2930
        %2932 = vrot.lane.b32.xlu0 %v2927, 40
        %v2933 = vpop.permute.xlu0 %2932
        %2936 = vst.msk [vmem:[#allocation3 + $0x3c] sm:$0xf] %vm2309, %v2931
        %2937 = vst.msk [vmem:[#allocation3 + $0x8c] sm:$0xf] %vm2309, %v2933
        %v2938 = vld [vmem:[#allocation2 + $0x190] sm:$0xf]
        %v2939 = vld [vmem:[#allocation2 + $0x194] sm:$0xf]
        %2942 = vrot.lane.b32.xlu0 %v2938, 80
        %v2943 = vpop.permute.xlu0 %2942
        %2944 = vrot.lane.b32.xlu0 %v2939, 80
        %v2945 = vpop.permute.xlu0 %2944
        %2948 = vst.msk [vmem:[#allocation3 + $0x3c] sm:$0xf] %vm2322, %v2943
        %2949 = vst.msk [vmem:[#allocation3 + $0x8c] sm:$0xf] %vm2322, %v2945
        %v2950 = vld [vmem:[#allocation2 + $0x198] sm:$0xf]
        %v2951 = vld [vmem:[#allocation2 + $0x19c] sm:$0xf]
        %2954 = vrot.lane.b32.xlu0 %v2950, 120
        %v2955 = vpop.permute.xlu0 %2954
        %2956 = vrot.lane.b32.xlu0 %v2951, 120
        %v2957 = vpop.permute.xlu0 %2956
        %v2958 = vrot.slane %v2955, 4
        %v2959 = vrot.slane %v2957, 4
        %v2960 = vsel %vm2335, %v2958, %v2955
        %v2961 = vsel %vm2335, %v2959, %v2957
        %2964 = vst.msk [vmem:[#allocation3 + $0x3c] sm:$0xff] %vm2342, %v2960
        %2965 = vst.msk [vmem:[#allocation3 + $0x8c] sm:$0xff] %vm2342, %v2961
        %v2966 = vld [vmem:[#allocation2 + $0x1a0] sm:$0xf]
        %v2967 = vld [vmem:[#allocation2 + $0x1a4] sm:$0xf]
        %2970 = vrot.lane.b32.xlu0 %v2966, 32
        %v2971 = vpop.permute.xlu0 %2970
        %2972 = vrot.lane.b32.xlu0 %v2967, 32
        %v2973 = vpop.permute.xlu0 %2972
        %2976 = vst.msk [vmem:[#allocation3 + $0x40] sm:$0xf] %vm2355, %v2971
        %2977 = vst.msk [vmem:[#allocation3 + $0x90] sm:$0xf] %vm2355, %v2973
        %v2978 = vld [vmem:[#allocation2 + $0x1a8] sm:$0xf]
        %v2979 = vld [vmem:[#allocation2 + $0x1ac] sm:$0xf]
        %2982 = vrot.lane.b32.xlu0 %v2978, 72
        %v2983 = vpop.permute.xlu0 %2982
        %2984 = vrot.lane.b32.xlu0 %v2979, 72
        %v2985 = vpop.permute.xlu0 %2984
        %2988 = vst.msk [vmem:[#allocation3 + $0x40] sm:$0xf] %vm2368, %v2983
        %2989 = vst.msk [vmem:[#allocation3 + $0x90] sm:$0xf] %vm2368, %v2985
        %v2990 = vld [vmem:[#allocation2 + $0x1b0] sm:$0xf]
        %v2991 = vld [vmem:[#allocation2 + $0x1b4] sm:$0xf]
        %2994 = vrot.lane.b32.xlu0 %v2990, 112
        %v2995 = vpop.permute.xlu0 %2994
        %2996 = vrot.lane.b32.xlu0 %v2991, 112
        %v2997 = vpop.permute.xlu0 %2996
        %v2998 = vrot.slane %v2995, 4
        %v2999 = vrot.slane %v2997, 4
        %v3000 = vsel %vm2381, %v2998, %v2995
        %v3001 = vsel %vm2381, %v2999, %v2997
        %3004 = vst.msk [vmem:[#allocation3 + $0x40] sm:$0xff] %vm2388, %v3000
        %3005 = vst.msk [vmem:[#allocation3 + $0x90] sm:$0xff] %vm2388, %v3001
        %v3006 = vld [vmem:[#allocation2 + $0x1b8] sm:$0xf]
        %v3007 = vld [vmem:[#allocation2 + $0x1bc] sm:$0xf]
        %3010 = vrot.lane.b32.xlu0 %v3006, 24
        %v3011 = vpop.permute.xlu0 %3010
        %3012 = vrot.lane.b32.xlu0 %v3007, 24
        %v3013 = vpop.permute.xlu0 %3012
        %3016 = vst.msk [vmem:[#allocation3 + $0x44] sm:$0xf] %vm2401, %v3011
        %3017 = vst.msk [vmem:[#allocation3 + $0x94] sm:$0xf] %vm2401, %v3013
        %v3018 = vld [vmem:[#allocation2 + $0x1c0] sm:$0xf]
        %v3019 = vld [vmem:[#allocation2 + $0x1c4] sm:$0xf]
        %3022 = vrot.lane.b32.xlu0 %v3018, 64
        %v3023 = vpop.permute.xlu0 %3022
        %3024 = vrot.lane.b32.xlu0 %v3019, 64
        %v3025 = vpop.permute.xlu0 %3024
        %3028 = vst.msk [vmem:[#allocation3 + $0x44] sm:$0xf] %vm2414, %v3023
        %3029 = vst.msk [vmem:[#allocation3 + $0x94] sm:$0xf] %vm2414, %v3025
        %v3030 = vld [vmem:[#allocation2 + $0x1c8] sm:$0xf]
        %v3031 = vld [vmem:[#allocation2 + $0x1cc] sm:$0xf]
        %3034 = vrot.lane.b32.xlu0 %v3030, 104
        %v3035 = vpop.permute.xlu0 %3034
        %3036 = vrot.lane.b32.xlu0 %v3031, 104
        %v3037 = vpop.permute.xlu0 %3036
        %v3038 = vrot.slane %v3035, 4
        %v3039 = vrot.slane %v3037, 4
        %v3040 = vsel %vm2427, %v3038, %v3035
        %v3041 = vsel %vm2427, %v3039, %v3037
        %3044 = vst.msk [vmem:[#allocation3 + $0x44] sm:$0xff] %vm2434, %v3040
        %3045 = vst.msk [vmem:[#allocation3 + $0x94] sm:$0xff] %vm2434, %v3041
        %v3046 = vld [vmem:[#allocation2 + $0x1d0] sm:$0xf]
        %v3047 = vld [vmem:[#allocation2 + $0x1d4] sm:$0xf]
        %3050 = vrot.lane.b32.xlu0 %v3046, 16
        %v3051 = vpop.permute.xlu0 %3050
        %3052 = vrot.lane.b32.xlu0 %v3047, 16
        %v3053 = vpop.permute.xlu0 %3052
        %3056 = vst.msk [vmem:[#allocation3 + $0x48] sm:$0xf] %vm2447, %v3051
        %3057 = vst.msk [vmem:[#allocation3 + $0x98] sm:$0xf] %vm2447, %v3053
        %v3058 = vld [vmem:[#allocation2 + $0x1d8] sm:$0xf]
        %v3059 = vld [vmem:[#allocation2 + $0x1dc] sm:$0xf]
        %3062 = vrot.lane.b32.xlu0 %v3058, 56
        %v3063 = vpop.permute.xlu0 %3062
        %3064 = vrot.lane.b32.xlu0 %v3059, 56
        %v3065 = vpop.permute.xlu0 %3064
        %3068 = vst.msk [vmem:[#allocation3 + $0x48] sm:$0xf] %vm2460, %v3063
        %3069 = vst.msk [vmem:[#allocation3 + $0x98] sm:$0xf] %vm2460, %v3065
        %v3070 = vld [vmem:[#allocation2 + $0x1e0] sm:$0xf]
        %v3071 = vld [vmem:[#allocation2 + $0x1e4] sm:$0xf]
        %3074 = vrot.lane.b32.xlu0 %v3070, 96
        %v3075 = vpop.permute.xlu0 %3074
        %3076 = vrot.lane.b32.xlu0 %v3071, 96
        %v3077 = vpop.permute.xlu0 %3076
        %v3078 = vrot.slane %v3075, 4
        %v3079 = vrot.slane %v3077, 4
        %v3080 = vsel %vm2473, %v3078, %v3075
        %v3081 = vsel %vm2473, %v3079, %v3077
        %3084 = vst.msk [vmem:[#allocation3 + $0x48] sm:$0xff] %vm2480, %v3080
        %3085 = vst.msk [vmem:[#allocation3 + $0x98] sm:$0xff] %vm2480, %v3081
        %v3086 = vld [vmem:[#allocation2 + $0x1e8] sm:$0xf]
        %v3087 = vld [vmem:[#allocation2 + $0x1ec] sm:$0xf]
        %3090 = vrot.lane.b32.xlu0 %v3086, 8
        %v3091 = vpop.permute.xlu0 %3090
        %3092 = vrot.lane.b32.xlu0 %v3087, 8
        %v3093 = vpop.permute.xlu0 %3092
        %3096 = vst.msk [vmem:[#allocation3 + $0x4c] sm:$0xf] %vm2493, %v3091
        %3097 = vst.msk [vmem:[#allocation3 + $0x9c] sm:$0xf] %vm2493, %v3093
        %v3098 = vld [vmem:[#allocation2 + $0x1f0] sm:$0xf]
        %v3099 = vld [vmem:[#allocation2 + $0x1f4] sm:$0xf]
        %3102 = vrot.lane.b32.xlu0 %v3098, 48
        %v3103 = vpop.permute.xlu0 %3102
        %3104 = vrot.lane.b32.xlu0 %v3099, 48
        %v3105 = vpop.permute.xlu0 %3104
        %3108 = vst.msk [vmem:[#allocation3 + $0x4c] sm:$0xf] %vm2506, %v3103
        %3109 = vst.msk [vmem:[#allocation3 + $0x9c] sm:$0xf] %vm2506, %v3105
        %v3110 = vld [vmem:[#allocation3] sm:$0xff]
        %v3111 = vld [vmem:[#allocation3 + $0x8] sm:$0xff]
        %v3112 = vld [vmem:[#allocation3 + $0x10] sm:$0xff]
        %v3113 = vld [vmem:[#allocation3 + $0x18] sm:$0xff]
        %v3114 = vld [vmem:[#allocation3 + $0x20] sm:$0xff]
        %v3115 = vld [vmem:[#allocation3 + $0x28] sm:$0xff]
        %v3116 = vld [vmem:[#allocation3 + $0x30] sm:$0xff]
        %v3117 = vld [vmem:[#allocation3 + $0x38] sm:$0xff]
        %v3118 = vld [vmem:[#allocation3 + $0x40] sm:$0xff]
        %v3119 = vld [vmem:[#allocation3 + $0x48] sm:$0xff]
        %v3120 = vld [vmem:[#allocation3 + $0x50] sm:$0xff]
        %v3121 = vld [vmem:[#allocation3 + $0x58] sm:$0xff]
        %v3122 = vld [vmem:[#allocation3 + $0x60] sm:$0xff]
        %v3123 = vld [vmem:[#allocation3 + $0x68] sm:$0xff]
        %v3124 = vld [vmem:[#allocation3 + $0x70] sm:$0xff]
        %v3125 = vld [vmem:[#allocation3 + $0x78] sm:$0xff]
        %v3126 = vld [vmem:[#allocation3 + $0x80] sm:$0xff]
        %v3127 = vld [vmem:[#allocation3 + $0x88] sm:$0xff]
        %v3128 = vld [vmem:[#allocation3 + $0x90] sm:$0xff]
        %v3129 = vld [vmem:[#allocation3 + $0x98] sm:$0xff]
        %v3130 = vld [vmem:[%s3] sm:$0xf]
        %v3131 = vld [vmem:[%s3 + $0x4] sm:$0xf]
        %v3132 = vld [vmem:[%s3 + $0x8] sm:$0xf]
        %v3133 = vld [vmem:[%s3 + $0xc] sm:$0xf]
        %v3134 = vld [vmem:[%s3 + $0x10] sm:$0xf]
        %v3135 = vld [vmem:[%s3 + $0x14] sm:$0xf]
        %v3136 = vld [vmem:[%s3 + $0x18] sm:$0xf]
        %v3137 = vld [vmem:[%s3 + $0x1c] sm:$0xf]
        %v3138 = vld [vmem:[%s3 + $0x20] sm:$0xf]
        %v3139 = vld [vmem:[%s3 + $0x24] sm:$0xf]
        %v3140 = vld [vmem:[%s3 + $0x28] sm:$0xf]
        %v3141 = vld [vmem:[%s3 + $0x2c] sm:$0xf]
        %v3142 = vld [vmem:[%s3 + $0x30] sm:$0xf]
        %v3143 = vld [vmem:[%s3 + $0x34] sm:$0xf]
        %v3144 = vld [vmem:[%s3 + $0x38] sm:$0xf]
        %v3145 = vld [vmem:[%s3 + $0x3c] sm:$0xf]
        %v3146 = vld [vmem:[%s3 + $0x40] sm:$0xf]
        %v3147 = vld [vmem:[%s3 + $0x44] sm:$0xf]
        %v3148 = vld [vmem:[%s3 + $0x48] sm:$0xf]
        %v3149 = vld [vmem:[%s3 + $0x4c] sm:$0xf]
        %v3150 = vld [vmem:[%s3 + $0x50] sm:$0xf]
        %v3151 = vld [vmem:[%s3 + $0x54] sm:$0xf]
        %v3152 = vld [vmem:[%s3 + $0x58] sm:$0xf]
        %v3153 = vld [vmem:[%s3 + $0x5c] sm:$0xf]
        %v3154 = vld [vmem:[%s3 + $0x60] sm:$0xf]
        %v3155 = vld [vmem:[%s3 + $0x64] sm:$0xf]
        %v3156 = vld [vmem:[%s3 + $0x68] sm:$0xf]
        %v3157 = vld [vmem:[%s3 + $0x6c] sm:$0xf]
        %v3158 = vld [vmem:[%s3 + $0x70] sm:$0xf]
        %v3159 = vld [vmem:[%s3 + $0x74] sm:$0xf]
        %v3160 = vld [vmem:[%s3 + $0x78] sm:$0xf]
        %v3161 = vld [vmem:[%s3 + $0x7c] sm:$0xf]
        %v3162 = vld [vmem:[%s3 + $0x80] sm:$0xf]
        %v3163 = vld [vmem:[%s3 + $0x84] sm:$0xf]
        %v3164 = vld [vmem:[%s3 + $0x88] sm:$0xf]
        %v3165 = vld [vmem:[%s3 + $0x8c] sm:$0xf]
        %v3166 = vld [vmem:[%s3 + $0x90] sm:$0xf]
        %v3167 = vld [vmem:[%s3 + $0x94] sm:$0xf]
        %v3168 = vld [vmem:[%s3 + $0x98] sm:$0xf]
        %v3169 = vld [vmem:[%s3 + $0x9c] sm:$0xf]
        %v3170 = vld [vmem:[%s3 + $0xa0] sm:$0xf]
        %v3171 = vld [vmem:[%s3 + $0xa4] sm:$0xf]
        %v3172 = vld [vmem:[%s3 + $0xa8] sm:$0xf]
        %v3173 = vld [vmem:[%s3 + $0xac] sm:$0xf]
        %v3174 = vld [vmem:[%s3 + $0xb0] sm:$0xf]
        %v3175 = vld [vmem:[%s3 + $0xb4] sm:$0xf]
        %v3176 = vld [vmem:[%s3 + $0xb8] sm:$0xf]
        %v3177 = vld [vmem:[%s3 + $0xbc] sm:$0xf]
        %v3178 = vld [vmem:[%s3 + $0xc0] sm:$0xf]
        %v3179 = vld [vmem:[%s3 + $0xc4] sm:$0xf]
        %v3180 = vld [vmem:[%s3 + $0xc8] sm:$0xf]
        %v3181 = vld [vmem:[%s3 + $0xcc] sm:$0xf]
        %v3182 = vld [vmem:[%s3 + $0xd0] sm:$0xf]
        %v3183 = vld [vmem:[%s3 + $0xd4] sm:$0xf]
        %v3184 = vld [vmem:[%s3 + $0xd8] sm:$0xf]
        %v3185 = vld [vmem:[%s3 + $0xdc] sm:$0xf]
        %v3186 = vld [vmem:[%s3 + $0xe0] sm:$0xf]
        %v3187 = vld [vmem:[%s3 + $0xe4] sm:$0xf]
        %v3188 = vld [vmem:[%s3 + $0xe8] sm:$0xf]
        %v3189 = vld [vmem:[%s3 + $0xec] sm:$0xf]
        %v3190 = vld [vmem:[%s3 + $0xf0] sm:$0xf]
        %v3191 = vld [vmem:[%s3 + $0xf4] sm:$0xf]
        %v3192 = vld [vmem:[%s3 + $0xf8] sm:$0xf]
        %v3193 = vld [vmem:[%s3 + $0xfc] sm:$0xf]
        %v3194 = vld [vmem:[%s3 + $0x100] sm:$0xf]
        %v3195 = vld [vmem:[%s3 + $0x104] sm:$0xf]
        %v3196 = vld [vmem:[%s3 + $0x108] sm:$0xf]
        %v3197 = vld [vmem:[%s3 + $0x10c] sm:$0xf]
        %v3198 = vld [vmem:[%s3 + $0x110] sm:$0xf]
        %v3199 = vld [vmem:[%s3 + $0x114] sm:$0xf]
        %v3200 = vld [vmem:[%s3 + $0x118] sm:$0xf]
        %v3201 = vld [vmem:[%s3 + $0x11c] sm:$0xf]
        %v3202 = vld [vmem:[%s3 + $0x120] sm:$0xf]
        %v3203 = vld [vmem:[%s3 + $0x124] sm:$0xf]
        %v3204 = vld [vmem:[%s3 + $0x128] sm:$0xf]
        %v3205 = vld [vmem:[%s3 + $0x12c] sm:$0xf]
        %v3206 = vld [vmem:[%s3 + $0x130] sm:$0xf]
        %v3207 = vld [vmem:[%s3 + $0x134] sm:$0xf]
        %v3208 = vld [vmem:[%s3 + $0x138] sm:$0xf]
        %v3209 = vld [vmem:[%s3 + $0x13c] sm:$0xf]
        %v3210 = vld [vmem:[%s3 + $0x140] sm:$0xf]
        %v3211 = vld [vmem:[%s3 + $0x144] sm:$0xf]
        %v3212 = vld [vmem:[%s3 + $0x148] sm:$0xf]
        %v3213 = vld [vmem:[%s3 + $0x14c] sm:$0xf]
        %v3214 = vld [vmem:[%s3 + $0x150] sm:$0xf]
        %v3215 = vld [vmem:[%s3 + $0x154] sm:$0xf]
        %v3216 = vld [vmem:[%s3 + $0x158] sm:$0xf]
        %v3217 = vld [vmem:[%s3 + $0x15c] sm:$0xf]
        %v3218 = vld [vmem:[%s3 + $0x160] sm:$0xf]
        %v3219 = vld [vmem:[%s3 + $0x164] sm:$0xf]
        %v3220 = vld [vmem:[%s3 + $0x168] sm:$0xf]
        %v3221 = vld [vmem:[%s3 + $0x16c] sm:$0xf]
        %v3222 = vld [vmem:[%s3 + $0x170] sm:$0xf]
        %v3223 = vld [vmem:[%s3 + $0x174] sm:$0xf]
        %v3224 = vld [vmem:[%s3 + $0x178] sm:$0xf]
        %v3225 = vld [vmem:[%s3 + $0x17c] sm:$0xf]
        %v3226 = vld [vmem:[%s3 + $0x180] sm:$0xf]
        %v3227 = vld [vmem:[%s3 + $0x184] sm:$0xf]
        %v3228 = vld [vmem:[%s3 + $0x188] sm:$0xf]
        %v3229 = vld [vmem:[%s3 + $0x18c] sm:$0xf]
        %v3230 = vld [vmem:[%s3 + $0x190] sm:$0xf]
        %v3231 = vld [vmem:[%s3 + $0x194] sm:$0xf]
        %v3232 = vld [vmem:[%s3 + $0x198] sm:$0xf]
        %v3233 = vld [vmem:[%s3 + $0x19c] sm:$0xf]
        %v3234 = vld [vmem:[%s3 + $0x1a0] sm:$0xf]
        %v3235 = vld [vmem:[%s3 + $0x1a4] sm:$0xf]
        %v3236 = vld [vmem:[%s3 + $0x1a8] sm:$0xf]
        %v3237 = vld [vmem:[%s3 + $0x1ac] sm:$0xf]
        %v3238 = vld [vmem:[%s3 + $0x1b0] sm:$0xf]
        %v3239 = vld [vmem:[%s3 + $0x1b4] sm:$0xf]
        %v3240 = vld [vmem:[%s3 + $0x1b8] sm:$0xf]
        %v3241 = vld [vmem:[%s3 + $0x1bc] sm:$0xf]
        %v3242 = vld [vmem:[%s3 + $0x1c0] sm:$0xf]
        %v3243 = vld [vmem:[%s3 + $0x1c4] sm:$0xf]
        %v3244 = vld [vmem:[%s3 + $0x1c8] sm:$0xf]
        %v3245 = vld [vmem:[%s3 + $0x1cc] sm:$0xf]
        %v3246 = vld [vmem:[%s3 + $0x1d0] sm:$0xf]
        %v3247 = vld [vmem:[%s3 + $0x1d4] sm:$0xf]
        %v3248 = vld [vmem:[%s3 + $0x1d8] sm:$0xf]
        %v3249 = vld [vmem:[%s3 + $0x1dc] sm:$0xf]
        %v3250 = vld [vmem:[%s3 + $0x1e0] sm:$0xf]
        %v3251 = vld [vmem:[%s3 + $0x1e4] sm:$0xf]
        %v3252 = vld [vmem:[%s3 + $0x1e8] sm:$0xf]
        %v3253 = vld [vmem:[%s3 + $0x1ec] sm:$0xf]
        %v3254 = vld [vmem:[%s3 + $0x1f0] sm:$0xf]
        %v3255 = vld [vmem:[%s3 + $0x1f4] sm:$0xf]
        %v3256 = vld [vmem:[%s3 + $0x1f8] sm:$0xf]
        %v3257 = vld [vmem:[%s3 + $0x1fc] sm:$0xf]
        %v3258 = vld [vmem:[%s3 + $0x200] sm:$0xf]
        %v3259 = vld [vmem:[%s3 + $0x204] sm:$0xf]
        %v3260 = vld [vmem:[%s3 + $0x208] sm:$0xf]
        %v3261 = vld [vmem:[%s3 + $0x20c] sm:$0xf]
        %v3262 = vld [vmem:[%s3 + $0x210] sm:$0xf]
        %v3263 = vld [vmem:[%s3 + $0x214] sm:$0xf]
        %v3264 = vld [vmem:[%s3 + $0x218] sm:$0xf]
        %v3265 = vld [vmem:[%s3 + $0x21c] sm:$0xf]
        %v3266 = vld [vmem:[%s3 + $0x220] sm:$0xf]
        %v3267 = vld [vmem:[%s3 + $0x224] sm:$0xf]
        %v3268 = vld [vmem:[%s3 + $0x228] sm:$0xf]
        %v3269 = vld [vmem:[%s3 + $0x22c] sm:$0xf]
        %v3270 = vld [vmem:[%s3 + $0x230] sm:$0xf]
        %v3271 = vld [vmem:[%s3 + $0x234] sm:$0xf]
        %v3272 = vld [vmem:[%s3 + $0x238] sm:$0xf]
        %v3273 = vld [vmem:[%s3 + $0x23c] sm:$0xf]
        %v3274 = vld [vmem:[%s3 + $0x240] sm:$0xf]
        %v3275 = vld [vmem:[%s3 + $0x244] sm:$0xf]
        %v3276 = vld [vmem:[%s3 + $0x248] sm:$0xf]
        %v3277 = vld [vmem:[%s3 + $0x24c] sm:$0xf]
        %v3278 = vld [vmem:[%s3 + $0x250] sm:$0xf]
        %v3279 = vld [vmem:[%s3 + $0x254] sm:$0xf]
        %v3280 = vld [vmem:[%s3 + $0x258] sm:$0xf]
        %v3281 = vld [vmem:[%s3 + $0x25c] sm:$0xf]
        %v3282 = vld [vmem:[%s3 + $0x260] sm:$0xf]
        %v3283 = vld [vmem:[%s3 + $0x264] sm:$0xf]
        %v3284 = vld [vmem:[%s3 + $0x268] sm:$0xf]
        %v3285 = vld [vmem:[%s3 + $0x26c] sm:$0xf]
        %v3286 = vld [vmem:[%s3 + $0x270] sm:$0xf]
        %v3287 = vld [vmem:[%s3 + $0x274] sm:$0xf]
        %v3288 = vld [vmem:[%s3 + $0x278] sm:$0xf]
        %v3289 = vld [vmem:[%s3 + $0x27c] sm:$0xf]
        %v3290 = vld [vmem:[%s3 + $0x280] sm:$0xf]
        %v3291 = vld [vmem:[%s3 + $0x284] sm:$0xf]
        %v3292 = vld [vmem:[%s3 + $0x288] sm:$0xf]
        %v3293 = vld [vmem:[%s3 + $0x28c] sm:$0xf]
        %v3294 = vld [vmem:[%s3 + $0x290] sm:$0xf]
        %v3295 = vld [vmem:[%s3 + $0x294] sm:$0xf]
        %v3296 = vld [vmem:[%s3 + $0x298] sm:$0xf]
        %v3297 = vld [vmem:[%s3 + $0x29c] sm:$0xf]
        %v3298 = vld [vmem:[%s3 + $0x2a0] sm:$0xf]
        %v3299 = vld [vmem:[%s3 + $0x2a4] sm:$0xf]
        %v3300 = vld [vmem:[%s3 + $0x2a8] sm:$0xf]
        %v3301 = vld [vmem:[%s3 + $0x2ac] sm:$0xf]
        %v3302 = vld [vmem:[%s3 + $0x2b0] sm:$0xf]
        %v3303 = vld [vmem:[%s3 + $0x2b4] sm:$0xf]
        %v3304 = vld [vmem:[%s3 + $0x2b8] sm:$0xf]
        %v3305 = vld [vmem:[%s3 + $0x2bc] sm:$0xf]
        %v3306 = vld [vmem:[%s3 + $0x2c0] sm:$0xf]
        %v3307 = vld [vmem:[%s3 + $0x2c4] sm:$0xf]
        %v3308 = vld [vmem:[%s3 + $0x2c8] sm:$0xf]
        %v3309 = vld [vmem:[%s3 + $0x2cc] sm:$0xf]
        %v3310 = vld [vmem:[%s3 + $0x2d0] sm:$0xf]
        %v3311 = vld [vmem:[%s3 + $0x2d4] sm:$0xf]
        %v3312 = vld [vmem:[%s3 + $0x2d8] sm:$0xf]
        %v3313 = vld [vmem:[%s3 + $0x2dc] sm:$0xf]
        %v3314 = vld [vmem:[%s3 + $0x2e0] sm:$0xf]
        %v3315 = vld [vmem:[%s3 + $0x2e4] sm:$0xf]
        %v3316 = vld [vmem:[%s3 + $0x2e8] sm:$0xf]
        %v3317 = vld [vmem:[%s3 + $0x2ec] sm:$0xf]
        %v3318 = vld [vmem:[%s3 + $0x2f0] sm:$0xf]
        %v3319 = vld [vmem:[%s3 + $0x2f4] sm:$0xf]
        %v3320 = vld [vmem:[%s3 + $0x2f8] sm:$0xf]
        %v3321 = vld [vmem:[%s3 + $0x2fc] sm:$0xf]
        %v3322 = vld [vmem:[%s3 + $0x300] sm:$0xf]
        %v3323 = vld [vmem:[%s3 + $0x304] sm:$0xf]
        %v3324 = vld [vmem:[%s3 + $0x308] sm:$0xf]
        %v3325 = vld [vmem:[%s3 + $0x30c] sm:$0xf]
        %v3326 = vld [vmem:[%s3 + $0x310] sm:$0xf]
        %v3327 = vld [vmem:[%s3 + $0x314] sm:$0xf]
        %v3328 = vld [vmem:[%s3 + $0x318] sm:$0xf]
        %v3329 = vld [vmem:[%s3 + $0x31c] sm:$0xf]
        %v3330 = vld [vmem:[%s3 + $0x320] sm:$0xf]
        %v3331 = vld [vmem:[%s3 + $0x324] sm:$0xf]
        %v3332 = vld [vmem:[%s3 + $0x328] sm:$0xf]
        %v3333 = vld [vmem:[%s3 + $0x32c] sm:$0xf]
        %v3334 = vld [vmem:[%s3 + $0x330] sm:$0xf]
        %v3335 = vld [vmem:[%s3 + $0x334] sm:$0xf]
        %v3336 = vld [vmem:[%s3 + $0x338] sm:$0xf]
        %v3337 = vld [vmem:[%s3 + $0x33c] sm:$0xf]
        %v3338 = vld [vmem:[%s3 + $0x340] sm:$0xf]
        %v3339 = vld [vmem:[%s3 + $0x344] sm:$0xf]
        %v3340 = vld [vmem:[%s3 + $0x348] sm:$0xf]
        %v3341 = vld [vmem:[%s3 + $0x34c] sm:$0xf]
        %v3342 = vld [vmem:[%s3 + $0x350] sm:$0xf]
        %v3343 = vld [vmem:[%s3 + $0x354] sm:$0xf]
        %v3344 = vld [vmem:[%s3 + $0x358] sm:$0xf]
        %v3345 = vld [vmem:[%s3 + $0x35c] sm:$0xf]
        %v3346 = vld [vmem:[%s3 + $0x360] sm:$0xf]
        %v3347 = vld [vmem:[%s3 + $0x364] sm:$0xf]
        %v3348 = vld [vmem:[%s3 + $0x368] sm:$0xf]
        %v3349 = vld [vmem:[%s3 + $0x36c] sm:$0xf]
        %v3350 = vld [vmem:[%s3 + $0x370] sm:$0xf]
        %v3351 = vld [vmem:[%s3 + $0x374] sm:$0xf]
        %v3352 = vld [vmem:[%s3 + $0x378] sm:$0xf]
        %v3353 = vld [vmem:[%s3 + $0x37c] sm:$0xf]
        %v3354 = vld [vmem:[%s3 + $0x380] sm:$0xf]
        %v3355 = vld [vmem:[%s3 + $0x384] sm:$0xf]
        %v3356 = vld [vmem:[%s3 + $0x388] sm:$0xf]
        %v3357 = vld [vmem:[%s3 + $0x38c] sm:$0xf]
        %v3358 = vld [vmem:[%s3 + $0x390] sm:$0xf]
        %v3359 = vld [vmem:[%s3 + $0x394] sm:$0xf]
        %v3360 = vld [vmem:[%s3 + $0x398] sm:$0xf]
        %v3361 = vld [vmem:[%s3 + $0x39c] sm:$0xf]
        %v3362 = vld [vmem:[%s3 + $0x3a0] sm:$0xf]
        %v3363 = vld [vmem:[%s3 + $0x3a4] sm:$0xf]
        %v3364 = vld [vmem:[%s3 + $0x3a8] sm:$0xf]
        %v3365 = vld [vmem:[%s3 + $0x3ac] sm:$0xf]
        %v3366 = vld [vmem:[%s3 + $0x3b0] sm:$0xf]
        %v3367 = vld [vmem:[%s3 + $0x3b4] sm:$0xf]
        %v3368 = vld [vmem:[%s3 + $0x3b8] sm:$0xf]
        %v3369 = vld [vmem:[%s3 + $0x3bc] sm:$0xf]
        %v3370 = vld [vmem:[%s3 + $0x3c0] sm:$0xf]
        %v3371 = vld [vmem:[%s3 + $0x3c4] sm:$0xf]
        %v3372 = vld [vmem:[%s3 + $0x3c8] sm:$0xf]
        %v3373 = vld [vmem:[%s3 + $0x3cc] sm:$0xf]
        %v3374 = vld [vmem:[%s3 + $0x3d0] sm:$0xf]
        %v3375 = vld [vmem:[%s3 + $0x3d4] sm:$0xf]
        %v3376 = vld [vmem:[%s3 + $0x3d8] sm:$0xf]
        %v3377 = vld [vmem:[%s3 + $0x3dc] sm:$0xf]
        %v3378 = vld [vmem:[%s3 + $0x3e0] sm:$0xf]
        %v3379 = vld [vmem:[%s3 + $0x3e4] sm:$0xf]
        %v3380 = vld [vmem:[%s3 + $0x3e8] sm:$0xf]
        %v3381 = vld [vmem:[%s3 + $0x3ec] sm:$0xf]
        %v3382 = vld [vmem:[%s3 + $0x3f0] sm:$0xf]
        %v3383 = vld [vmem:[%s3 + $0x3f4] sm:$0xf]
        %v3384 = vld [vmem:[%s3 + $0x3f8] sm:$0xf]
        %v3385 = vld [vmem:[%s3 + $0x3fc] sm:$0xf]
        %v3386 = vld [vmem:[%s3 + $0x400] sm:$0xf]
        %v3387 = vld [vmem:[%s3 + $0x404] sm:$0xf]
        %v3388 = vld [vmem:[%s3 + $0x408] sm:$0xf]
        %v3389 = vld [vmem:[%s3 + $0x40c] sm:$0xf]
        %v3390 = vld [vmem:[%s3 + $0x410] sm:$0xf]
        %v3391 = vld [vmem:[%s3 + $0x414] sm:$0xf]
        %v3392 = vld [vmem:[%s3 + $0x418] sm:$0xf]
        %v3393 = vld [vmem:[%s3 + $0x41c] sm:$0xf]
        %v3394 = vld [vmem:[%s3 + $0x420] sm:$0xf]
        %v3395 = vld [vmem:[%s3 + $0x424] sm:$0xf]
        %v3396 = vld [vmem:[%s3 + $0x428] sm:$0xf]
        %v3397 = vld [vmem:[%s3 + $0x42c] sm:$0xf]
        %v3398 = vld [vmem:[%s3 + $0x430] sm:$0xf]
        %v3399 = vld [vmem:[%s3 + $0x434] sm:$0xf]
        %v3400 = vld [vmem:[%s3 + $0x438] sm:$0xf]
        %v3401 = vld [vmem:[%s3 + $0x43c] sm:$0xf]
        %v3402 = vld [vmem:[%s3 + $0x440] sm:$0xf]
        %v3403 = vld [vmem:[%s3 + $0x444] sm:$0xf]
        %v3404 = vld [vmem:[%s3 + $0x448] sm:$0xf]
        %v3405 = vld [vmem:[%s3 + $0x44c] sm:$0xf]
        %v3406 = vld [vmem:[%s3 + $0x450] sm:$0xf]
        %v3407 = vld [vmem:[%s3 + $0x454] sm:$0xf]
        %v3408 = vld [vmem:[%s3 + $0x458] sm:$0xf]
        %v3409 = vld [vmem:[%s3 + $0x45c] sm:$0xf]
        %v3410 = vld [vmem:[%s3 + $0x460] sm:$0xf]
        %v3411 = vld [vmem:[%s3 + $0x464] sm:$0xf]
        %v3412 = vld [vmem:[%s3 + $0x468] sm:$0xf]
        %v3413 = vld [vmem:[%s3 + $0x46c] sm:$0xf]
        %v3414 = vld [vmem:[%s3 + $0x470] sm:$0xf]
        %v3415 = vld [vmem:[%s3 + $0x474] sm:$0xf]
        %v3416 = vld [vmem:[%s3 + $0x478] sm:$0xf]
        %v3417 = vld [vmem:[%s3 + $0x47c] sm:$0xf]
        %v3418 = vld [vmem:[%s3 + $0x480] sm:$0xf]
        %v3419 = vld [vmem:[%s3 + $0x484] sm:$0xf]
        %v3420 = vld [vmem:[%s3 + $0x488] sm:$0xf]
        %v3421 = vld [vmem:[%s3 + $0x48c] sm:$0xf]
        %v3422 = vld [vmem:[%s3 + $0x490] sm:$0xf]
        %v3423 = vld [vmem:[%s3 + $0x494] sm:$0xf]
        %v3424 = vld [vmem:[%s3 + $0x498] sm:$0xf]
        %v3425 = vld [vmem:[%s3 + $0x49c] sm:$0xf]
        %v3426 = vld [vmem:[%s3 + $0x4a0] sm:$0xf]
        %v3427 = vld [vmem:[%s3 + $0x4a4] sm:$0xf]
        %v3428 = vld [vmem:[%s3 + $0x4a8] sm:$0xf]
        %v3429 = vld [vmem:[%s3 + $0x4ac] sm:$0xf]
        %v3430 = vld [vmem:[%s3 + $0x4b0] sm:$0xf]
        %v3431 = vld [vmem:[%s3 + $0x4b4] sm:$0xf]
        %v3432 = vld [vmem:[%s3 + $0x4b8] sm:$0xf]
        %v3433 = vld [vmem:[%s3 + $0x4bc] sm:$0xf]
        %v3434 = vld [vmem:[%s3 + $0x4c0] sm:$0xf]
        %v3435 = vld [vmem:[%s3 + $0x4c4] sm:$0xf]
        %v3436 = vld [vmem:[%s3 + $0x4c8] sm:$0xf]
        %v3437 = vld [vmem:[%s3 + $0x4cc] sm:$0xf]
        %v3438 = vld [vmem:[%s3 + $0x4d0] sm:$0xf]
        %v3439 = vld [vmem:[%s3 + $0x4d4] sm:$0xf]
        %v3440 = vld [vmem:[%s3 + $0x4d8] sm:$0xf]
        %v3441 = vld [vmem:[%s3 + $0x4dc] sm:$0xf]
        %v3442 = vld [vmem:[%s3 + $0x4e0] sm:$0xf]
        %v3443 = vld [vmem:[%s3 + $0x4e4] sm:$0xf]
        %v3444 = vld [vmem:[%s3 + $0x4e8] sm:$0xf]
        %v3445 = vld [vmem:[%s4] sm:$0x1]
        %v3447 = vperm.slane %v3445, 0
        %v3469 = vunpack.c.l.b16 %v3110
        %v3470 = vunpack.c.h.b16 %v3110
        %v3471 = vunpack.c.l.b16 %v3111
        %v3472 = vunpack.c.h.b16 %v3111
        %v3473 = vunpack.c.l.b16 %v3112
        %v3474 = vunpack.c.h.b16 %v3112
        %v3475 = vunpack.c.l.b16 %v3113
        %v3476 = vunpack.c.h.b16 %v3113
        %v3477 = vunpack.c.l.b16 %v3114
        %v3478 = vunpack.c.h.b16 %v3114
        %v3479 = vunpack.c.l.b16 %v3115
        %v3480 = vunpack.c.h.b16 %v3115
        %v3481 = vunpack.c.l.b16 %v3116
        %v3482 = vunpack.c.h.b16 %v3116
        %v3483 = vunpack.c.l.b16 %v3117
        %v3484 = vunpack.c.h.b16 %v3117
        %v3485 = vunpack.c.l.b16 %v3118
        %v3486 = vunpack.c.h.b16 %v3118
        %v3487 = vunpack.c.l.b16 %v3119
        %v3488 = vunpack.c.h.b16 %v3119
        %v3489 = vunpack.c.l.b16 %v3120
        %v3490 = vunpack.c.h.b16 %v3120
        %v3491 = vunpack.c.l.b16 %v3121
        %v3492 = vunpack.c.h.b16 %v3121
        %v3493 = vunpack.c.l.b16 %v3122
        %v3494 = vunpack.c.h.b16 %v3122
        %v3495 = vunpack.c.l.b16 %v3123
        %v3496 = vunpack.c.h.b16 %v3123
        %v3497 = vunpack.c.l.b16 %v3124
        %v3498 = vunpack.c.h.b16 %v3124
        %v3499 = vunpack.c.l.b16 %v3125
        %v3500 = vunpack.c.h.b16 %v3125
        %v3501 = vunpack.c.l.b16 %v3126
        %v3502 = vunpack.c.h.b16 %v3126
        %v3503 = vunpack.c.l.b16 %v3127
        %v3504 = vunpack.c.h.b16 %v3127
        %v3505 = vunpack.c.l.b16 %v3128
        %v3506 = vunpack.c.h.b16 %v3128
        %v3507 = vunpack.c.l.b16 %v3129
        %v3508 = vunpack.c.h.b16 %v3129
        %v3509 = vpack.c.b16 %v3489, %v3469
        %v3510 = vpack.c.b16 %v3490, %v3470
        %v3511 = vpack.c.b16 %v3491, %v3471
        %v3512 = vpack.c.b16 %v3492, %v3472
        %v3513 = vpack.c.b16 %v3493, %v3473
        %v3514 = vpack.c.b16 %v3494, %v3474
        %v3515 = vpack.c.b16 %v3495, %v3475
        %v3516 = vpack.c.b16 %v3496, %v3476
        %v3517 = vpack.c.b16 %v3497, %v3477
        %v3518 = vpack.c.b16 %v3498, %v3478
        %v3519 = vpack.c.b16 %v3499, %v3479
        %v3520 = vpack.c.b16 %v3500, %v3480
        %v3521 = vpack.c.b16 %v3501, %v3481
        %v3522 = vpack.c.b16 %v3502, %v3482
        %v3523 = vpack.c.b16 %v3503, %v3483
        %v3524 = vpack.c.b16 %v3504, %v3484
        %v3525 = vpack.c.b16 %v3505, %v3485
        %v3526 = vpack.c.b16 %v3506, %v3486
        %v3527 = vpack.c.b16 %v3507, %v3487
        %v3528 = vpack.c.b16 %v3508, %v3488
        %v3863 = vunpack.c.l.b16 %v3130
        %v3864 = vunpack.c.l.b16 %v3131
        %v3865 = vunpack.c.l.b16 %v3132
        %v3866 = vunpack.c.l.b16 %v3133
        %v3867 = vunpack.c.l.b16 %v3134
        %v3868 = vunpack.c.l.b16 %v3135
        %v3869 = vunpack.c.l.b16 %v3136
        %v3870 = vunpack.c.l.b16 %v3137
        %v3871 = vunpack.c.l.b16 %v3138
        %v3872 = vunpack.c.l.b16 %v3139
        %v3873 = vunpack.c.l.b16 %v3140
        %v3874 = vunpack.c.l.b16 %v3141
        %v3875 = vunpack.c.l.b16 %v3142
        %v3876 = vunpack.c.l.b16 %v3143
        %v3877 = vunpack.c.l.b16 %v3144
        %v3878 = vunpack.c.l.b16 %v3145
        %v3879 = vunpack.c.l.b16 %v3146
        %v3880 = vunpack.c.l.b16 %v3147
        %v3881 = vunpack.c.l.b16 %v3148
        %v3882 = vunpack.c.l.b16 %v3149
        %v3883 = vunpack.c.l.b16 %v3150
        %v3884 = vunpack.c.l.b16 %v3151
        %v3885 = vunpack.c.l.b16 %v3152
        %v3886 = vunpack.c.l.b16 %v3153
        %v3887 = vunpack.c.l.b16 %v3154
        %v3888 = vunpack.c.l.b16 %v3155
        %v3889 = vunpack.c.l.b16 %v3156
        %v3890 = vunpack.c.l.b16 %v3157
        %v3891 = vunpack.c.l.b16 %v3158
        %v3892 = vunpack.c.l.b16 %v3159
        %v3893 = vunpack.c.l.b16 %v3160
        %v3894 = vunpack.c.l.b16 %v3161
        %v3895 = vunpack.c.l.b16 %v3162
        %v3896 = vunpack.c.l.b16 %v3163
        %v3897 = vunpack.c.l.b16 %v3164
        %v3898 = vunpack.c.l.b16 %v3165
        %v3899 = vunpack.c.l.b16 %v3166
        %v3900 = vunpack.c.l.b16 %v3167
        %v3901 = vunpack.c.l.b16 %v3168
        %v3902 = vunpack.c.l.b16 %v3169
        %v3903 = vunpack.c.l.b16 %v3170
        %v3904 = vunpack.c.l.b16 %v3171
        %v3905 = vunpack.c.l.b16 %v3172
        %v3906 = vunpack.c.l.b16 %v3173
        %v3907 = vunpack.c.l.b16 %v3174
        %v3908 = vunpack.c.l.b16 %v3175
        %v3909 = vunpack.c.l.b16 %v3176
        %v3910 = vunpack.c.l.b16 %v3177
        %v3911 = vunpack.c.l.b16 %v3178
        %v3912 = vunpack.c.l.b16 %v3179
        %v3913 = vunpack.c.l.b16 %v3180
        %v3914 = vunpack.c.l.b16 %v3181
        %v3915 = vunpack.c.l.b16 %v3182
        %v3916 = vunpack.c.l.b16 %v3183
        %v3917 = vunpack.c.l.b16 %v3184
        %v3918 = vunpack.c.l.b16 %v3185
        %v3919 = vunpack.c.l.b16 %v3186
        %v3920 = vunpack.c.l.b16 %v3187
        %v3921 = vunpack.c.l.b16 %v3188
        %v3922 = vunpack.c.l.b16 %v3189
        %v3923 = vunpack.c.l.b16 %v3190
        %v3924 = vunpack.c.l.b16 %v3191
        %v3925 = vunpack.c.l.b16 %v3192
        %v3926 = vunpack.c.l.b16 %v3193
        %v3927 = vunpack.c.l.b16 %v3194
        %v3928 = vunpack.c.l.b16 %v3195
        %v3929 = vunpack.c.l.b16 %v3196
        %v3930 = vunpack.c.l.b16 %v3197
        %v3931 = vunpack.c.l.b16 %v3198
        %v3932 = vunpack.c.l.b16 %v3199
        %v3933 = vunpack.c.l.b16 %v3200
        %v3934 = vunpack.c.l.b16 %v3201
        %v3935 = vunpack.c.l.b16 %v3202
        %v3936 = vunpack.c.l.b16 %v3203
        %v3937 = vunpack.c.l.b16 %v3204
        %v3938 = vunpack.c.l.b16 %v3205
        %v3939 = vunpack.c.l.b16 %v3206
        %v3940 = vunpack.c.l.b16 %v3207
        %v3941 = vunpack.c.l.b16 %v3208
        %v3942 = vunpack.c.l.b16 %v3209
        %v3943 = vunpack.c.l.b16 %v3210
        %v3944 = vunpack.c.l.b16 %v3211
        %v3945 = vunpack.c.l.b16 %v3212
        %v3946 = vunpack.c.l.b16 %v3213
        %v3947 = vunpack.c.l.b16 %v3214
        %v3948 = vunpack.c.l.b16 %v3215
        %v3949 = vunpack.c.l.b16 %v3216
        %v3950 = vunpack.c.l.b16 %v3217
        %v3951 = vunpack.c.l.b16 %v3218
        %v3952 = vunpack.c.l.b16 %v3219
        %v3953 = vunpack.c.l.b16 %v3220
        %v3954 = vunpack.c.l.b16 %v3221
        %v3955 = vunpack.c.l.b16 %v3222
        %v3956 = vunpack.c.l.b16 %v3223
        %v3957 = vunpack.c.l.b16 %v3224
        %v3958 = vunpack.c.l.b16 %v3225
        %v3959 = vunpack.c.l.b16 %v3226
        %v3960 = vunpack.c.l.b16 %v3227
        %v3961 = vunpack.c.l.b16 %v3228
        %v3962 = vunpack.c.l.b16 %v3229
        %v3963 = vunpack.c.l.b16 %v3230
        %v3964 = vunpack.c.l.b16 %v3231
        %v3965 = vunpack.c.l.b16 %v3232
        %v3966 = vunpack.c.l.b16 %v3233
        %v3967 = vunpack.c.l.b16 %v3234
        %v3968 = vunpack.c.l.b16 %v3235
        %v3969 = vunpack.c.l.b16 %v3236
        %v3970 = vunpack.c.l.b16 %v3237
        %v3971 = vunpack.c.l.b16 %v3238
        %v3972 = vunpack.c.l.b16 %v3239
        %v3973 = vunpack.c.l.b16 %v3240
        %v3974 = vunpack.c.l.b16 %v3241
        %v3975 = vunpack.c.l.b16 %v3242
        %v3976 = vunpack.c.l.b16 %v3243
        %v3977 = vunpack.c.l.b16 %v3244
        %v3978 = vunpack.c.l.b16 %v3245
        %v3979 = vunpack.c.l.b16 %v3246
        %v3980 = vunpack.c.l.b16 %v3247
        %v3981 = vunpack.c.l.b16 %v3248
        %v3982 = vunpack.c.l.b16 %v3249
        %v3983 = vunpack.c.l.b16 %v3250
        %v3984 = vunpack.c.l.b16 %v3251
        %v3985 = vunpack.c.l.b16 %v3252
        %v3986 = vunpack.c.l.b16 %v3253
        %v3987 = vunpack.c.l.b16 %v3254
        %v3988 = vunpack.c.l.b16 %v3255
        %v3989 = vunpack.c.l.b16 %v3256
        %v3990 = vunpack.c.l.b16 %v3257
        %v3991 = vunpack.c.l.b16 %v3258
        %v3992 = vunpack.c.l.b16 %v3259
        %v3993 = vunpack.c.l.b16 %v3260
        %v3994 = vunpack.c.l.b16 %v3261
        %v3995 = vunpack.c.l.b16 %v3262
        %v3996 = vunpack.c.l.b16 %v3263
        %v3997 = vunpack.c.l.b16 %v3264
        %v3998 = vunpack.c.l.b16 %v3265
        %v3999 = vunpack.c.l.b16 %v3266
        %v4000 = vunpack.c.l.b16 %v3267
        %v4001 = vunpack.c.l.b16 %v3268
        %v4002 = vunpack.c.l.b16 %v3269
        %v4003 = vunpack.c.l.b16 %v3270
        %v4004 = vunpack.c.l.b16 %v3271
        %v4005 = vunpack.c.l.b16 %v3272
        %v4006 = vunpack.c.l.b16 %v3273
        %v4007 = vunpack.c.l.b16 %v3274
        %v4008 = vunpack.c.l.b16 %v3275
        %v4009 = vunpack.c.l.b16 %v3276
        %v4010 = vunpack.c.l.b16 %v3277
        %v4011 = vunpack.c.l.b16 %v3278
        %v4012 = vunpack.c.l.b16 %v3279
        %v4013 = vunpack.c.l.b16 %v3280
        %v4014 = vunpack.c.l.b16 %v3281
        %v4015 = vunpack.c.l.b16 %v3282
        %v4016 = vunpack.c.l.b16 %v3283
        %v4017 = vunpack.c.l.b16 %v3284
        %v4018 = vunpack.c.l.b16 %v3285
        %v4019 = vunpack.c.l.b16 %v3286
        %v4020 = vunpack.c.l.b16 %v3287
        %v4021 = vunpack.c.l.b16 %v3288
        %v4022 = vunpack.c.l.b16 %v3289
        %v4023 = vunpack.c.l.b16 %v3290
        %v4024 = vunpack.c.l.b16 %v3291
        %v4025 = vunpack.c.l.b16 %v3292
        %v4026 = vunpack.c.l.b16 %v3293
        %v4027 = vunpack.c.l.b16 %v3294
        %v4028 = vunpack.c.l.b16 %v3295
        %v4029 = vunpack.c.l.b16 %v3296
        %v4030 = vunpack.c.l.b16 %v3297
        %v4031 = vunpack.c.l.b16 %v3298
        %v4032 = vunpack.c.l.b16 %v3299
        %v4033 = vunpack.c.l.b16 %v3300
        %v4034 = vunpack.c.l.b16 %v3301
        %v4035 = vunpack.c.l.b16 %v3302
        %v4036 = vunpack.c.l.b16 %v3303
        %v4037 = vunpack.c.l.b16 %v3304
        %v4038 = vunpack.c.l.b16 %v3305
        %v4039 = vunpack.c.l.b16 %v3306
        %v4040 = vunpack.c.l.b16 %v3307
        %v4041 = vunpack.c.l.b16 %v3308
        %v4042 = vunpack.c.l.b16 %v3309
        %v4043 = vunpack.c.l.b16 %v3310
        %v4044 = vunpack.c.l.b16 %v3311
        %v4045 = vunpack.c.l.b16 %v3312
        %v4046 = vunpack.c.l.b16 %v3313
        %v4047 = vunpack.c.l.b16 %v3314
        %v4048 = vunpack.c.l.b16 %v3315
        %v4049 = vunpack.c.l.b16 %v3316
        %v4050 = vunpack.c.l.b16 %v3317
        %v4051 = vunpack.c.l.b16 %v3318
        %v4052 = vunpack.c.l.b16 %v3319
        %v4053 = vunpack.c.l.b16 %v3320
        %v4054 = vunpack.c.l.b16 %v3321
        %v4055 = vunpack.c.l.b16 %v3322
        %v4056 = vunpack.c.l.b16 %v3323
        %v4057 = vunpack.c.l.b16 %v3324
        %v4058 = vunpack.c.l.b16 %v3325
        %v4059 = vunpack.c.l.b16 %v3326
        %v4060 = vunpack.c.l.b16 %v3327
        %v4061 = vunpack.c.l.b16 %v3328
        %v4062 = vunpack.c.l.b16 %v3329
        %v4063 = vunpack.c.l.b16 %v3330
        %v4064 = vunpack.c.l.b16 %v3331
        %v4065 = vunpack.c.l.b16 %v3332
        %v4066 = vunpack.c.l.b16 %v3333
        %v4067 = vunpack.c.l.b16 %v3334
        %v4068 = vunpack.c.l.b16 %v3335
        %v4069 = vunpack.c.l.b16 %v3336
        %v4070 = vunpack.c.l.b16 %v3337
        %v4071 = vunpack.c.l.b16 %v3338
        %v4072 = vunpack.c.l.b16 %v3339
        %v4073 = vunpack.c.l.b16 %v3340
        %v4074 = vunpack.c.l.b16 %v3341
        %v4075 = vunpack.c.l.b16 %v3342
        %v4076 = vunpack.c.l.b16 %v3343
        %v4077 = vunpack.c.l.b16 %v3344
        %v4078 = vunpack.c.l.b16 %v3345
        %v4079 = vunpack.c.l.b16 %v3346
        %v4080 = vunpack.c.l.b16 %v3347
        %v4081 = vunpack.c.l.b16 %v3348
        %v4082 = vunpack.c.l.b16 %v3349
        %v4083 = vunpack.c.l.b16 %v3350
        %v4084 = vunpack.c.l.b16 %v3351
        %v4085 = vunpack.c.l.b16 %v3352
        %v4086 = vunpack.c.l.b16 %v3353
        %v4087 = vunpack.c.l.b16 %v3354
        %v4088 = vunpack.c.l.b16 %v3355
        %v4089 = vunpack.c.l.b16 %v3356
        %v4090 = vunpack.c.l.b16 %v3357
        %v4091 = vunpack.c.l.b16 %v3358
        %v4092 = vunpack.c.l.b16 %v3359
        %v4093 = vunpack.c.l.b16 %v3360
        %v4094 = vunpack.c.l.b16 %v3361
        %v4095 = vunpack.c.l.b16 %v3362
        %v4096 = vunpack.c.l.b16 %v3363
        %v4097 = vunpack.c.l.b16 %v3364
        %v4098 = vunpack.c.l.b16 %v3365
        %v4099 = vunpack.c.l.b16 %v3366
        %v4100 = vunpack.c.l.b16 %v3367
        %v4101 = vunpack.c.l.b16 %v3368
        %v4102 = vunpack.c.l.b16 %v3369
        %v4103 = vunpack.c.l.b16 %v3370
        %v4104 = vunpack.c.l.b16 %v3371
        %v4105 = vunpack.c.l.b16 %v3372
        %v4106 = vunpack.c.l.b16 %v3373
        %v4107 = vunpack.c.l.b16 %v3374
        %v4108 = vunpack.c.l.b16 %v3375
        %v4109 = vunpack.c.l.b16 %v3376
        %v4110 = vunpack.c.l.b16 %v3377
        %v4111 = vunpack.c.l.b16 %v3378
        %v4112 = vunpack.c.l.b16 %v3379
        %v4113 = vunpack.c.l.b16 %v3380
        %v4114 = vunpack.c.l.b16 %v3381
        %v4115 = vunpack.c.l.b16 %v3382
        %v4116 = vunpack.c.l.b16 %v3383
        %v4117 = vunpack.c.l.b16 %v3384
        %v4118 = vunpack.c.l.b16 %v3385
        %v4119 = vunpack.c.l.b16 %v3386
        %v4120 = vunpack.c.l.b16 %v3387
        %v4121 = vunpack.c.l.b16 %v3388
        %v4122 = vunpack.c.l.b16 %v3389
        %v4123 = vunpack.c.l.b16 %v3390
        %v4124 = vunpack.c.l.b16 %v3391
        %v4125 = vunpack.c.l.b16 %v3392
        %v4126 = vunpack.c.l.b16 %v3393
        %v4127 = vunpack.c.l.b16 %v3394
        %v4128 = vunpack.c.l.b16 %v3395
        %v4129 = vunpack.c.l.b16 %v3396
        %v4130 = vunpack.c.l.b16 %v3397
        %v4131 = vunpack.c.l.b16 %v3398
        %v4132 = vunpack.c.l.b16 %v3399
        %v4133 = vunpack.c.l.b16 %v3400
        %v4134 = vunpack.c.l.b16 %v3401
        %v4135 = vunpack.c.l.b16 %v3402
        %v4136 = vunpack.c.l.b16 %v3403
        %v4137 = vunpack.c.l.b16 %v3404
        %v4138 = vunpack.c.l.b16 %v3405
        %v4139 = vunpack.c.l.b16 %v3406
        %v4140 = vunpack.c.l.b16 %v3407
        %v4141 = vunpack.c.l.b16 %v3408
        %v4142 = vunpack.c.l.b16 %v3409
        %v4143 = vunpack.c.l.b16 %v3410
        %v4144 = vunpack.c.l.b16 %v3411
        %v4145 = vunpack.c.l.b16 %v3412
        %v4146 = vunpack.c.l.b16 %v3413
        %v4147 = vunpack.c.l.b16 %v3414
        %v4148 = vunpack.c.l.b16 %v3415
        %v4149 = vunpack.c.l.b16 %v3416
        %v4150 = vunpack.c.l.b16 %v3417
        %v4151 = vunpack.c.l.b16 %v3418
        %v4152 = vunpack.c.l.b16 %v3419
        %v4153 = vunpack.c.l.b16 %v3420
        %v4154 = vunpack.c.l.b16 %v3421
        %v4155 = vunpack.c.l.b16 %v3422
        %v4156 = vunpack.c.l.b16 %v3423
        %v4157 = vunpack.c.l.b16 %v3424
        %v4158 = vunpack.c.l.b16 %v3425
        %v4159 = vunpack.c.l.b16 %v3426
        %v4160 = vunpack.c.l.b16 %v3427
        %v4161 = vunpack.c.l.b16 %v3428
        %v4162 = vunpack.c.l.b16 %v3429
        %v4163 = vunpack.c.l.b16 %v3430
        %v4164 = vunpack.c.l.b16 %v3431
        %v4165 = vunpack.c.l.b16 %v3432
        %v4166 = vunpack.c.l.b16 %v3433
        %v4167 = vunpack.c.l.b16 %v3434
        %v4168 = vunpack.c.l.b16 %v3435
        %v4169 = vunpack.c.l.b16 %v3436
        %v4170 = vunpack.c.l.b16 %v3437
        %v4171 = vunpack.c.l.b16 %v3438
        %v4172 = vunpack.c.l.b16 %v3439
        %v4173 = vunpack.c.l.b16 %v3440
        %v4174 = vunpack.c.l.b16 %v3441
        %v4175 = vunpack.c.l.b16 %v3442
        %v4176 = vunpack.c.l.b16 %v3443
        %v4177 = vunpack.c.l.b16 %v3444
        %v4178 = vpack.c.b16 %v3864, %v3863
        %v4179 = vpack.c.b16 %v3866, %v3865
        %v4180 = vpack.c.b16 %v3868, %v3867
        %v4181 = vpack.c.b16 %v3870, %v3869
        %v4182 = vpack.c.b16 %v3872, %v3871
        %v4183 = vpack.c.b16 %v3874, %v3873
        %v4184 = vpack.c.b16 %v3876, %v3875
        %v4185 = vpack.c.b16 %v3878, %v3877
        %v4186 = vpack.c.b16 %v3880, %v3879
        %v4187 = vpack.c.b16 %v3882, %v3881
        %v4188 = vpack.c.b16 %v3884, %v3883
        %v4189 = vpack.c.b16 %v3886, %v3885
        %v4190 = vpack.c.b16 %v3888, %v3887
        %v4191 = vpack.c.b16 %v3890, %v3889
        %v4192 = vpack.c.b16 %v3892, %v3891
        %v4193 = vpack.c.b16 %v3894, %v3893
        %v4194 = vpack.c.b16 %v3896, %v3895
        %v4195 = vpack.c.b16 %v3898, %v3897
        %v4196 = vpack.c.b16 %v3900, %v3899
        %v4197 = vpack.c.b16 %v3902, %v3901
        %v4198 = vpack.c.b16 %v3904, %v3903
        %v4199 = vpack.c.b16 %v3906, %v3905
        %v4200 = vpack.c.b16 %v3908, %v3907
        %v4201 = vpack.c.b16 %v3910, %v3909
        %v4202 = vpack.c.b16 %v3912, %v3911
        %v4203 = vpack.c.b16 %v3914, %v3913
        %v4204 = vpack.c.b16 %v3916, %v3915
        %v4205 = vpack.c.b16 %v3918, %v3917
        %v4206 = vpack.c.b16 %v3920, %v3919
        %v4207 = vpack.c.b16 %v3922, %v3921
        %v4208 = vpack.c.b16 %v3924, %v3923
        %v4209 = vpack.c.b16 %v3926, %v3925
        %v4210 = vpack.c.b16 %v3928, %v3927
        %v4211 = vpack.c.b16 %v3930, %v3929
        %v4212 = vpack.c.b16 %v3932, %v3931
        %v4213 = vpack.c.b16 %v3934, %v3933
        %v4214 = vpack.c.b16 %v3936, %v3935
        %v4215 = vpack.c.b16 %v3938, %v3937
        %v4216 = vpack.c.b16 %v3940, %v3939
        %v4217 = vpack.c.b16 %v3942, %v3941
        %v4218 = vpack.c.b16 %v3944, %v3943
        %v4219 = vpack.c.b16 %v3946, %v3945
        %v4220 = vpack.c.b16 %v3948, %v3947
        %v4221 = vpack.c.b16 %v3950, %v3949
        %v4222 = vpack.c.b16 %v3952, %v3951
        %v4223 = vpack.c.b16 %v3954, %v3953
        %v4224 = vpack.c.b16 %v3956, %v3955
        %v4225 = vpack.c.b16 %v3958, %v3957
        %v4226 = vpack.c.b16 %v3960, %v3959
        %v4227 = vpack.c.b16 %v3962, %v3961
        %v4228 = vpack.c.b16 %v3964, %v3963
        %v4229 = vpack.c.b16 %v3966, %v3965
        %v4230 = vpack.c.b16 %v3968, %v3967
        %v4231 = vpack.c.b16 %v3970, %v3969
        %v4232 = vpack.c.b16 %v3972, %v3971
        %v4233 = vpack.c.b16 %v3974, %v3973
        %v4234 = vpack.c.b16 %v3976, %v3975
        %v4235 = vpack.c.b16 %v3978, %v3977
        %v4236 = vpack.c.b16 %v3980, %v3979
        %v4237 = vpack.c.b16 %v3982, %v3981
        %v4238 = vpack.c.b16 %v3984, %v3983
        %v4239 = vpack.c.b16 %v3986, %v3985
        %v4240 = vpack.c.b16 %v3988, %v3987
        %v4241 = vpack.c.b16 %v3990, %v3989
        %v4242 = vpack.c.b16 %v3992, %v3991
        %v4243 = vpack.c.b16 %v3994, %v3993
        %v4244 = vpack.c.b16 %v3996, %v3995
        %v4245 = vpack.c.b16 %v3998, %v3997
        %v4246 = vpack.c.b16 %v4000, %v3999
        %v4247 = vpack.c.b16 %v4002, %v4001
        %v4248 = vpack.c.b16 %v4004, %v4003
        %v4249 = vpack.c.b16 %v4006, %v4005
        %v4250 = vpack.c.b16 %v4008, %v4007
        %v4251 = vpack.c.b16 %v4010, %v4009
        %v4252 = vpack.c.b16 %v4012, %v4011
        %v4253 = vpack.c.b16 %v4014, %v4013
        %v4254 = vpack.c.b16 %v4016, %v4015
        %v4255 = vpack.c.b16 %v4018, %v4017
        %v4256 = vpack.c.b16 %v4020, %v4019
        %v4257 = vpack.c.b16 %v4022, %v4021
        %v4258 = vpack.c.b16 %v4024, %v4023
        %v4259 = vpack.c.b16 %v4026, %v4025
        %v4260 = vpack.c.b16 %v4028, %v4027
        %v4261 = vpack.c.b16 %v4030, %v4029
        %v4262 = vpack.c.b16 %v4032, %v4031
        %v4263 = vpack.c.b16 %v4034, %v4033
        %v4264 = vpack.c.b16 %v4036, %v4035
        %v4265 = vpack.c.b16 %v4038, %v4037
        %v4266 = vpack.c.b16 %v4040, %v4039
        %v4267 = vpack.c.b16 %v4042, %v4041
        %v4268 = vpack.c.b16 %v4044, %v4043
        %v4269 = vpack.c.b16 %v4046, %v4045
        %v4270 = vpack.c.b16 %v4048, %v4047
        %v4271 = vpack.c.b16 %v4050, %v4049
        %v4272 = vpack.c.b16 %v4052, %v4051
        %v4273 = vpack.c.b16 %v4054, %v4053
        %v4274 = vpack.c.b16 %v4056, %v4055
        %v4275 = vpack.c.b16 %v4058, %v4057
        %v4276 = vpack.c.b16 %v4060, %v4059
        %v4277 = vpack.c.b16 %v4062, %v4061
        %v4278 = vpack.c.b16 %v4064, %v4063
        %v4279 = vpack.c.b16 %v4066, %v4065
        %v4280 = vpack.c.b16 %v4068, %v4067
        %v4281 = vpack.c.b16 %v4070, %v4069
        %v4282 = vpack.c.b16 %v4072, %v4071
        %v4283 = vpack.c.b16 %v4074, %v4073
        %v4284 = vpack.c.b16 %v4076, %v4075
        %v4285 = vpack.c.b16 %v4078, %v4077
        %v4286 = vpack.c.b16 %v4080, %v4079
        %v4287 = vpack.c.b16 %v4082, %v4081
        %v4288 = vpack.c.b16 %v4084, %v4083
        %v4289 = vpack.c.b16 %v4086, %v4085
        %v4290 = vpack.c.b16 %v4088, %v4087
        %v4291 = vpack.c.b16 %v4090, %v4089
        %v4292 = vpack.c.b16 %v4092, %v4091
        %v4293 = vpack.c.b16 %v4094, %v4093
        %v4294 = vpack.c.b16 %v4096, %v4095
        %v4295 = vpack.c.b16 %v4098, %v4097
        %v4296 = vpack.c.b16 %v4100, %v4099
        %v4297 = vpack.c.b16 %v4102, %v4101
        %v4298 = vpack.c.b16 %v4104, %v4103
        %v4299 = vpack.c.b16 %v4106, %v4105
        %v4300 = vpack.c.b16 %v4108, %v4107
        %v4301 = vpack.c.b16 %v4110, %v4109
        %v4302 = vpack.c.b16 %v4112, %v4111
        %v4303 = vpack.c.b16 %v4114, %v4113
        %v4304 = vpack.c.b16 %v4116, %v4115
        %v4305 = vpack.c.b16 %v4118, %v4117
        %v4306 = vpack.c.b16 %v4120, %v4119
        %v4307 = vpack.c.b16 %v4122, %v4121
        %v4308 = vpack.c.b16 %v4124, %v4123
        %v4309 = vpack.c.b16 %v4126, %v4125
        %v4310 = vpack.c.b16 %v4128, %v4127
        %v4311 = vpack.c.b16 %v4130, %v4129
        %v4312 = vpack.c.b16 %v4132, %v4131
        %v4313 = vpack.c.b16 %v4134, %v4133
        %v4314 = vpack.c.b16 %v4136, %v4135
        %v4315 = vpack.c.b16 %v4138, %v4137
        %v4316 = vpack.c.b16 %v4140, %v4139
        %v4317 = vpack.c.b16 %v4142, %v4141
        %v4318 = vpack.c.b16 %v4144, %v4143
        %v4319 = vpack.c.b16 %v4146, %v4145
        %v4320 = vpack.c.b16 %v4148, %v4147
        %v4321 = vpack.c.b16 %v4150, %v4149
        %v4322 = vpack.c.b16 %v4152, %v4151
        %v4323 = vpack.c.b16 %v4154, %v4153
        %v4324 = vpack.c.b16 %v4156, %v4155
        %v4325 = vpack.c.b16 %v4158, %v4157
        %v4326 = vpack.c.b16 %v4160, %v4159
        %v4327 = vpack.c.b16 %v4162, %v4161
        %v4328 = vpack.c.b16 %v4164, %v4163
        %v4329 = vpack.c.b16 %v4166, %v4165
        %v4330 = vpack.c.b16 %v4168, %v4167
        %v4331 = vpack.c.b16 %v4170, %v4169
        %v4332 = vpack.c.b16 %v4172, %v4171
        %v4333 = vpack.c.b16 %v4174, %v4173
        %v4334 = vpack.c.b16 %v4176, %v4175
        %v4335 = vpack.c.b16 %v4177, %v4177
        %vm4493 = vcmask 719872
        %v4495 = vsel %vm4493, %v3528, 0
        %vm4497 = vcmask 1043456
        %v4499 = vsel %vm4497, %v4335, 0
        %4501 = vmatpush.bf16.msra.mxu0 %v4185
        %4502 = vmatpush.bf16.msra.mxu0 %v4184
        %4503 = vmatpush.bf16.msra.mxu0 %v4183
        %4504 = vmatpush.bf16.msra.mxu0 %v4182
        %4505 = vmatpush.bf16.msra.mxu0 %v4181
        %4506 = vmatpush.bf16.msra.mxu0 %v4180
        %4507 = vmatpush.bf16.msra.mxu0 %v4179
        %4508 = vmatpush.bf16.msra.mxu0 %v4178
        %4509 = vmatmul.bf16.gmra.mxu0 %v3509
        %v4510 = vpop.f32.mrf.mxu0
        %v4511 = vadd.f32 %v3447, %v4510
        %v4512 = vpop.f32.mrf.mxu0
        %v4513 = vadd.f32 %v3447, %v4512
        %4514 = vdwg.mxu0
        %4515 = vmatpush.bf16.msra.mxu0 %v4193
        %4516 = vmatpush.bf16.msra.mxu0 %v4192
        %4517 = vmatpush.bf16.msra.mxu0 %v4191
        %4518 = vmatpush.bf16.msra.mxu0 %v4190
        %4519 = vmatpush.bf16.msra.mxu0 %v4189
        %4520 = vmatpush.bf16.msra.mxu0 %v4188
        %4521 = vmatpush.bf16.msra.mxu0 %v4187
        %4522 = vmatpush.bf16.msra.mxu0 %v4186
        %4523 = vmatmul.bf16.gmra.mxu0 %v3510
        %v4524 = vpop.f32.mrf.mxu0
        %v4525 = vadd.f32 %v4511, %v4524
        %v4526 = vpop.f32.mrf.mxu0
        %v4527 = vadd.f32 %v4513, %v4526
        %4528 = vdwg.mxu0
        %4529 = vmatpush.bf16.msra.mxu0 %v4201
        %4530 = vmatpush.bf16.msra.mxu0 %v4200
        %4531 = vmatpush.bf16.msra.mxu0 %v4199
        %4532 = vmatpush.bf16.msra.mxu0 %v4198
        %4533 = vmatpush.bf16.msra.mxu0 %v4197
        %4534 = vmatpush.bf16.msra.mxu0 %v4196
        %4535 = vmatpush.bf16.msra.mxu0 %v4195
        %4536 = vmatpush.bf16.msra.mxu0 %v4194
        %4537 = vmatmul.bf16.gmra.mxu0 %v3511
        %v4538 = vpop.f32.mrf.mxu0
        %v4539 = vadd.f32 %v4525, %v4538
        %v4540 = vpop.f32.mrf.mxu0
        %v4541 = vadd.f32 %v4527, %v4540
        %4542 = vdwg.mxu0
        %4543 = vmatpush.bf16.msra.mxu0 %v4209
        %4544 = vmatpush.bf16.msra.mxu0 %v4208
        %4545 = vmatpush.bf16.msra.mxu0 %v4207
        %4546 = vmatpush.bf16.msra.mxu0 %v4206
        %4547 = vmatpush.bf16.msra.mxu0 %v4205
        %4548 = vmatpush.bf16.msra.mxu0 %v4204
        %4549 = vmatpush.bf16.msra.mxu0 %v4203
        %4550 = vmatpush.bf16.msra.mxu0 %v4202
        %4551 = vmatmul.bf16.gmra.mxu0 %v3512
        %v4552 = vpop.f32.mrf.mxu0
        %v4553 = vadd.f32 %v4539, %v4552
        %v4554 = vpop.f32.mrf.mxu0
        %v4555 = vadd.f32 %v4541, %v4554
        %4556 = vdwg.mxu0
        %4557 = vmatpush.bf16.msra.mxu0 %v4217
        %4558 = vmatpush.bf16.msra.mxu0 %v4216
        %4559 = vmatpush.bf16.msra.mxu0 %v4215
        %4560 = vmatpush.bf16.msra.mxu0 %v4214
        %4561 = vmatpush.bf16.msra.mxu0 %v4213
        %4562 = vmatpush.bf16.msra.mxu0 %v4212
        %4563 = vmatpush.bf16.msra.mxu0 %v4211
        %4564 = vmatpush.bf16.msra.mxu0 %v4210
        %4565 = vmatmul.bf16.gmra.mxu0 %v3513
        %v4566 = vpop.f32.mrf.mxu0
        %v4567 = vadd.f32 %v4553, %v4566
        %v4568 = vpop.f32.mrf.mxu0
        %v4569 = vadd.f32 %v4555, %v4568
        %4570 = vdwg.mxu0
        %4571 = vmatpush.bf16.msra.mxu0 %v4225
        %4572 = vmatpush.bf16.msra.mxu0 %v4224
        %4573 = vmatpush.bf16.msra.mxu0 %v4223
        %4574 = vmatpush.bf16.msra.mxu0 %v4222
        %4575 = vmatpush.bf16.msra.mxu0 %v4221
        %4576 = vmatpush.bf16.msra.mxu0 %v4220
        %4577 = vmatpush.bf16.msra.mxu0 %v4219
        %4578 = vmatpush.bf16.msra.mxu0 %v4218
        %4579 = vmatmul.bf16.gmra.mxu0 %v3514
        %v4580 = vpop.f32.mrf.mxu0
        %v4581 = vadd.f32 %v4567, %v4580
        %v4582 = vpop.f32.mrf.mxu0
        %v4583 = vadd.f32 %v4569, %v4582
        %4584 = vdwg.mxu0
        %4585 = vmatpush.bf16.msra.mxu0 %v4233
        %4586 = vmatpush.bf16.msra.mxu0 %v4232
        %4587 = vmatpush.bf16.msra.mxu0 %v4231
        %4588 = vmatpush.bf16.msra.mxu0 %v4230
        %4589 = vmatpush.bf16.msra.mxu0 %v4229
        %4590 = vmatpush.bf16.msra.mxu0 %v4228
        %4591 = vmatpush.bf16.msra.mxu0 %v4227
        %4592 = vmatpush.bf16.msra.mxu0 %v4226
        %4593 = vmatmul.bf16.gmra.mxu0 %v3515
        %v4594 = vpop.f32.mrf.mxu0
        %v4595 = vadd.f32 %v4581, %v4594
        %v4596 = vpop.f32.mrf.mxu0
        %v4597 = vadd.f32 %v4583, %v4596
        %4598 = vdwg.mxu0
        %4599 = vmatpush.bf16.msra.mxu0 %v4241
        %4600 = vmatpush.bf16.msra.mxu0 %v4240
        %4601 = vmatpush.bf16.msra.mxu0 %v4239
        %4602 = vmatpush.bf16.msra.mxu0 %v4238
        %4603 = vmatpush.bf16.msra.mxu0 %v4237
        %4604 = vmatpush.bf16.msra.mxu0 %v4236
        %4605 = vmatpush.bf16.msra.mxu0 %v4235
        %4606 = vmatpush.bf16.msra.mxu0 %v4234
        %4607 = vmatmul.bf16.gmra.mxu0 %v3516
        %v4608 = vpop.f32.mrf.mxu0
        %v4609 = vadd.f32 %v4595, %v4608
        %v4610 = vpop.f32.mrf.mxu0
        %v4611 = vadd.f32 %v4597, %v4610
        %4612 = vdwg.mxu0
        %4613 = vmatpush.bf16.msra.mxu0 %v4249
        %4614 = vmatpush.bf16.msra.mxu0 %v4248
        %4615 = vmatpush.bf16.msra.mxu0 %v4247
        %4616 = vmatpush.bf16.msra.mxu0 %v4246
        %4617 = vmatpush.bf16.msra.mxu0 %v4245
        %4618 = vmatpush.bf16.msra.mxu0 %v4244
        %4619 = vmatpush.bf16.msra.mxu0 %v4243
        %4620 = vmatpush.bf16.msra.mxu0 %v4242
        %4621 = vmatmul.bf16.gmra.mxu0 %v3517
        %v4622 = vpop.f32.mrf.mxu0
        %v4623 = vadd.f32 %v4609, %v4622
        %v4624 = vpop.f32.mrf.mxu0
        %v4625 = vadd.f32 %v4611, %v4624
        %4626 = vdwg.mxu0
        %4627 = vmatpush.bf16.msra.mxu0 %v4257
        %4628 = vmatpush.bf16.msra.mxu0 %v4256
        %4629 = vmatpush.bf16.msra.mxu0 %v4255
        %4630 = vmatpush.bf16.msra.mxu0 %v4254
        %4631 = vmatpush.bf16.msra.mxu0 %v4253
        %4632 = vmatpush.bf16.msra.mxu0 %v4252
        %4633 = vmatpush.bf16.msra.mxu0 %v4251
        %4634 = vmatpush.bf16.msra.mxu0 %v4250
        %4635 = vmatmul.bf16.gmra.mxu0 %v3518
        %v4636 = vpop.f32.mrf.mxu0
        %v4637 = vadd.f32 %v4623, %v4636
        %v4638 = vpop.f32.mrf.mxu0
        %v4639 = vadd.f32 %v4625, %v4638
        %4640 = vdwg.mxu0
        %4641 = vmatpush.bf16.msra.mxu0 %v4265
        %4642 = vmatpush.bf16.msra.mxu0 %v4264
        %4643 = vmatpush.bf16.msra.mxu0 %v4263
        %4644 = vmatpush.bf16.msra.mxu0 %v4262
        %4645 = vmatpush.bf16.msra.mxu0 %v4261
        %4646 = vmatpush.bf16.msra.mxu0 %v4260
        %4647 = vmatpush.bf16.msra.mxu0 %v4259
        %4648 = vmatpush.bf16.msra.mxu0 %v4258
        %4649 = vmatmul.bf16.gmra.mxu0 %v3519
        %v4650 = vpop.f32.mrf.mxu0
        %v4651 = vadd.f32 %v4637, %v4650
        %v4652 = vpop.f32.mrf.mxu0
        %v4653 = vadd.f32 %v4639, %v4652
        %4654 = vdwg.mxu0
        %4655 = vmatpush.bf16.msra.mxu0 %v4273
        %4656 = vmatpush.bf16.msra.mxu0 %v4272
        %4657 = vmatpush.bf16.msra.mxu0 %v4271
        %4658 = vmatpush.bf16.msra.mxu0 %v4270
        %4659 = vmatpush.bf16.msra.mxu0 %v4269
        %4660 = vmatpush.bf16.msra.mxu0 %v4268
        %4661 = vmatpush.bf16.msra.mxu0 %v4267
        %4662 = vmatpush.bf16.msra.mxu0 %v4266
        %4663 = vmatmul.bf16.gmra.mxu0 %v3520
        %v4664 = vpop.f32.mrf.mxu0
        %v4665 = vadd.f32 %v4651, %v4664
        %v4666 = vpop.f32.mrf.mxu0
        %v4667 = vadd.f32 %v4653, %v4666
        %4668 = vdwg.mxu0
        %4669 = vmatpush.bf16.msra.mxu0 %v4281
        %4670 = vmatpush.bf16.msra.mxu0 %v4280
        %4671 = vmatpush.bf16.msra.mxu0 %v4279
        %4672 = vmatpush.bf16.msra.mxu0 %v4278
        %4673 = vmatpush.bf16.msra.mxu0 %v4277
        %4674 = vmatpush.bf16.msra.mxu0 %v4276
        %4675 = vmatpush.bf16.msra.mxu0 %v4275
        %4676 = vmatpush.bf16.msra.mxu0 %v4274
        %4677 = vmatmul.bf16.gmra.mxu0 %v3521
        %v4678 = vpop.f32.mrf.mxu0
        %v4679 = vadd.f32 %v4665, %v4678
        %v4680 = vpop.f32.mrf.mxu0
        %v4681 = vadd.f32 %v4667, %v4680
        %4682 = vdwg.mxu0
        %4683 = vmatpush.bf16.msra.mxu0 %v4289
        %4684 = vmatpush.bf16.msra.mxu0 %v4288
        %4685 = vmatpush.bf16.msra.mxu0 %v4287
        %4686 = vmatpush.bf16.msra.mxu0 %v4286
        %4687 = vmatpush.bf16.msra.mxu0 %v4285
        %4688 = vmatpush.bf16.msra.mxu0 %v4284
        %4689 = vmatpush.bf16.msra.mxu0 %v4283
        %4690 = vmatpush.bf16.msra.mxu0 %v4282
        %4691 = vmatmul.bf16.gmra.mxu0 %v3522
        %v4692 = vpop.f32.mrf.mxu0
        %v4693 = vadd.f32 %v4679, %v4692
        %v4694 = vpop.f32.mrf.mxu0
        %v4695 = vadd.f32 %v4681, %v4694
        %4696 = vdwg.mxu0
        %4697 = vmatpush.bf16.msra.mxu0 %v4297
        %4698 = vmatpush.bf16.msra.mxu0 %v4296
        %4699 = vmatpush.bf16.msra.mxu0 %v4295
        %4700 = vmatpush.bf16.msra.mxu0 %v4294
        %4701 = vmatpush.bf16.msra.mxu0 %v4293
        %4702 = vmatpush.bf16.msra.mxu0 %v4292
        %4703 = vmatpush.bf16.msra.mxu0 %v4291
        %4704 = vmatpush.bf16.msra.mxu0 %v4290
        %4705 = vmatmul.bf16.gmra.mxu0 %v3523
        %v4706 = vpop.f32.mrf.mxu0
        %v4707 = vadd.f32 %v4693, %v4706
        %v4708 = vpop.f32.mrf.mxu0
        %v4709 = vadd.f32 %v4695, %v4708
        %4710 = vdwg.mxu0
        %4711 = vmatpush.bf16.msra.mxu0 %v4305
        %4712 = vmatpush.bf16.msra.mxu0 %v4304
        %4713 = vmatpush.bf16.msra.mxu0 %v4303
        %4714 = vmatpush.bf16.msra.mxu0 %v4302
        %4715 = vmatpush.bf16.msra.mxu0 %v4301
        %4716 = vmatpush.bf16.msra.mxu0 %v4300
        %4717 = vmatpush.bf16.msra.mxu0 %v4299
        %4718 = vmatpush.bf16.msra.mxu0 %v4298
        %4719 = vmatmul.bf16.gmra.mxu0 %v3524
        %v4720 = vpop.f32.mrf.mxu0
        %v4721 = vadd.f32 %v4707, %v4720
        %v4722 = vpop.f32.mrf.mxu0
        %v4723 = vadd.f32 %v4709, %v4722
        %4724 = vdwg.mxu0
        %4725 = vmatpush.bf16.msra.mxu0 %v4313
        %4726 = vmatpush.bf16.msra.mxu0 %v4312
        %4727 = vmatpush.bf16.msra.mxu0 %v4311
        %4728 = vmatpush.bf16.msra.mxu0 %v4310
        %4729 = vmatpush.bf16.msra.mxu0 %v4309
        %4730 = vmatpush.bf16.msra.mxu0 %v4308
        %4731 = vmatpush.bf16.msra.mxu0 %v4307
        %4732 = vmatpush.bf16.msra.mxu0 %v4306
        %4733 = vmatmul.bf16.gmra.mxu0 %v3525
        %v4734 = vpop.f32.mrf.mxu0
        %v4735 = vadd.f32 %v4721, %v4734
        %v4736 = vpop.f32.mrf.mxu0
        %v4737 = vadd.f32 %v4723, %v4736
        %4738 = vdwg.mxu0
        %4739 = vmatpush.bf16.msra.mxu0 %v4321
        %4740 = vmatpush.bf16.msra.mxu0 %v4320
        %4741 = vmatpush.bf16.msra.mxu0 %v4319
        %4742 = vmatpush.bf16.msra.mxu0 %v4318
        %4743 = vmatpush.bf16.msra.mxu0 %v4317
        %4744 = vmatpush.bf16.msra.mxu0 %v4316
        %4745 = vmatpush.bf16.msra.mxu0 %v4315
        %4746 = vmatpush.bf16.msra.mxu0 %v4314
        %4747 = vmatmul.bf16.gmra.mxu0 %v3526
        %v4748 = vpop.f32.mrf.mxu0
        %v4749 = vadd.f32 %v4735, %v4748
        %v4750 = vpop.f32.mrf.mxu0
        %v4751 = vadd.f32 %v4737, %v4750
        %4752 = vdwg.mxu0
        %4753 = vmatpush.bf16.msra.mxu0 %v4329
        %4754 = vmatpush.bf16.msra.mxu0 %v4328
        %4755 = vmatpush.bf16.msra.mxu0 %v4327
        %4756 = vmatpush.bf16.msra.mxu0 %v4326
        %4757 = vmatpush.bf16.msra.mxu0 %v4325
        %4758 = vmatpush.bf16.msra.mxu0 %v4324
        %4759 = vmatpush.bf16.msra.mxu0 %v4323
        %4760 = vmatpush.bf16.msra.mxu0 %v4322
        %4761 = vmatmul.bf16.gmra.mxu0 %v3527
        %v4762 = vpop.f32.mrf.mxu0
        %v4763 = vadd.f32 %v4749, %v4762
        %v4764 = vpop.f32.mrf.mxu0
        %v4765 = vadd.f32 %v4751, %v4764
        %4766 = vdwg.mxu0
        %4767 = vmatpush.bf16.msra.mxu0 0
        %4768 = vmatpush.bf16.msra.mxu0 0
        %4769 = vmatpush.bf16.msra.mxu0 %v4499
        %4770 = vmatpush.bf16.msra.mxu0 %v4334
        %4771 = vmatpush.bf16.msra.mxu0 %v4333
        %4772 = vmatpush.bf16.msra.mxu0 %v4332
        %4773 = vmatpush.bf16.msra.mxu0 %v4331
        %4774 = vmatpush.bf16.msra.mxu0 %v4330
        %4775 = vmatmul.bf16.gmra.mxu0 %v4495
        %v4776 = vpop.f32.mrf.mxu0
        %v4777 = vadd.f32 %v4763, %v4776
        %v4778 = vpop.f32.mrf.mxu0
        %v4779 = vadd.f32 %v4765, %v4778
        %4780 = vdwg.mxu0
        %vm4781 = vcmp.gt.f32.partialorder %v4777, 0.0
        %vm4782 = vcmp.gt.f32.partialorder %v4779, 0.0
        %v4783 = vmin.f32 %v4777, 0.0
        %v4784 = vmin.f32 %v4779, 0.0
        %v4785 = vmul.f32 %v4783, 1.442695
        %v4786 = vpow.pop %v4785
        %v4787 = vmul.f32 %v4784, 1.442695
        %v4788 = vpow.pop %v4787
        %v4789 = vsub.f32 %v4786, 1.0
        %v4790 = vsub.f32 %v4788, 1.0
        %v4791 = vsel %vm4781, %v4777, %v4789
        %v4792 = vsel %vm4782, %v4779, %v4790
        %v4793 = vld [vmem:[%s5] sm:$0xff]
        %v4794 = vld [vmem:[%s5 + $0x8] sm:$0xff]
        %v4795 = vld [vmem:[%s5 + $0x10] sm:$0xff]
        %v4796 = vld [vmem:[%s5 + $0x18] sm:$0xff]
        %v4797 = vld [vmem:[%s5 + $0x20] sm:$0xff]
        %v4798 = vld [vmem:[%s6] sm:$0x1]
        %v4800 = vperm.slane %v4798, 0
        %vm4802 = vcmask 326656
        %v4804 = vsel %vm4802, %v4791, 0
        %v4807 = vsel %vm4802, %v4792, 0
        %4809 = vmatpush.msra.mxu0 0.0
        %4810 = vmatpush.msra.mxu0 0.0
        %4811 = vmatpush.msra.mxu0 0.0
        %4812 = vmatpush.msra.mxu0 0.0
        %4813 = vmatpush.msra.mxu0 0.0
        %4814 = vmatpush.msra.mxu0 0.0
        %4815 = vmatpush.msra.mxu0 0.0
        %4816 = vmatpush.msra.mxu0 0.0
        %4817 = vmatpush.msra.mxu0 0.0
        %4818 = vmatpush.msra.mxu0 0.0
        %4819 = vmatpush.msra.mxu0 0.0
        %4820 = vmatpush.msra.mxu0 %v4797
        %4821 = vmatpush.msra.mxu0 %v4796
        %4822 = vmatpush.msra.mxu0 %v4795
        %4823 = vmatpush.msra.mxu0 %v4794
        %4824 = vmatpush.msra.mxu0 %v4793
        %4825 = vmatmul.f32.gmra.mxu0 %v4804
        %v4826 = vpop.f32.mrf.mxu0
        %v4827 = vadd.f32 %v4800, %v4826
        %4828 = vmatmul.f32.gmra.mxu0 %v4807
        %v4829 = vpop.f32.mrf.mxu0
        %v4830 = vadd.f32 %v4800, %v4829
        %4831 = vdwg.mxu0
        %4832 = vst [vmem:[%s272] sm:$0xff] %v4827
        %4833 = vst [vmem:[%s272 + $0x8] sm:$0xff] %v4830
        %s4834 = sand.u32 %s181, 1
        %s4835 = scalar_lea.sflag [#allocation5], %s4834
        %s4836 = sand.u32 %s181, 1
        %s4837 = smul.addr %s4836, 16
        %s4838 = scalar_lea.vmem [#allocation4], %s4837
        // Predicated region
        $region49: #{tpu_custom_call.1} parent=47 // pred_check
          %p4839 = pneg %p191
        $region50: #{tpu_custom_call.1} parent=47 // pred_check_branch
          %4841 = sbr.rel (%p4839) target = $region52
        $region51: #{tpu_custom_call.1} parent=47 // pred_region
          %s4842 = smul.u32 2, %s21
          %4844 = vsyncadd %s4835, 0
          %s4845 = smul.addr %s4842, 8
          %s4846 = scalar_lea.hbm %s7, %s4845
          %s4847 = sshll.u32 %s4838, 4
          %s4848 = int_to_ptr.vmem [resolvable:$true] %s4847
          %s4849 = sshll.u32 %s4846, 4
          %s4850 = int_to_ptr.hbm [resolvable:$true] %s4849
          %4855 = dma.vmem_to_hbm [thread:$0]  %s4848, 256, %s4850, %s4835, 128, 128, 8
        $region52: #{tpu_custom_call.1} parent=47 // pred_fallthru
          _
      $region48: #{tpu_custom_call.1} parent=5 // pred_fallthru
        _
      %p4856 = scmp.le.s32.totalorder 2, %s16
      // Predicated region
      $region53: #{tpu_custom_call.1} parent=5 // pred_check
        %p4857 = pneg %p4856
      $region54: #{tpu_custom_call.1} parent=5 // pred_check_branch
        %4859 = sbr.rel (%p4857) target = $region56
      $region55: #{tpu_custom_call.1} parent=5 // pred_region
        %s4860 = ssub.s32 %s16, 2
        // Predicated region
        $region57: #{tpu_custom_call.1} parent=55 // pred_check
          %p4861 = pneg %p197
        $region58: #{tpu_custom_call.1} parent=55 // pred_check_branch
          %4863 = sbr.rel (%p4861) target = $region60
        $region59: #{tpu_custom_call.1} parent=55 // pred_region
          %s4864 = sand.u32 %s182, 1
          %s4865 = scalar_lea.sflag [#allocation5], %s4864
          %s4866 = sand.u32 %s182, 1
          %s4867 = smul.addr %s4866, 16
          %s4868 = scalar_lea.vmem [#allocation4], %s4867
          %4870 = dma.done %s4865, 256
        $region60: #{tpu_custom_call.1} parent=55 // pred_fallthru
          _
      $region56: #{tpu_custom_call.1} parent=5 // pred_fallthru
        _
    $region6: #{tpu_custom_call.1} parent=1 // loop_footer
      %s20 = sadd.s32 1, %s16
    $region7: #{tpu_custom_call.1} parent=1 // loop_footer_branch
      %15 = sbr.rel target = $region3
    $region8: #{tpu_custom_call.1} parent=1 // loop_exit
      _
    %4871 = vsyncpa [#allocation5], 1
    %s4872 = scalar_lea.sflag [#allocation5], 1
    %4873 = vsyncpa %s4872, 1

</llo_original>
